<compile_context>
chip_gen: v5e
topology: v5e:2x2
jax: 0.10.0
libtpu: 0.0.40
codegen_flags: <defaults>
</compile_context>

<pallas_src>
import functools

import jax
import jax.numpy as jnp
from jax import lax
from jax.experimental import pallas as pl
from jax.experimental.pallas import tpu as pltpu


# ----------------------------------------------------------------------------
# Pallas kernel: two stacked BiLSTM layers + FC + mask + softmax (one batch tile)
# ----------------------------------------------------------------------------
def _bilstm_tagger_kernel(
    x_ref, len_ref,                               # (T,B,E) f32, (B,1) i32
    w1f_ih, w1f_hh, b1f,                          # layer1 fwd : (E,4H) bf16, (H,4H) f32, (1,4H) f32
    w1b_ih, w1b_hh, b1b,                          # layer1 bwd
    w2f_ih, w2f_hh, b2f,                          # layer2 fwd : (2H,4H) bf16, (H,4H) f32, (1,4H) f32
    w2b_ih, w2b_hh, b2b,                          # layer2 bwd
    wfc, bfc,                                     # (2H,Cpad) bf16, (1,Cpad) f32
    out_ref,                                      # (T,B,Cpad) f32
    pre_f, pre_b,                                 # scratch: (T*B, 4H) f32 (reused L1 -> L2)
    h1, h2,                                       # scratch: (T*B, 2H) f32 (fwd|bwd lanes)
    *, T, B, H, C,
):
    """B == batch-tile size (multiple of 8 sublanes).  Gate order is [i,f,o,g]."""
    f32 = jnp.float32
    bf16 = jnp.bfloat16
    TB = T * B

    # ------- hoisted, loop-invariant loads -------
    lens = len_ref[...]                           # (B,1) int32, loaded once
    whh1f = w1f_hh[...]
    whh1b = w1b_hh[...]
    whh2f = w2f_hh[...]
    whh2b = w2b_hh[...]

    # per-timestep validity masks, built once, off the recurrent chain
    # (assumes contiguous tail padding == pack_padded semantics)
    step_mask = [lens > t for t in range(T)]      # list of (B,1) bool

    # ------- layer-1 input projections: bf16 MXU operands, f32 accumulate -------
    # (T,B,E)->(TB,E) is a layout-trivial leading-dim collapse for f32 (B==8k);
    # the bf16 cast happens after it, as one bulk VPU op off the serial path.
    x2d = x_ref[...].reshape(TB, x_ref.shape[-1]).astype(bf16)
    pre_f[...] = jnp.dot(x2d, w1f_ih[...], preferred_element_type=f32) + b1f[...]
    pre_b[...] = jnp.dot(x2d, w1b_ih[...], preferred_element_type=f32) + b1b[...]

    def cell(pre, h, c, m):
        # gate order [i, f, o, g]: sigmoid on lanes [0:3H], tanh on [3H:4H]
        sg = jax.nn.sigmoid(pre[:, :3 * H])
        g = jnp.tanh(pre[:, 3 * H:])
        i = sg[:, 0 * H:1 * H]
        f = sg[:, 1 * H:2 * H]
        o = sg[:, 2 * H:3 * H]
        c_new = f * c + i * g
        h_new = o * jnp.tanh(c_new)
        # single-vsel masked updates: padded steps neither advance state nor emit
        h_nxt = jnp.where(m, h_new, h)
        c_nxt = jnp.where(m, c_new, c)
        return h_nxt, c_nxt, jnp.where(m, h_new, 0.0)

    def run_layer(whhF, whhB, out_scr):
        # Fused fwd/bwd recurrence, fully unrolled (T is small and static):
        # two independent dependency chains per iteration for the scheduler.
        # TODO(synk): for T >> 32 switch to lax.fori_loop(..., unroll=4..8)
        # to bound vreg live ranges / compile time.
        hF = jnp.zeros((B, H), f32)
        cF = jnp.zeros((B, H), f32)
        hB = jnp.zeros((B, H), f32)
        cB = jnp.zeros((B, H), f32)
        for t in range(T):
            tb = T - 1 - t
            # static row offsets, 8-sublane aligned because B % 8 == 0
            pF = pre_f[t * B:(t + 1) * B, :] + jnp.dot(
                hF, whhF, preferred_element_type=f32)
            pB = pre_b[tb * B:(tb + 1) * B, :] + jnp.dot(
                hB, whhB, preferred_element_type=f32)
            hF, cF, oF = cell(pF, hF, cF, step_mask[t])
            hB, cB, oB = cell(pB, hB, cB, step_mask[tb])
            out_scr[t * B:(t + 1) * B, 0:H] = oF          # fwd direction lanes
            out_scr[tb * B:(tb + 1) * B, H:2 * H] = oB    # bwd direction lanes

    # ---------------- layer 1 ----------------
    run_layer(whh1f, whh1b, h1)

    # ------- layer-2 input projections (reuse pre scratches, one bulk cast) -------
    z1 = h1[...].astype(bf16)                     # (TB, 2H) bf16
    pre_f[...] = jnp.dot(z1, w2f_ih[...], preferred_element_type=f32) + b2f[...]
    pre_b[...] = jnp.dot(z1, w2b_ih[...], preferred_element_type=f32) + b2b[...]

    # ---------------- layer 2 ----------------
    run_layer(whh2f, whh2b, h2)

    # ---------------- FC + length mask + softmax (lane-dense output) ----------------
    # TODO(synk): Dropout(p=dropout_probability) is identity at p=0 / eval time.
    z2 = h2[...].astype(bf16)                     # (TB, 2H) bf16
    cpad = out_ref.shape[-1]
    logits = (jnp.dot(z2, wfc[...], preferred_element_type=f32)
              + bfc[...]).reshape(T, B, cpad)     # (T, B, Cpad)
    tt = lax.broadcasted_iota(jnp.int32, (T, B, cpad), 0)
    cc = lax.broadcasted_iota(jnp.int32, (T, B, cpad), 2)
    logits = jnp.where(tt < lens[None, :, :], logits, 0.0)    # logits * pad-mask
    logits = jnp.where(cc < C, logits, -jnp.inf)              # exclude padded classes
    mx = jnp.max(logits, axis=-1, keepdims=True)
    e = jnp.exp(logits - mx)
    out_ref[...] = e / jnp.sum(e, axis=-1, keepdims=True)     # exact normalization


# ----------------------------------------------------------------------------
# Wrapper: embedding lookup (glue) + pallas_call
# ----------------------------------------------------------------------------
@functools.partial(jax.jit, static_argnames=("padding_token_index",))
def bilstm_tagger_forward(sequence, params, padding_token_index):
    """sequence: (B, T) int32 -> probabilities (B, T, C) float32."""
    B, T = sequence.shape
    emb = params["embedding"]                     # (V, E), row pad_idx == 0
    E = emb.shape[1]
    H = params["w1f_hh"].shape[0]
    C = params["wfc"].shape[1]
    c_pad = ((C + 127) // 128) * 128
    b_pad = ((B + 7) // 8) * 8                    # 8-sublane alignment
    bf16 = jnp.bfloat16

    # batch tile: multiple of 8, grows while it divides b_pad; bounds scratch
    # to O(T * b_tile * H) and exposes a parallel grid axis (v7x: 2 TCs).
    b_tile = 8
    while b_tile * 2 <= min(b_pad, 64) and b_pad % (b_tile * 2) == 0:
        b_tile *= 2
    n_tiles = b_pad // b_tile

    # word representation (nn.Embedding with padding_idx -> zero row) — glue
    x = jnp.take(emb, sequence, axis=0).astype(jnp.float32)          # (B, T, E)
    lengths = jnp.sum(sequence != padding_token_index, axis=1).astype(jnp.int32)

    # pad batch to b_pad (zero rows, zero lengths) and go time-major
    x = jnp.pad(x, ((0, b_pad - B), (0, 0), (0, 0)))
    lengths = jnp.pad(lengths, ((0, b_pad - B),))[:, None]           # (b_pad, 1)
    x_tbe = jnp.transpose(x, (1, 0, 2))                              # (T, b_pad, E) f32

    # gate reorder [i,f,g,o] -> [i,f,o,g] so tanh only touches the last H slab
    def reorder(w):
        return jnp.concatenate(
            [w[..., :2 * H], w[..., 3 * H:], w[..., 2 * H:3 * H]], axis=-1)

    pad_c = lambda a: jnp.pad(a, ((0, 0), (0, c_pad - C)))

    kernel_inputs = (
        x_tbe, lengths,
        reorder(params["w1f_ih"]).astype(bf16), reorder(params["w1f_hh"]), reorder(params["b1f"]),
        reorder(params["w1b_ih"]).astype(bf16), reorder(params["w1b_hh"]), reorder(params["b1b"]),
        reorder(params["w2f_ih"]).astype(bf16), reorder(params["w2f_hh"]), reorder(params["b2f"]),
        reorder(params["w2b_ih"]).astype(bf16), reorder(params["w2b_hh"]), reorder(params["b2b"]),
        pad_c(params["wfc"]).astype(bf16), pad_c(params["bfc"]),
    )

    def whole(a):  # weights: constant-index full block -> stays VMEM-resident
        zeros = (0,) * a.ndim
        return pl.BlockSpec(a.shape, lambda i, z=zeros: z)

    in_specs = (
        [pl.BlockSpec((T, b_tile, E), lambda i: (0, i, 0)),   # x, tiled on batch
         pl.BlockSpec((b_tile, 1), lambda i: (i, 0))]         # lengths
        + [whole(a) for a in kernel_inputs[2:]]
    )
    out_spec = pl.BlockSpec((T, b_tile, c_pad), lambda i: (0, i, 0))

    scratch_shapes = [
        pltpu.VMEM((T * b_tile, 4 * H), jnp.float32),   # pre_f (reused L1 -> L2)
        pltpu.VMEM((T * b_tile, 4 * H), jnp.float32),   # pre_b
        pltpu.VMEM((T * b_tile, 2 * H), jnp.float32),   # h1 (fwd|bwd lanes)
        pltpu.VMEM((T * b_tile, 2 * H), jnp.float32),   # h2
    ]

    # generation-aware VMEM budget (v5e/v6e: 128 MiB, v7x: 64 MiB per core);
    # only the gridded tiles are double-buffered, resident weights are not.
    try:
        vmem_cap = int(pltpu.get_tpu_info().vmem_capacity_bytes)
    except Exception:  # conservative fallback if the query is unavailable
        vmem_cap = 64 * 1024 * 1024
    nbytes = lambda a: a.size * jnp.dtype(a.dtype).itemsize
    weight_bytes = sum(nbytes(a) for a in kernel_inputs[2:])
    tile_bytes = ((nbytes(x_tbe) + nbytes(lengths)) // n_tiles
                  + T * b_tile * c_pad * 4)
    scratch_bytes = (2 * 4 * H + 2 * 2 * H) * T * b_tile * 4
    need = weight_bytes + 2 * tile_bytes + scratch_bytes
    vmem_limit = int(min(max(vmem_cap - (4 << 20), 16 << 20),
                         max(2 * need, 32 << 20)))

    out = pl.pallas_call(
        functools.partial(_bilstm_tagger_kernel, T=T, B=b_tile, H=H, C=C),
        out_shape=jax.ShapeDtypeStruct((T, b_pad, c_pad), jnp.float32),
        grid=(n_tiles,),
        in_specs=in_specs,
        out_specs=out_spec,
        scratch_shapes=scratch_shapes,
        compiler_params=pltpu.CompilerParams(
            dimension_semantics=("parallel",),
            vmem_limit_bytes=vmem_limit),
    )(*kernel_inputs)

    # (T, b_pad, c_pad) -> (B, T, C): drop batch and class padding
    return jnp.transpose(out, (1, 0, 2))[:B, :, :C]


# ----------------------------------------------------------------------------
# Pure-JAX reference (for a correctness sanity check)
# ----------------------------------------------------------------------------
def _reference_forward(sequence, params, padding_token_index):
    emb = params["embedding"]
    H = params["w1f_hh"].shape[0]
    x = jnp.take(emb, sequence, axis=0)             # (B, T, E)
    mask = (sequence != padding_token_index).astype(jnp.float32)    # (B, T)

    def run_dir(xs, w_ih, w_hh, b, reverse):
        B = xs.shape[0]

        def cell(carry, inp):
            h, c = carry
            xt, m = inp
            pre = xt @ w_ih + h @ w_hh + b
            i, f, g, o = jnp.split(pre, 4, axis=-1)
            i, f, o = jax.nn.sigmoid(i), jax.nn.sigmoid(f), jax.nn.sigmoid(o)
            g = jnp.tanh(g)
            c_new = f * c + i * g
            h_new = o * jnp.tanh(c_new)
            m = m[:, None]
            return (m * h_new + (1 - m) * h, m * c_new + (1 - m) * c), m * h_new

        xs_tm = jnp.transpose(xs, (1, 0, 2))
        m_tm = jnp.transpose(mask, (1, 0))
        z = jnp.zeros((B, H), jnp.float32)
        _, outs = lax.scan(cell, (z, z), (xs_tm, m_tm), reverse=reverse)
        return jnp.transpose(outs, (1, 0, 2))

    h1 = jnp.concatenate(
        [run_dir(x, params["w1f_ih"], params["w1f_hh"], params["b1f"][0], False),
         run_dir(x, params["w1b_ih"], params["w1b_hh"], params["b1b"][0], True)], -1)
    h2 = jnp.concatenate(
        [run_dir(h1, params["w2f_ih"], params["w2f_hh"], params["b2f"][0], False),
         run_dir(h1, params["w2b_ih"], params["w2b_hh"], params["b2b"][0], True)], -1)
    logits = (h2 @ params["wfc"] + params["bfc"][0]) * mask[:, :, None]
    return jax.nn.softmax(logits, axis=2)


# ----------------------------------------------------------------------------
# Deterministic parameter construction
# ----------------------------------------------------------------------------
def make_params(key, vocab, embed_dim, hidden, n_classes, pad_idx):
    def uni(k, shape, scale):
        return jax.random.uniform(k, shape, jnp.float32, -scale, scale)

    ks = jax.random.split(key, 20)
    s = 1.0 / jnp.sqrt(hidden)
    p = {}
    emb = 0.1 * jax.random.normal(ks[0], (vocab, embed_dim), jnp.float32)
    p["embedding"] = emb.at[pad_idx].set(0.0)       # padding_idx row = 0

    # LSTM weights are stored pre-transposed: (in, 4H) so the kernel does x @ W;
    # column order here is torch's [i, f, g, o] (kernel-side reorder to [i,f,o,g]).
    def lstm_dir(kw, kh, kb1, kb2, in_dim):
        w_ih = uni(kw, (in_dim, 4 * hidden), s)
        w_hh = uni(kh, (hidden, 4 * hidden), s)
        b = (uni(kb1, (4 * hidden,), s) + uni(kb2, (4 * hidden,), s))[None, :]
        return w_ih, w_hh, b

    p["w1f_ih"], p["w1f_hh"], p["b1f"] = lstm_dir(ks[1], ks[2], ks[3], ks[4], embed_dim)
    p["w1b_ih"], p["w1b_hh"], p["b1b"] = lstm_dir(ks[5], ks[6], ks[7], ks[8], embed_dim)
    p["w2f_ih"], p["w2f_hh"], p["b2f"] = lstm_dir(ks[9], ks[10], ks[11], ks[12], 2 * hidden)
    p["w2b_ih"], p["w2b_hh"], p["b2b"] = lstm_dir(ks[13], ks[14], ks[15], ks[16], 2 * hidden)

    sf = 1.0 / jnp.sqrt(2.0 * hidden)
    p["wfc"] = uni(ks[17], (2 * hidden, n_classes), sf)
    p["bfc"] = uni(ks[18], (n_classes,), sf)[None, :]
    return p


if __name__ == "__main__":
    # small shapes consistent with the module's forward
    B, T = 2, 8
    VOCAB, EMBED, HIDDEN, N_CLASSES = 50, 32, 32, 8
    PAD_IDX = 0

    key = jax.random.PRNGKey(0)
    k_par, k_seq = jax.random.split(key)
    params = make_params(k_par, VOCAB, EMBED, HIDDEN, N_CLASSES, PAD_IDX)

    # padded token sequences (variable lengths, contiguous tail padding)
    seq = jax.random.randint(k_seq, (B, T), 1, VOCAB).astype(jnp.int32)
    seq = seq.at[0, 6:].set(PAD_IDX)   # length 6
    seq = seq.at[1, 4:].set(PAD_IDX)   # length 4

    probs = bilstm_tagger_forward(seq, params, PAD_IDX)
    probs = jax.block_until_ready(probs)

    ref = _reference_forward(seq, params, PAD_IDX)
    assert probs.shape == (B, T, N_CLASSES)
    # exact softmax normalization (no approx reciprocal)
    assert jnp.allclose(jnp.sum(probs, axis=-1), 1.0, atol=1e-3)
    # tolerance accounts for bf16 MXU operands on the hoisted projections / FC
    assert jnp.allclose(probs, ref, atol=1e-2, rtol=1e-2), "mismatch vs reference"

    print("KERNEL_OK")
</pallas_src>

<mosaic_0001>
module attributes {stable_mosaic.version = 11 : i64} {
  func.func @_bilstm_tagger_kernel(%arg0: i32, %arg1: memref<8x8x32xf32, #tpu.memory_space<vmem>>, %arg2: memref<8x1xi32, #tpu.memory_space<vmem>>, %arg3: memref<32x128xbf16, #tpu.memory_space<vmem>>, %arg4: memref<32x128xf32, #tpu.memory_space<vmem>>, %arg5: memref<1x128xf32, #tpu.memory_space<vmem>>, %arg6: memref<32x128xbf16, #tpu.memory_space<vmem>>, %arg7: memref<32x128xf32, #tpu.memory_space<vmem>>, %arg8: memref<1x128xf32, #tpu.memory_space<vmem>>, %arg9: memref<64x128xbf16, #tpu.memory_space<vmem>>, %arg10: memref<32x128xf32, #tpu.memory_space<vmem>>, %arg11: memref<1x128xf32, #tpu.memory_space<vmem>>, %arg12: memref<64x128xbf16, #tpu.memory_space<vmem>>, %arg13: memref<32x128xf32, #tpu.memory_space<vmem>>, %arg14: memref<1x128xf32, #tpu.memory_space<vmem>>, %arg15: memref<64x128xbf16, #tpu.memory_space<vmem>>, %arg16: memref<1x128xf32, #tpu.memory_space<vmem>>, %arg17: memref<8x8x128xf32, #tpu.memory_space<vmem>>, %arg18: memref<64x128xf32, #tpu.memory_space<vmem>>, %arg19: memref<64x128xf32, #tpu.memory_space<vmem>>, %arg20: memref<64x64xf32, #tpu.memory_space<vmem>>, %arg21: memref<64x64xf32, #tpu.memory_space<vmem>>) attributes {dimension_semantics = [#tpu.dimension_semantics<parallel>], iteration_bounds = array<i64: 1>, scalar_prefetch = 0 : i64, scratch_operands = 4 : i64, tpu.core_type = #tpu.core_type<tc>, window_params = [{transform_indices = @transform_0, window_bounds = array<i64: 8, 8, 32>}, {transform_indices = @transform_1, window_bounds = array<i64: 8, 1>}, {pipeline_mode = #tpu.pipeline_mode<synchronous>, transform_indices = @transform_2, window_bounds = array<i64: 32, 128>}, {pipeline_mode = #tpu.pipeline_mode<synchronous>, transform_indices = @transform_3, window_bounds = array<i64: 32, 128>}, {pipeline_mode = #tpu.pipeline_mode<synchronous>, transform_indices = @transform_4, window_bounds = array<i64: 1, 128>}, {pipeline_mode = #tpu.pipeline_mode<synchronous>, transform_indices = @transform_5, window_bounds = array<i64: 32, 128>}, {pipeline_mode = #tpu.pipeline_mode<synchronous>, transform_indices = @transform_6, window_bounds = array<i64: 32, 128>}, {pipeline_mode = #tpu.pipeline_mode<synchronous>, transform_indices = @transform_7, window_bounds = array<i64: 1, 128>}, {pipeline_mode = #tpu.pipeline_mode<synchronous>, transform_indices = @transform_8, window_bounds = array<i64: 64, 128>}, {pipeline_mode = #tpu.pipeline_mode<synchronous>, transform_indices = @transform_9, window_bounds = array<i64: 32, 128>}, {pipeline_mode = #tpu.pipeline_mode<synchronous>, transform_indices = @transform_10, window_bounds = array<i64: 1, 128>}, {pipeline_mode = #tpu.pipeline_mode<synchronous>, transform_indices = @transform_11, window_bounds = array<i64: 64, 128>}, {pipeline_mode = #tpu.pipeline_mode<synchronous>, transform_indices = @transform_12, window_bounds = array<i64: 32, 128>}, {pipeline_mode = #tpu.pipeline_mode<synchronous>, transform_indices = @transform_13, window_bounds = array<i64: 1, 128>}, {pipeline_mode = #tpu.pipeline_mode<synchronous>, transform_indices = @transform_14, window_bounds = array<i64: 64, 128>}, {pipeline_mode = #tpu.pipeline_mode<synchronous>, transform_indices = @transform_15, window_bounds = array<i64: 1, 128>}, {transform_indices = @transform_16, window_bounds = array<i64: 8, 8, 128>}]} {
    %c0 = arith.constant 0 : index
    %c0_0 = arith.constant 0 : index
    %0 = vector.load %arg2[%c0, %c0_0] : memref<8x1xi32, #tpu.memory_space<vmem>>, vector<8x1xi32>
    %c0_1 = arith.constant 0 : index
    %c0_2 = arith.constant 0 : index
    %1 = vector.load %arg4[%c0_1, %c0_2] : memref<32x128xf32, #tpu.memory_space<vmem>>, vector<32x128xf32>
    %c0_3 = arith.constant 0 : index
    %c0_4 = arith.constant 0 : index
    %2 = vector.load %arg7[%c0_3, %c0_4] : memref<32x128xf32, #tpu.memory_space<vmem>>, vector<32x128xf32>
    %c0_5 = arith.constant 0 : index
    %c0_6 = arith.constant 0 : index
    %3 = vector.load %arg10[%c0_5, %c0_6] : memref<32x128xf32, #tpu.memory_space<vmem>>, vector<32x128xf32>
    %c0_7 = arith.constant 0 : index
    %c0_8 = arith.constant 0 : index
    %4 = vector.load %arg13[%c0_7, %c0_8] : memref<32x128xf32, #tpu.memory_space<vmem>>, vector<32x128xf32>
    %c0_i32 = arith.constant 0 : i32
    %5 = vector.broadcast %c0_i32 : i32 to vector<8x1xi32>
    %6 = arith.cmpi sgt, %0, %5 : vector<8x1xi32>
    %c1_i32 = arith.constant 1 : i32
    %7 = vector.broadcast %c1_i32 : i32 to vector<8x1xi32>
    %8 = arith.cmpi sgt, %0, %7 : vector<8x1xi32>
    %c2_i32 = arith.constant 2 : i32
    %9 = vector.broadcast %c2_i32 : i32 to vector<8x1xi32>
    %10 = arith.cmpi sgt, %0, %9 : vector<8x1xi32>
    %c3_i32 = arith.constant 3 : i32
    %11 = vector.broadcast %c3_i32 : i32 to vector<8x1xi32>
    %12 = arith.cmpi sgt, %0, %11 : vector<8x1xi32>
    %c4_i32 = arith.constant 4 : i32
    %13 = vector.broadcast %c4_i32 : i32 to vector<8x1xi32>
    %14 = arith.cmpi sgt, %0, %13 : vector<8x1xi32>
    %c5_i32 = arith.constant 5 : i32
    %15 = vector.broadcast %c5_i32 : i32 to vector<8x1xi32>
    %16 = arith.cmpi sgt, %0, %15 : vector<8x1xi32>
    %c6_i32 = arith.constant 6 : i32
    %17 = vector.broadcast %c6_i32 : i32 to vector<8x1xi32>
    %18 = arith.cmpi sgt, %0, %17 : vector<8x1xi32>
    %c7_i32 = arith.constant 7 : i32
    %19 = vector.broadcast %c7_i32 : i32 to vector<8x1xi32>
    %20 = arith.cmpi sgt, %0, %19 : vector<8x1xi32>
    %c0_9 = arith.constant 0 : index
    %c0_10 = arith.constant 0 : index
    %c0_11 = arith.constant 0 : index
    %21 = vector.load %arg1[%c0_9, %c0_10, %c0_11] : memref<8x8x32xf32, #tpu.memory_space<vmem>>, vector<8x8x32xf32>
    %22 = vector.shape_cast %21 : vector<8x8x32xf32> to vector<64x32xf32>
    %23 = arith.truncf %22 : vector<64x32xf32> to vector<64x32xbf16>
    %c0_12 = arith.constant 0 : index
    %c0_13 = arith.constant 0 : index
    %24 = vector.load %arg3[%c0_12, %c0_13] : memref<32x128xbf16, #tpu.memory_space<vmem>>, vector<32x128xbf16>
    %cst = arith.constant dense<0.000000e+00> : vector<64x128xf32>
    %25 = tpu.matmul %23, %24, %cst {dimension_numbers = #tpu.dot_dimension_numbers<[1], [0], [0], [1], [0, 0, 1, 1], [], []>} : vector<64x32xbf16>, vector<32x128xbf16>, vector<64x128xf32> -> vector<64x128xf32>
    %c0_14 = arith.constant 0 : index
    %c0_15 = arith.constant 0 : index
    %26 = vector.load %arg5[%c0_14, %c0_15] : memref<1x128xf32, #tpu.memory_space<vmem>>, vector<1x128xf32>
    %27 = vector.broadcast %26 : vector<1x128xf32> to vector<64x128xf32>
    %28 = arith.addf %25, %27 : vector<64x128xf32>
    %c0_16 = arith.constant 0 : index
    %c0_17 = arith.constant 0 : index
    %29 = vector.load %arg18[%c0_16, %c0_17] : memref<64x128xf32, #tpu.memory_space<vmem>>, vector<64x128xf32>
    tpu.vector_store %arg18[%c0_16, %c0_17], %28 {strides = array<i32>} : memref<64x128xf32, #tpu.memory_space<vmem>>, vector<64x128xf32>,
    %c0_18 = arith.constant 0 : index
    %c0_19 = arith.constant 0 : index
    %30 = vector.load %arg6[%c0_18, %c0_19] : memref<32x128xbf16, #tpu.memory_space<vmem>>, vector<32x128xbf16>
    %cst_20 = arith.constant dense<0.000000e+00> : vector<64x128xf32>
    %31 = tpu.matmul %23, %30, %cst_20 {dimension_numbers = #tpu.dot_dimension_numbers<[1], [0], [0], [1], [0, 0, 1, 1], [], []>} : vector<64x32xbf16>, vector<32x128xbf16>, vector<64x128xf32> -> vector<64x128xf32>
    %c0_21 = arith.constant 0 : index
    %c0_22 = arith.constant 0 : index
    %32 = vector.load %arg8[%c0_21, %c0_22] : memref<1x128xf32, #tpu.memory_space<vmem>>, vector<1x128xf32>
    %33 = vector.broadcast %32 : vector<1x128xf32> to vector<64x128xf32>
    %34 = arith.addf %31, %33 : vector<64x128xf32>
    %c0_23 = arith.constant 0 : index
    %c0_24 = arith.constant 0 : index
    %35 = vector.load %arg19[%c0_23, %c0_24] : memref<64x128xf32, #tpu.memory_space<vmem>>, vector<64x128xf32>
    tpu.vector_store %arg19[%c0_23, %c0_24], %34 {strides = array<i32>} : memref<64x128xf32, #tpu.memory_space<vmem>>, vector<64x128xf32>,
    %cst_25 = arith.constant 0.000000e+00 : f32
    %36 = vector.broadcast %cst_25 : f32 to vector<8x32xf32>
    %cst_26 = arith.constant 0.000000e+00 : f32
    %37 = vector.broadcast %cst_26 : f32 to vector<8x32xf32>
    %cst_27 = arith.constant 0.000000e+00 : f32
    %38 = vector.broadcast %cst_27 : f32 to vector<8x32xf32>
    %cst_28 = arith.constant 0.000000e+00 : f32
    %39 = vector.broadcast %cst_28 : f32 to vector<8x32xf32>
    %c0_29 = arith.constant 0 : index
    %c0_30 = arith.constant 0 : index
    %40 = vector.load %arg18[%c0_29, %c0_30] : memref<64x128xf32, #tpu.memory_space<vmem>>, vector<8x128xf32>
    %cst_31 = arith.constant dense<0.000000e+00> : vector<8x128xf32>
    %41 = tpu.matmul %36, %1, %cst_31 {dimension_numbers = #tpu.dot_dimension_numbers<[1], [0], [0], [1], [0, 0, 1, 1], [], []>} : vector<8x32xf32>, vector<32x128xf32>, vector<8x128xf32> -> vector<8x128xf32>
    %42 = arith.addf %40, %41 : vector<8x128xf32>
    %c56 = arith.constant 56 : index
    %c0_32 = arith.constant 0 : index
    %43 = vector.load %arg19[%c56, %c0_32] : memref<64x128xf32, #tpu.memory_space<vmem>>, vector<8x128xf32>
    %cst_33 = arith.constant dense<0.000000e+00> : vector<8x128xf32>
    %44 = tpu.matmul %38, %2, %cst_33 {dimension_numbers = #tpu.dot_dimension_numbers<[1], [0], [0], [1], [0, 0, 1, 1], [], []>} : vector<8x32xf32>, vector<32x128xf32>, vector<8x128xf32> -> vector<8x128xf32>
    %45 = arith.addf %43, %44 : vector<8x128xf32>
    %46 = vector.extract_strided_slice %42 {offsets = [0, 0], sizes = [8, 96], strides = [1, 1]} : vector<8x128xf32> to vector<8x96xf32>
    %47 = arith.negf %46 : vector<8x96xf32>
    %48 = math.exp %47 : vector<8x96xf32>
    %cst_34 = arith.constant 1.000000e+00 : f32
    %49 = vector.broadcast %cst_34 : f32 to vector<8x96xf32>
    %50 = arith.addf %49, %48 : vector<8x96xf32>
    %51 = arith.divf %49, %50 : vector<8x96xf32>
    %52 = vector.extract_strided_slice %42 {offsets = [0, 96], sizes = [8, 32], strides = [1, 1]} : vector<8x128xf32> to vector<8x32xf32>
    %53 = math.tanh %52 : vector<8x32xf32>
    %54 = vector.extract_strided_slice %51 {offsets = [0, 0], sizes = [8, 32], strides = [1, 1]} : vector<8x96xf32> to vector<8x32xf32>
    %55 = vector.extract_strided_slice %51 {offsets = [0, 32], sizes = [8, 32], strides = [1, 1]} : vector<8x96xf32> to vector<8x32xf32>
    %56 = vector.extract_strided_slice %51 {offsets = [0, 64], sizes = [8, 32], strides = [1, 1]} : vector<8x96xf32> to vector<8x32xf32>
    %57 = arith.mulf %55, %37 : vector<8x32xf32>
    %58 = arith.mulf %54, %53 : vector<8x32xf32>
    %59 = arith.addf %57, %58 : vector<8x32xf32>
    %60 = math.tanh %59 : vector<8x32xf32>
    %61 = arith.mulf %56, %60 : vector<8x32xf32>
    %62 = vector.shape_cast %6 : vector<8x1xi1> to vector<8x1xi1>
    %63 = vector.broadcast %62 : vector<8x1xi1> to vector<8x32xi1>
    %64 = arith.select %63, %61, %36 : vector<8x32xi1>, vector<8x32xf32>
    %65 = vector.shape_cast %6 : vector<8x1xi1> to vector<8x1xi1>
    %66 = vector.broadcast %65 : vector<8x1xi1> to vector<8x32xi1>
    %67 = arith.select %66, %59, %37 : vector<8x32xi1>, vector<8x32xf32>
    %cst_35 = arith.constant 0.000000e+00 : f32
    %68 = vector.shape_cast %6 : vector<8x1xi1> to vector<8x1xi1>
    %69 = vector.broadcast %68 : vector<8x1xi1> to vector<8x32xi1>
    %70 = vector.broadcast %cst_35 : f32 to vector<8x32xf32>
    %71 = arith.select %69, %61, %70 : vector<8x32xi1>, vector<8x32xf32>
    %72 = vector.extract_strided_slice %45 {offsets = [0, 0], sizes = [8, 96], strides = [1, 1]} : vector<8x128xf32> to vector<8x96xf32>
    %73 = arith.negf %72 : vector<8x96xf32>
    %74 = math.exp %73 : vector<8x96xf32>
    %cst_36 = arith.constant 1.000000e+00 : f32
    %75 = vector.broadcast %cst_36 : f32 to vector<8x96xf32>
    %76 = arith.addf %75, %74 : vector<8x96xf32>
    %77 = arith.divf %75, %76 : vector<8x96xf32>
    %78 = vector.extract_strided_slice %45 {offsets = [0, 96], sizes = [8, 32], strides = [1, 1]} : vector<8x128xf32> to vector<8x32xf32>
    %79 = math.tanh %78 : vector<8x32xf32>
    %80 = vector.extract_strided_slice %77 {offsets = [0, 0], sizes = [8, 32], strides = [1, 1]} : vector<8x96xf32> to vector<8x32xf32>
    %81 = vector.extract_strided_slice %77 {offsets = [0, 32], sizes = [8, 32], strides = [1, 1]} : vector<8x96xf32> to vector<8x32xf32>
    %82 = vector.extract_strided_slice %77 {offsets = [0, 64], sizes = [8, 32], strides = [1, 1]} : vector<8x96xf32> to vector<8x32xf32>
    %83 = arith.mulf %81, %39 : vector<8x32xf32>
    %84 = arith.mulf %80, %79 : vector<8x32xf32>
    %85 = arith.addf %83, %84 : vector<8x32xf32>
    %86 = math.tanh %85 : vector<8x32xf32>
    %87 = arith.mulf %82, %86 : vector<8x32xf32>
    %88 = vector.shape_cast %20 : vector<8x1xi1> to vector<8x1xi1>
    %89 = vector.broadcast %88 : vector<8x1xi1> to vector<8x32xi1>
    %90 = arith.select %89, %87, %38 : vector<8x32xi1>, vector<8x32xf32>
    %91 = vector.shape_cast %20 : vector<8x1xi1> to vector<8x1xi1>
    %92 = vector.broadcast %91 : vector<8x1xi1> to vector<8x32xi1>
    %93 = arith.select %92, %85, %39 : vector<8x32xi1>, vector<8x32xf32>
    %cst_37 = arith.constant 0.000000e+00 : f32
    %94 = vector.shape_cast %20 : vector<8x1xi1> to vector<8x1xi1>
    %95 = vector.broadcast %94 : vector<8x1xi1> to vector<8x32xi1>
    %96 = vector.broadcast %cst_37 : f32 to vector<8x32xf32>
    %97 = arith.select %95, %87, %96 : vector<8x32xi1>, vector<8x32xf32>
    %c0_38 = arith.constant 0 : index
    %c0_39 = arith.constant 0 : index
    %98 = vector.load %arg20[%c0_38, %c0_39] : memref<64x64xf32, #tpu.memory_space<vmem>>, vector<8x32xf32>
    tpu.vector_store %arg20[%c0_38, %c0_39], %71 {strides = array<i32>} : memref<64x64xf32, #tpu.memory_space<vmem>>, vector<8x32xf32>,
    %c56_40 = arith.constant 56 : index
    %c32 = arith.constant 32 : index
    %99 = vector.load %arg20[%c56_40, %c32] : memref<64x64xf32, #tpu.memory_space<vmem>>, vector<8x32xf32>
    tpu.vector_store %arg20[%c56_40, %c32], %97 {strides = array<i32>} : memref<64x64xf32, #tpu.memory_space<vmem>>, vector<8x32xf32>,
    %c8 = arith.constant 8 : index
    %c0_41 = arith.constant 0 : index
    %100 = vector.load %arg18[%c8, %c0_41] : memref<64x128xf32, #tpu.memory_space<vmem>>, vector<8x128xf32>
    %cst_42 = arith.constant dense<0.000000e+00> : vector<8x128xf32>
    %101 = tpu.matmul %64, %1, %cst_42 {dimension_numbers = #tpu.dot_dimension_numbers<[1], [0], [0], [1], [0, 0, 1, 1], [], []>} : vector<8x32xf32>, vector<32x128xf32>, vector<8x128xf32> -> vector<8x128xf32>
    %102 = arith.addf %100, %101 : vector<8x128xf32>
    %c48 = arith.constant 48 : index
    %c0_43 = arith.constant 0 : index
    %103 = vector.load %arg19[%c48, %c0_43] : memref<64x128xf32, #tpu.memory_space<vmem>>, vector<8x128xf32>
    %cst_44 = arith.constant dense<0.000000e+00> : vector<8x128xf32>
    %104 = tpu.matmul %90, %2, %cst_44 {dimension_numbers = #tpu.dot_dimension_numbers<[1], [0], [0], [1], [0, 0, 1, 1], [], []>} : vector<8x32xf32>, vector<32x128xf32>, vector<8x128xf32> -> vector<8x128xf32>
    %105 = arith.addf %103, %104 : vector<8x128xf32>
    %106 = vector.extract_strided_slice %102 {offsets = [0, 0], sizes = [8, 96], strides = [1, 1]} : vector<8x128xf32> to vector<8x96xf32>
    %107 = arith.negf %106 : vector<8x96xf32>
    %108 = math.exp %107 : vector<8x96xf32>
    %cst_45 = arith.constant 1.000000e+00 : f32
    %109 = vector.broadcast %cst_45 : f32 to vector<8x96xf32>
    %110 = arith.addf %109, %108 : vector<8x96xf32>
    %111 = arith.divf %109, %110 : vector<8x96xf32>
    %112 = vector.extract_strided_slice %102 {offsets = [0, 96], sizes = [8, 32], strides = [1, 1]} : vector<8x128xf32> to vector<8x32xf32>
    %113 = math.tanh %112 : vector<8x32xf32>
    %114 = vector.extract_strided_slice %111 {offsets = [0, 0], sizes = [8, 32], strides = [1, 1]} : vector<8x96xf32> to vector<8x32xf32>
    %115 = vector.extract_strided_slice %111 {offsets = [0, 32], sizes = [8, 32], strides = [1, 1]} : vector<8x96xf32> to vector<8x32xf32>
    %116 = vector.extract_strided_slice %111 {offsets = [0, 64], sizes = [8, 32], strides = [1, 1]} : vector<8x96xf32> to vector<8x32xf32>
    %117 = arith.mulf %115, %67 : vector<8x32xf32>
    %118 = arith.mulf %114, %113 : vector<8x32xf32>
    %119 = arith.addf %117, %118 : vector<8x32xf32>
    %120 = math.tanh %119 : vector<8x32xf32>
    %121 = arith.mulf %116, %120 : vector<8x32xf32>
    %122 = vector.shape_cast %8 : vector<8x1xi1> to vector<8x1xi1>
    %123 = vector.broadcast %122 : vector<8x1xi1> to vector<8x32xi1>
    %124 = arith.select %123, %121, %64 : vector<8x32xi1>, vector<8x32xf32>
    %125 = vector.shape_cast %8 : vector<8x1xi1> to vector<8x1xi1>
    %126 = vector.broadcast %125 : vector<8x1xi1> to vector<8x32xi1>
    %127 = arith.select %126, %119, %67 : vector<8x32xi1>, vector<8x32xf32>
    %cst_46 = arith.constant 0.000000e+00 : f32
    %128 = vector.shape_cast %8 : vector<8x1xi1> to vector<8x1xi1>
    %129 = vector.broadcast %128 : vector<8x1xi1> to vector<8x32xi1>
    %130 = vector.broadcast %cst_46 : f32 to vector<8x32xf32>
    %131 = arith.select %129, %121, %130 : vector<8x32xi1>, vector<8x32xf32>
    %132 = vector.extract_strided_slice %105 {offsets = [0, 0], sizes = [8, 96], strides = [1, 1]} : vector<8x128xf32> to vector<8x96xf32>
    %133 = arith.negf %132 : vector<8x96xf32>
    %134 = math.exp %133 : vector<8x96xf32>
    %cst_47 = arith.constant 1.000000e+00 : f32
    %135 = vector.broadcast %cst_47 : f32 to vector<8x96xf32>
    %136 = arith.addf %135, %134 : vector<8x96xf32>
    %137 = arith.divf %135, %136 : vector<8x96xf32>
    %138 = vector.extract_strided_slice %105 {offsets = [0, 96], sizes = [8, 32], strides = [1, 1]} : vector<8x128xf32> to vector<8x32xf32>
    %139 = math.tanh %138 : vector<8x32xf32>
    %140 = vector.extract_strided_slice %137 {offsets = [0, 0], sizes = [8, 32], strides = [1, 1]} : vector<8x96xf32> to vector<8x32xf32>
    %141 = vector.extract_strided_slice %137 {offsets = [0, 32], sizes = [8, 32], strides = [1, 1]} : vector<8x96xf32> to vector<8x32xf32>
    %142 = vector.extract_strided_slice %137 {offsets = [0, 64], sizes = [8, 32], strides = [1, 1]} : vector<8x96xf32> to vector<8x32xf32>
    %143 = arith.mulf %141, %93 : vector<8x32xf32>
    %144 = arith.mulf %140, %139 : vector<8x32xf32>
    %145 = arith.addf %143, %144 : vector<8x32xf32>
    %146 = math.tanh %145 : vector<8x32xf32>
    %147 = arith.mulf %142, %146 : vector<8x32xf32>
    %148 = vector.shape_cast %18 : vector<8x1xi1> to vector<8x1xi1>
    %149 = vector.broadcast %148 : vector<8x1xi1> to vector<8x32xi1>
    %150 = arith.select %149, %147, %90 : vector<8x32xi1>, vector<8x32xf32>
    %151 = vector.shape_cast %18 : vector<8x1xi1> to vector<8x1xi1>
    %152 = vector.broadcast %151 : vector<8x1xi1> to vector<8x32xi1>
    %153 = arith.select %152, %145, %93 : vector<8x32xi1>, vector<8x32xf32>
    %cst_48 = arith.constant 0.000000e+00 : f32
    %154 = vector.shape_cast %18 : vector<8x1xi1> to vector<8x1xi1>
    %155 = vector.broadcast %154 : vector<8x1xi1> to vector<8x32xi1>
    %156 = vector.broadcast %cst_48 : f32 to vector<8x32xf32>
    %157 = arith.select %155, %147, %156 : vector<8x32xi1>, vector<8x32xf32>
    %c8_49 = arith.constant 8 : index
    %c0_50 = arith.constant 0 : index
    %158 = vector.load %arg20[%c8_49, %c0_50] : memref<64x64xf32, #tpu.memory_space<vmem>>, vector<8x32xf32>
    tpu.vector_store %arg20[%c8_49, %c0_50], %131 {strides = array<i32>} : memref<64x64xf32, #tpu.memory_space<vmem>>, vector<8x32xf32>,
    %c48_51 = arith.constant 48 : index
    %c32_52 = arith.constant 32 : index
    %159 = vector.load %arg20[%c48_51, %c32_52] : memref<64x64xf32, #tpu.memory_space<vmem>>, vector<8x32xf32>
    tpu.vector_store %arg20[%c48_51, %c32_52], %157 {strides = array<i32>} : memref<64x64xf32, #tpu.memory_space<vmem>>, vector<8x32xf32>,
    %c16 = arith.constant 16 : index
    %c0_53 = arith.constant 0 : index
    %160 = vector.load %arg18[%c16, %c0_53] : memref<64x128xf32, #tpu.memory_space<vmem>>, vector<8x128xf32>
    %cst_54 = arith.constant dense<0.000000e+00> : vector<8x128xf32>
    %161 = tpu.matmul %124, %1, %cst_54 {dimension_numbers = #tpu.dot_dimension_numbers<[1], [0], [0], [1], [0, 0, 1, 1], [], []>} : vector<8x32xf32>, vector<32x128xf32>, vector<8x128xf32> -> vector<8x128xf32>
    %162 = arith.addf %160, %161 : vector<8x128xf32>
    %c40 = arith.constant 40 : index
    %c0_55 = arith.constant 0 : index
    %163 = vector.load %arg19[%c40, %c0_55] : memref<64x128xf32, #tpu.memory_space<vmem>>, vector<8x128xf32>
    %cst_56 = arith.constant dense<0.000000e+00> : vector<8x128xf32>
    %164 = tpu.matmul %150, %2, %cst_56 {dimension_numbers = #tpu.dot_dimension_numbers<[1], [0], [0], [1], [0, 0, 1, 1], [], []>} : vector<8x32xf32>, vector<32x128xf32>, vector<8x128xf32> -> vector<8x128xf32>
    %165 = arith.addf %163, %164 : vector<8x128xf32>
    %166 = vector.extract_strided_slice %162 {offsets = [0, 0], sizes = [8, 96], strides = [1, 1]} : vector<8x128xf32> to vector<8x96xf32>
    %167 = arith.negf %166 : vector<8x96xf32>
    %168 = math.exp %167 : vector<8x96xf32>
    %cst_57 = arith.constant 1.000000e+00 : f32
    %169 = vector.broadcast %cst_57 : f32 to vector<8x96xf32>
    %170 = arith.addf %169, %168 : vector<8x96xf32>
    %171 = arith.divf %169, %170 : vector<8x96xf32>
    %172 = vector.extract_strided_slice %162 {offsets = [0, 96], sizes = [8, 32], strides = [1, 1]} : vector<8x128xf32> to vector<8x32xf32>
    %173 = math.tanh %172 : vector<8x32xf32>
    %174 = vector.extract_strided_slice %171 {offsets = [0, 0], sizes = [8, 32], strides = [1, 1]} : vector<8x96xf32> to vector<8x32xf32>
    %175 = vector.extract_strided_slice %171 {offsets = [0, 32], sizes = [8, 32], strides = [1, 1]} : vector<8x96xf32> to vector<8x32xf32>
    %176 = vector.extract_strided_slice %171 {offsets = [0, 64], sizes = [8, 32], strides = [1, 1]} : vector<8x96xf32> to vector<8x32xf32>
    %177 = arith.mulf %175, %127 : vector<8x32xf32>
    %178 = arith.mulf %174, %173 : vector<8x32xf32>
    %179 = arith.addf %177, %178 : vector<8x32xf32>
    %180 = math.tanh %179 : vector<8x32xf32>
    %181 = arith.mulf %176, %180 : vector<8x32xf32>
    %182 = vector.shape_cast %10 : vector<8x1xi1> to vector<8x1xi1>
    %183 = vector.broadcast %182 : vector<8x1xi1> to vector<8x32xi1>
    %184 = arith.select %183, %181, %124 : vector<8x32xi1>, vector<8x32xf32>
    %185 = vector.shape_cast %10 : vector<8x1xi1> to vector<8x1xi1>
    %186 = vector.broadcast %185 : vector<8x1xi1> to vector<8x32xi1>
    %187 = arith.select %186, %179, %127 : vector<8x32xi1>, vector<8x32xf32>
    %cst_58 = arith.constant 0.000000e+00 : f32
    %188 = vector.shape_cast %10 : vector<8x1xi1> to vector<8x1xi1>
    %189 = vector.broadcast %188 : vector<8x1xi1> to vector<8x32xi1>
    %190 = vector.broadcast %cst_58 : f32 to vector<8x32xf32>
    %191 = arith.select %189, %181, %190 : vector<8x32xi1>, vector<8x32xf32>
    %192 = vector.extract_strided_slice %165 {offsets = [0, 0], sizes = [8, 96], strides = [1, 1]} : vector<8x128xf32> to vector<8x96xf32>
    %193 = arith.negf %192 : vector<8x96xf32>
    %194 = math.exp %193 : vector<8x96xf32>
    %cst_59 = arith.constant 1.000000e+00 : f32
    %195 = vector.broadcast %cst_59 : f32 to vector<8x96xf32>
    %196 = arith.addf %195, %194 : vector<8x96xf32>
    %197 = arith.divf %195, %196 : vector<8x96xf32>
    %198 = vector.extract_strided_slice %165 {offsets = [0, 96], sizes = [8, 32], strides = [1, 1]} : vector<8x128xf32> to vector<8x32xf32>
    %199 = math.tanh %198 : vector<8x32xf32>
    %200 = vector.extract_strided_slice %197 {offsets = [0, 0], sizes = [8, 32], strides = [1, 1]} : vector<8x96xf32> to vector<8x32xf32>
    %201 = vector.extract_strided_slice %197 {offsets = [0, 32], sizes = [8, 32], strides = [1, 1]} : vector<8x96xf32> to vector<8x32xf32>
    %202 = vector.extract_strided_slice %197 {offsets = [0, 64], sizes = [8, 32], strides = [1, 1]} : vector<8x96xf32> to vector<8x32xf32>
    %203 = arith.mulf %201, %153 : vector<8x32xf32>
    %204 = arith.mulf %200, %199 : vector<8x32xf32>
    %205 = arith.addf %203, %204 : vector<8x32xf32>
    %206 = math.tanh %205 : vector<8x32xf32>
    %207 = arith.mulf %202, %206 : vector<8x32xf32>
    %208 = vector.shape_cast %16 : vector<8x1xi1> to vector<8x1xi1>
    %209 = vector.broadcast %208 : vector<8x1xi1> to vector<8x32xi1>
    %210 = arith.select %209, %207, %150 : vector<8x32xi1>, vector<8x32xf32>
    %211 = vector.shape_cast %16 : vector<8x1xi1> to vector<8x1xi1>
    %212 = vector.broadcast %211 : vector<8x1xi1> to vector<8x32xi1>
    %213 = arith.select %212, %205, %153 : vector<8x32xi1>, vector<8x32xf32>
    %cst_60 = arith.constant 0.000000e+00 : f32
    %214 = vector.shape_cast %16 : vector<8x1xi1> to vector<8x1xi1>
    %215 = vector.broadcast %214 : vector<8x1xi1> to vector<8x32xi1>
    %216 = vector.broadcast %cst_60 : f32 to vector<8x32xf32>
    %217 = arith.select %215, %207, %216 : vector<8x32xi1>, vector<8x32xf32>
    %c16_61 = arith.constant 16 : index
    %c0_62 = arith.constant 0 : index
    %218 = vector.load %arg20[%c16_61, %c0_62] : memref<64x64xf32, #tpu.memory_space<vmem>>, vector<8x32xf32>
    tpu.vector_store %arg20[%c16_61, %c0_62], %191 {strides = array<i32>} : memref<64x64xf32, #tpu.memory_space<vmem>>, vector<8x32xf32>,
    %c40_63 = arith.constant 40 : index
    %c32_64 = arith.constant 32 : index
    %219 = vector.load %arg20[%c40_63, %c32_64] : memref<64x64xf32, #tpu.memory_space<vmem>>, vector<8x32xf32>
    tpu.vector_store %arg20[%c40_63, %c32_64], %217 {strides = array<i32>} : memref<64x64xf32, #tpu.memory_space<vmem>>, vector<8x32xf32>,
    %c24 = arith.constant 24 : index
    %c0_65 = arith.constant 0 : index
    %220 = vector.load %arg18[%c24, %c0_65] : memref<64x128xf32, #tpu.memory_space<vmem>>, vector<8x128xf32>
    %cst_66 = arith.constant dense<0.000000e+00> : vector<8x128xf32>
    %221 = tpu.matmul %184, %1, %cst_66 {dimension_numbers = #tpu.dot_dimension_numbers<[1], [0], [0], [1], [0, 0, 1, 1], [], []>} : vector<8x32xf32>, vector<32x128xf32>, vector<8x128xf32> -> vector<8x128xf32>
    %222 = arith.addf %220, %221 : vector<8x128xf32>
    %c32_67 = arith.constant 32 : index
    %c0_68 = arith.constant 0 : index
    %223 = vector.load %arg19[%c32_67, %c0_68] : memref<64x128xf32, #tpu.memory_space<vmem>>, vector<8x128xf32>
    %cst_69 = arith.constant dense<0.000000e+00> : vector<8x128xf32>
    %224 = tpu.matmul %210, %2, %cst_69 {dimension_numbers = #tpu.dot_dimension_numbers<[1], [0], [0], [1], [0, 0, 1, 1], [], []>} : vector<8x32xf32>, vector<32x128xf32>, vector<8x128xf32> -> vector<8x128xf32>
    %225 = arith.addf %223, %224 : vector<8x128xf32>
    %226 = vector.extract_strided_slice %222 {offsets = [0, 0], sizes = [8, 96], strides = [1, 1]} : vector<8x128xf32> to vector<8x96xf32>
    %227 = arith.negf %226 : vector<8x96xf32>
    %228 = math.exp %227 : vector<8x96xf32>
    %cst_70 = arith.constant 1.000000e+00 : f32
    %229 = vector.broadcast %cst_70 : f32 to vector<8x96xf32>
    %230 = arith.addf %229, %228 : vector<8x96xf32>
    %231 = arith.divf %229, %230 : vector<8x96xf32>
    %232 = vector.extract_strided_slice %222 {offsets = [0, 96], sizes = [8, 32], strides = [1, 1]} : vector<8x128xf32> to vector<8x32xf32>
    %233 = math.tanh %232 : vector<8x32xf32>
    %234 = vector.extract_strided_slice %231 {offsets = [0, 0], sizes = [8, 32], strides = [1, 1]} : vector<8x96xf32> to vector<8x32xf32>
    %235 = vector.extract_strided_slice %231 {offsets = [0, 32], sizes = [8, 32], strides = [1, 1]} : vector<8x96xf32> to vector<8x32xf32>
    %236 = vector.extract_strided_slice %231 {offsets = [0, 64], sizes = [8, 32], strides = [1, 1]} : vector<8x96xf32> to vector<8x32xf32>
    %237 = arith.mulf %235, %187 : vector<8x32xf32>
    %238 = arith.mulf %234, %233 : vector<8x32xf32>
    %239 = arith.addf %237, %238 : vector<8x32xf32>
    %240 = math.tanh %239 : vector<8x32xf32>
    %241 = arith.mulf %236, %240 : vector<8x32xf32>
    %242 = vector.shape_cast %12 : vector<8x1xi1> to vector<8x1xi1>
    %243 = vector.broadcast %242 : vector<8x1xi1> to vector<8x32xi1>
    %244 = arith.select %243, %241, %184 : vector<8x32xi1>, vector<8x32xf32>
    %245 = vector.shape_cast %12 : vector<8x1xi1> to vector<8x1xi1>
    %246 = vector.broadcast %245 : vector<8x1xi1> to vector<8x32xi1>
    %247 = arith.select %246, %239, %187 : vector<8x32xi1>, vector<8x32xf32>
    %cst_71 = arith.constant 0.000000e+00 : f32
    %248 = vector.shape_cast %12 : vector<8x1xi1> to vector<8x1xi1>
    %249 = vector.broadcast %248 : vector<8x1xi1> to vector<8x32xi1>
    %250 = vector.broadcast %cst_71 : f32 to vector<8x32xf32>
    %251 = arith.select %249, %241, %250 : vector<8x32xi1>, vector<8x32xf32>
    %252 = vector.extract_strided_slice %225 {offsets = [0, 0], sizes = [8, 96], strides = [1, 1]} : vector<8x128xf32> to vector<8x96xf32>
    %253 = arith.negf %252 : vector<8x96xf32>
    %254 = math.exp %253 : vector<8x96xf32>
    %cst_72 = arith.constant 1.000000e+00 : f32
    %255 = vector.broadcast %cst_72 : f32 to vector<8x96xf32>
    %256 = arith.addf %255, %254 : vector<8x96xf32>
    %257 = arith.divf %255, %256 : vector<8x96xf32>
    %258 = vector.extract_strided_slice %225 {offsets = [0, 96], sizes = [8, 32], strides = [1, 1]} : vector<8x128xf32> to vector<8x32xf32>
    %259 = math.tanh %258 : vector<8x32xf32>
    %260 = vector.extract_strided_slice %257 {offsets = [0, 0], sizes = [8, 32], strides = [1, 1]} : vector<8x96xf32> to vector<8x32xf32>
    %261 = vector.extract_strided_slice %257 {offsets = [0, 32], sizes = [8, 32], strides = [1, 1]} : vector<8x96xf32> to vector<8x32xf32>
    %262 = vector.extract_strided_slice %257 {offsets = [0, 64], sizes = [8, 32], strides = [1, 1]} : vector<8x96xf32> to vector<8x32xf32>
    %263 = arith.mulf %261, %213 : vector<8x32xf32>
    %264 = arith.mulf %260, %259 : vector<8x32xf32>
    %265 = arith.addf %263, %264 : vector<8x32xf32>
    %266 = math.tanh %265 : vector<8x32xf32>
    %267 = arith.mulf %262, %266 : vector<8x32xf32>
    %268 = vector.shape_cast %14 : vector<8x1xi1> to vector<8x1xi1>
    %269 = vector.broadcast %268 : vector<8x1xi1> to vector<8x32xi1>
    %270 = arith.select %269, %267, %210 : vector<8x32xi1>, vector<8x32xf32>
    %271 = vector.shape_cast %14 : vector<8x1xi1> to vector<8x1xi1>
    %272 = vector.broadcast %271 : vector<8x1xi1> to vector<8x32xi1>
    %273 = arith.select %272, %265, %213 : vector<8x32xi1>, vector<8x32xf32>
    %cst_73 = arith.constant 0.000000e+00 : f32
    %274 = vector.shape_cast %14 : vector<8x1xi1> to vector<8x1xi1>
    %275 = vector.broadcast %274 : vector<8x1xi1> to vector<8x32xi1>
    %276 = vector.broadcast %cst_73 : f32 to vector<8x32xf32>
    %277 = arith.select %275, %267, %276 : vector<8x32xi1>, vector<8x32xf32>
    %c24_74 = arith.constant 24 : index
    %c0_75 = arith.constant 0 : index
    %278 = vector.load %arg20[%c24_74, %c0_75] : memref<64x64xf32, #tpu.memory_space<vmem>>, vector<8x32xf32>
    tpu.vector_store %arg20[%c24_74, %c0_75], %251 {strides = array<i32>} : memref<64x64xf32, #tpu.memory_space<vmem>>, vector<8x32xf32>,
    %c32_76 = arith.constant 32 : index
    %c32_77 = arith.constant 32 : index
    %279 = vector.load %arg20[%c32_76, %c32_77] : memref<64x64xf32, #tpu.memory_space<vmem>>, vector<8x32xf32>
    tpu.vector_store %arg20[%c32_76, %c32_77], %277 {strides = array<i32>} : memref<64x64xf32, #tpu.memory_space<vmem>>, vector<8x32xf32>,
    %c32_78 = arith.constant 32 : index
    %c0_79 = arith.constant 0 : index
    %280 = vector.load %arg18[%c32_78, %c0_79] : memref<64x128xf32, #tpu.memory_space<vmem>>, vector<8x128xf32>
    %cst_80 = arith.constant dense<0.000000e+00> : vector<8x128xf32>
    %281 = tpu.matmul %244, %1, %cst_80 {dimension_numbers = #tpu.dot_dimension_numbers<[1], [0], [0], [1], [0, 0, 1, 1], [], []>} : vector<8x32xf32>, vector<32x128xf32>, vector<8x128xf32> -> vector<8x128xf32>
    %282 = arith.addf %280, %281 : vector<8x128xf32>
    %c24_81 = arith.constant 24 : index
    %c0_82 = arith.constant 0 : index
    %283 = vector.load %arg19[%c24_81, %c0_82] : memref<64x128xf32, #tpu.memory_space<vmem>>, vector<8x128xf32>
    %cst_83 = arith.constant dense<0.000000e+00> : vector<8x128xf32>
    %284 = tpu.matmul %270, %2, %cst_83 {dimension_numbers = #tpu.dot_dimension_numbers<[1], [0], [0], [1], [0, 0, 1, 1], [], []>} : vector<8x32xf32>, vector<32x128xf32>, vector<8x128xf32> -> vector<8x128xf32>
    %285 = arith.addf %283, %284 : vector<8x128xf32>
    %286 = vector.extract_strided_slice %282 {offsets = [0, 0], sizes = [8, 96], strides = [1, 1]} : vector<8x128xf32> to vector<8x96xf32>
    %287 = arith.negf %286 : vector<8x96xf32>
    %288 = math.exp %287 : vector<8x96xf32>
    %cst_84 = arith.constant 1.000000e+00 : f32
    %289 = vector.broadcast %cst_84 : f32 to vector<8x96xf32>
    %290 = arith.addf %289, %288 : vector<8x96xf32>
    %291 = arith.divf %289, %290 : vector<8x96xf32>
    %292 = vector.extract_strided_slice %282 {offsets = [0, 96], sizes = [8, 32], strides = [1, 1]} : vector<8x128xf32> to vector<8x32xf32>
    %293 = math.tanh %292 : vector<8x32xf32>
    %294 = vector.extract_strided_slice %291 {offsets = [0, 0], sizes = [8, 32], strides = [1, 1]} : vector<8x96xf32> to vector<8x32xf32>
    %295 = vector.extract_strided_slice %291 {offsets = [0, 32], sizes = [8, 32], strides = [1, 1]} : vector<8x96xf32> to vector<8x32xf32>
    %296 = vector.extract_strided_slice %291 {offsets = [0, 64], sizes = [8, 32], strides = [1, 1]} : vector<8x96xf32> to vector<8x32xf32>
    %297 = arith.mulf %295, %247 : vector<8x32xf32>
    %298 = arith.mulf %294, %293 : vector<8x32xf32>
    %299 = arith.addf %297, %298 : vector<8x32xf32>
    %300 = math.tanh %299 : vector<8x32xf32>
    %301 = arith.mulf %296, %300 : vector<8x32xf32>
    %302 = vector.shape_cast %14 : vector<8x1xi1> to vector<8x1xi1>
    %303 = vector.broadcast %302 : vector<8x1xi1> to vector<8x32xi1>
    %304 = arith.select %303, %301, %244 : vector<8x32xi1>, vector<8x32xf32>
    %305 = vector.shape_cast %14 : vector<8x1xi1> to vector<8x1xi1>
    %306 = vector.broadcast %305 : vector<8x1xi1> to vector<8x32xi1>
    %307 = arith.select %306, %299, %247 : vector<8x32xi1>, vector<8x32xf32>
    %cst_85 = arith.constant 0.000000e+00 : f32
    %308 = vector.shape_cast %14 : vector<8x1xi1> to vector<8x1xi1>
    %309 = vector.broadcast %308 : vector<8x1xi1> to vector<8x32xi1>
    %310 = vector.broadcast %cst_85 : f32 to vector<8x32xf32>
    %311 = arith.select %309, %301, %310 : vector<8x32xi1>, vector<8x32xf32>
    %312 = vector.extract_strided_slice %285 {offsets = [0, 0], sizes = [8, 96], strides = [1, 1]} : vector<8x128xf32> to vector<8x96xf32>
    %313 = arith.negf %312 : vector<8x96xf32>
    %314 = math.exp %313 : vector<8x96xf32>
    %cst_86 = arith.constant 1.000000e+00 : f32
    %315 = vector.broadcast %cst_86 : f32 to vector<8x96xf32>
    %316 = arith.addf %315, %314 : vector<8x96xf32>
    %317 = arith.divf %315, %316 : vector<8x96xf32>
    %318 = vector.extract_strided_slice %285 {offsets = [0, 96], sizes = [8, 32], strides = [1, 1]} : vector<8x128xf32> to vector<8x32xf32>
    %319 = math.tanh %318 : vector<8x32xf32>
    %320 = vector.extract_strided_slice %317 {offsets = [0, 0], sizes = [8, 32], strides = [1, 1]} : vector<8x96xf32> to vector<8x32xf32>
    %321 = vector.extract_strided_slice %317 {offsets = [0, 32], sizes = [8, 32], strides = [1, 1]} : vector<8x96xf32> to vector<8x32xf32>
    %322 = vector.extract_strided_slice %317 {offsets = [0, 64], sizes = [8, 32], strides = [1, 1]} : vector<8x96xf32> to vector<8x32xf32>
    %323 = arith.mulf %321, %273 : vector<8x32xf32>
    %324 = arith.mulf %320, %319 : vector<8x32xf32>
    %325 = arith.addf %323, %324 : vector<8x32xf32>
    %326 = math.tanh %325 : vector<8x32xf32>
    %327 = arith.mulf %322, %326 : vector<8x32xf32>
    %328 = vector.shape_cast %12 : vector<8x1xi1> to vector<8x1xi1>
    %329 = vector.broadcast %328 : vector<8x1xi1> to vector<8x32xi1>
    %330 = arith.select %329, %327, %270 : vector<8x32xi1>, vector<8x32xf32>
    %331 = vector.shape_cast %12 : vector<8x1xi1> to vector<8x1xi1>
    %332 = vector.broadcast %331 : vector<8x1xi1> to vector<8x32xi1>
    %333 = arith.select %332, %325, %273 : vector<8x32xi1>, vector<8x32xf32>
    %cst_87 = arith.constant 0.000000e+00 : f32
    %334 = vector.shape_cast %12 : vector<8x1xi1> to vector<8x1xi1>
    %335 = vector.broadcast %334 : vector<8x1xi1> to vector<8x32xi1>
    %336 = vector.broadcast %cst_87 : f32 to vector<8x32xf32>
    %337 = arith.select %335, %327, %336 : vector<8x32xi1>, vector<8x32xf32>
    %c32_88 = arith.constant 32 : index
    %c0_89 = arith.constant 0 : index
    %338 = vector.load %arg20[%c32_88, %c0_89] : memref<64x64xf32, #tpu.memory_space<vmem>>, vector<8x32xf32>
    tpu.vector_store %arg20[%c32_88, %c0_89], %311 {strides = array<i32>} : memref<64x64xf32, #tpu.memory_space<vmem>>, vector<8x32xf32>,
    %c24_90 = arith.constant 24 : index
    %c32_91 = arith.constant 32 : index
    %339 = vector.load %arg20[%c24_90, %c32_91] : memref<64x64xf32, #tpu.memory_space<vmem>>, vector<8x32xf32>
    tpu.vector_store %arg20[%c24_90, %c32_91], %337 {strides = array<i32>} : memref<64x64xf32, #tpu.memory_space<vmem>>, vector<8x32xf32>,
    %c40_92 = arith.constant 40 : index
    %c0_93 = arith.constant 0 : index
    %340 = vector.load %arg18[%c40_92, %c0_93] : memref<64x128xf32, #tpu.memory_space<vmem>>, vector<8x128xf32>
    %cst_94 = arith.constant dense<0.000000e+00> : vector<8x128xf32>
    %341 = tpu.matmul %304, %1, %cst_94 {dimension_numbers = #tpu.dot_dimension_numbers<[1], [0], [0], [1], [0, 0, 1, 1], [], []>} : vector<8x32xf32>, vector<32x128xf32>, vector<8x128xf32> -> vector<8x128xf32>
    %342 = arith.addf %340, %341 : vector<8x128xf32>
    %c16_95 = arith.constant 16 : index
    %c0_96 = arith.constant 0 : index
    %343 = vector.load %arg19[%c16_95, %c0_96] : memref<64x128xf32, #tpu.memory_space<vmem>>, vector<8x128xf32>
    %cst_97 = arith.constant dense<0.000000e+00> : vector<8x128xf32>
    %344 = tpu.matmul %330, %2, %cst_97 {dimension_numbers = #tpu.dot_dimension_numbers<[1], [0], [0], [1], [0, 0, 1, 1], [], []>} : vector<8x32xf32>, vector<32x128xf32>, vector<8x128xf32> -> vector<8x128xf32>
    %345 = arith.addf %343, %344 : vector<8x128xf32>
    %346 = vector.extract_strided_slice %342 {offsets = [0, 0], sizes = [8, 96], strides = [1, 1]} : vector<8x128xf32> to vector<8x96xf32>
    %347 = arith.negf %346 : vector<8x96xf32>
    %348 = math.exp %347 : vector<8x96xf32>
    %cst_98 = arith.constant 1.000000e+00 : f32
    %349 = vector.broadcast %cst_98 : f32 to vector<8x96xf32>
    %350 = arith.addf %349, %348 : vector<8x96xf32>
    %351 = arith.divf %349, %350 : vector<8x96xf32>
    %352 = vector.extract_strided_slice %342 {offsets = [0, 96], sizes = [8, 32], strides = [1, 1]} : vector<8x128xf32> to vector<8x32xf32>
    %353 = math.tanh %352 : vector<8x32xf32>
    %354 = vector.extract_strided_slice %351 {offsets = [0, 0], sizes = [8, 32], strides = [1, 1]} : vector<8x96xf32> to vector<8x32xf32>
    %355 = vector.extract_strided_slice %351 {offsets = [0, 32], sizes = [8, 32], strides = [1, 1]} : vector<8x96xf32> to vector<8x32xf32>
    %356 = vector.extract_strided_slice %351 {offsets = [0, 64], sizes = [8, 32], strides = [1, 1]} : vector<8x96xf32> to vector<8x32xf32>
    %357 = arith.mulf %355, %307 : vector<8x32xf32>
    %358 = arith.mulf %354, %353 : vector<8x32xf32>
    %359 = arith.addf %357, %358 : vector<8x32xf32>
    %360 = math.tanh %359 : vector<8x32xf32>
    %361 = arith.mulf %356, %360 : vector<8x32xf32>
    %362 = vector.shape_cast %16 : vector<8x1xi1> to vector<8x1xi1>
    %363 = vector.broadcast %362 : vector<8x1xi1> to vector<8x32xi1>
    %364 = arith.select %363, %361, %304 : vector<8x32xi1>, vector<8x32xf32>
    %365 = vector.shape_cast %16 : vector<8x1xi1> to vector<8x1xi1>
    %366 = vector.broadcast %365 : vector<8x1xi1> to vector<8x32xi1>
    %367 = arith.select %366, %359, %307 : vector<8x32xi1>, vector<8x32xf32>
    %cst_99 = arith.constant 0.000000e+00 : f32
    %368 = vector.shape_cast %16 : vector<8x1xi1> to vector<8x1xi1>
    %369 = vector.broadcast %368 : vector<8x1xi1> to vector<8x32xi1>
    %370 = vector.broadcast %cst_99 : f32 to vector<8x32xf32>
    %371 = arith.select %369, %361, %370 : vector<8x32xi1>, vector<8x32xf32>
    %372 = vector.extract_strided_slice %345 {offsets = [0, 0], sizes = [8, 96], strides = [1, 1]} : vector<8x128xf32> to vector<8x96xf32>
    %373 = arith.negf %372 : vector<8x96xf32>
    %374 = math.exp %373 : vector<8x96xf32>
    %cst_100 = arith.constant 1.000000e+00 : f32
    %375 = vector.broadcast %cst_100 : f32 to vector<8x96xf32>
    %376 = arith.addf %375, %374 : vector<8x96xf32>
    %377 = arith.divf %375, %376 : vector<8x96xf32>
    %378 = vector.extract_strided_slice %345 {offsets = [0, 96], sizes = [8, 32], strides = [1, 1]} : vector<8x128xf32> to vector<8x32xf32>
    %379 = math.tanh %378 : vector<8x32xf32>
    %380 = vector.extract_strided_slice %377 {offsets = [0, 0], sizes = [8, 32], strides = [1, 1]} : vector<8x96xf32> to vector<8x32xf32>
    %381 = vector.extract_strided_slice %377 {offsets = [0, 32], sizes = [8, 32], strides = [1, 1]} : vector<8x96xf32> to vector<8x32xf32>
    %382 = vector.extract_strided_slice %377 {offsets = [0, 64], sizes = [8, 32], strides = [1, 1]} : vector<8x96xf32> to vector<8x32xf32>
    %383 = arith.mulf %381, %333 : vector<8x32xf32>
    %384 = arith.mulf %380, %379 : vector<8x32xf32>
    %385 = arith.addf %383, %384 : vector<8x32xf32>
    %386 = math.tanh %385 : vector<8x32xf32>
    %387 = arith.mulf %382, %386 : vector<8x32xf32>
    %388 = vector.shape_cast %10 : vector<8x1xi1> to vector<8x1xi1>
    %389 = vector.broadcast %388 : vector<8x1xi1> to vector<8x32xi1>
    %390 = arith.select %389, %387, %330 : vector<8x32xi1>, vector<8x32xf32>
    %391 = vector.shape_cast %10 : vector<8x1xi1> to vector<8x1xi1>
    %392 = vector.broadcast %391 : vector<8x1xi1> to vector<8x32xi1>
    %393 = arith.select %392, %385, %333 : vector<8x32xi1>, vector<8x32xf32>
    %cst_101 = arith.constant 0.000000e+00 : f32
    %394 = vector.shape_cast %10 : vector<8x1xi1> to vector<8x1xi1>
    %395 = vector.broadcast %394 : vector<8x1xi1> to vector<8x32xi1>
    %396 = vector.broadcast %cst_101 : f32 to vector<8x32xf32>
    %397 = arith.select %395, %387, %396 : vector<8x32xi1>, vector<8x32xf32>
    %c40_102 = arith.constant 40 : index
    %c0_103 = arith.constant 0 : index
    %398 = vector.load %arg20[%c40_102, %c0_103] : memref<64x64xf32, #tpu.memory_space<vmem>>, vector<8x32xf32>
    tpu.vector_store %arg20[%c40_102, %c0_103], %371 {strides = array<i32>} : memref<64x64xf32, #tpu.memory_space<vmem>>, vector<8x32xf32>,
    %c16_104 = arith.constant 16 : index
    %c32_105 = arith.constant 32 : index
    %399 = vector.load %arg20[%c16_104, %c32_105] : memref<64x64xf32, #tpu.memory_space<vmem>>, vector<8x32xf32>
    tpu.vector_store %arg20[%c16_104, %c32_105], %397 {strides = array<i32>} : memref<64x64xf32, #tpu.memory_space<vmem>>, vector<8x32xf32>,
    %c48_106 = arith.constant 48 : index
    %c0_107 = arith.constant 0 : index
    %400 = vector.load %arg18[%c48_106, %c0_107] : memref<64x128xf32, #tpu.memory_space<vmem>>, vector<8x128xf32>
    %cst_108 = arith.constant dense<0.000000e+00> : vector<8x128xf32>
    %401 = tpu.matmul %364, %1, %cst_108 {dimension_numbers = #tpu.dot_dimension_numbers<[1], [0], [0], [1], [0, 0, 1, 1], [], []>} : vector<8x32xf32>, vector<32x128xf32>, vector<8x128xf32> -> vector<8x128xf32>
    %402 = arith.addf %400, %401 : vector<8x128xf32>
    %c8_109 = arith.constant 8 : index
    %c0_110 = arith.constant 0 : index
    %403 = vector.load %arg19[%c8_109, %c0_110] : memref<64x128xf32, #tpu.memory_space<vmem>>, vector<8x128xf32>
    %cst_111 = arith.constant dense<0.000000e+00> : vector<8x128xf32>
    %404 = tpu.matmul %390, %2, %cst_111 {dimension_numbers = #tpu.dot_dimension_numbers<[1], [0], [0], [1], [0, 0, 1, 1], [], []>} : vector<8x32xf32>, vector<32x128xf32>, vector<8x128xf32> -> vector<8x128xf32>
    %405 = arith.addf %403, %404 : vector<8x128xf32>
    %406 = vector.extract_strided_slice %402 {offsets = [0, 0], sizes = [8, 96], strides = [1, 1]} : vector<8x128xf32> to vector<8x96xf32>
    %407 = arith.negf %406 : vector<8x96xf32>
    %408 = math.exp %407 : vector<8x96xf32>
    %cst_112 = arith.constant 1.000000e+00 : f32
    %409 = vector.broadcast %cst_112 : f32 to vector<8x96xf32>
    %410 = arith.addf %409, %408 : vector<8x96xf32>
    %411 = arith.divf %409, %410 : vector<8x96xf32>
    %412 = vector.extract_strided_slice %402 {offsets = [0, 96], sizes = [8, 32], strides = [1, 1]} : vector<8x128xf32> to vector<8x32xf32>
    %413 = math.tanh %412 : vector<8x32xf32>
    %414 = vector.extract_strided_slice %411 {offsets = [0, 0], sizes = [8, 32], strides = [1, 1]} : vector<8x96xf32> to vector<8x32xf32>
    %415 = vector.extract_strided_slice %411 {offsets = [0, 32], sizes = [8, 32], strides = [1, 1]} : vector<8x96xf32> to vector<8x32xf32>
    %416 = vector.extract_strided_slice %411 {offsets = [0, 64], sizes = [8, 32], strides = [1, 1]} : vector<8x96xf32> to vector<8x32xf32>
    %417 = arith.mulf %415, %367 : vector<8x32xf32>
    %418 = arith.mulf %414, %413 : vector<8x32xf32>
    %419 = arith.addf %417, %418 : vector<8x32xf32>
    %420 = math.tanh %419 : vector<8x32xf32>
    %421 = arith.mulf %416, %420 : vector<8x32xf32>
    %422 = vector.shape_cast %18 : vector<8x1xi1> to vector<8x1xi1>
    %423 = vector.broadcast %422 : vector<8x1xi1> to vector<8x32xi1>
    %424 = arith.select %423, %421, %364 : vector<8x32xi1>, vector<8x32xf32>
    %425 = vector.shape_cast %18 : vector<8x1xi1> to vector<8x1xi1>
    %426 = vector.broadcast %425 : vector<8x1xi1> to vector<8x32xi1>
    %427 = arith.select %426, %419, %367 : vector<8x32xi1>, vector<8x32xf32>
    %cst_113 = arith.constant 0.000000e+00 : f32
    %428 = vector.shape_cast %18 : vector<8x1xi1> to vector<8x1xi1>
    %429 = vector.broadcast %428 : vector<8x1xi1> to vector<8x32xi1>
    %430 = vector.broadcast %cst_113 : f32 to vector<8x32xf32>
    %431 = arith.select %429, %421, %430 : vector<8x32xi1>, vector<8x32xf32>
    %432 = vector.extract_strided_slice %405 {offsets = [0, 0], sizes = [8, 96], strides = [1, 1]} : vector<8x128xf32> to vector<8x96xf32>
    %433 = arith.negf %432 : vector<8x96xf32>
    %434 = math.exp %433 : vector<8x96xf32>
    %cst_114 = arith.constant 1.000000e+00 : f32
    %435 = vector.broadcast %cst_114 : f32 to vector<8x96xf32>
    %436 = arith.addf %435, %434 : vector<8x96xf32>
    %437 = arith.divf %435, %436 : vector<8x96xf32>
    %438 = vector.extract_strided_slice %405 {offsets = [0, 96], sizes = [8, 32], strides = [1, 1]} : vector<8x128xf32> to vector<8x32xf32>
    %439 = math.tanh %438 : vector<8x32xf32>
    %440 = vector.extract_strided_slice %437 {offsets = [0, 0], sizes = [8, 32], strides = [1, 1]} : vector<8x96xf32> to vector<8x32xf32>
    %441 = vector.extract_strided_slice %437 {offsets = [0, 32], sizes = [8, 32], strides = [1, 1]} : vector<8x96xf32> to vector<8x32xf32>
    %442 = vector.extract_strided_slice %437 {offsets = [0, 64], sizes = [8, 32], strides = [1, 1]} : vector<8x96xf32> to vector<8x32xf32>
    %443 = arith.mulf %441, %393 : vector<8x32xf32>
    %444 = arith.mulf %440, %439 : vector<8x32xf32>
    %445 = arith.addf %443, %444 : vector<8x32xf32>
    %446 = math.tanh %445 : vector<8x32xf32>
    %447 = arith.mulf %442, %446 : vector<8x32xf32>
    %448 = vector.shape_cast %8 : vector<8x1xi1> to vector<8x1xi1>
    %449 = vector.broadcast %448 : vector<8x1xi1> to vector<8x32xi1>
    %450 = arith.select %449, %447, %390 : vector<8x32xi1>, vector<8x32xf32>
    %451 = vector.shape_cast %8 : vector<8x1xi1> to vector<8x1xi1>
    %452 = vector.broadcast %451 : vector<8x1xi1> to vector<8x32xi1>
    %453 = arith.select %452, %445, %393 : vector<8x32xi1>, vector<8x32xf32>
    %cst_115 = arith.constant 0.000000e+00 : f32
    %454 = vector.shape_cast %8 : vector<8x1xi1> to vector<8x1xi1>
    %455 = vector.broadcast %454 : vector<8x1xi1> to vector<8x32xi1>
    %456 = vector.broadcast %cst_115 : f32 to vector<8x32xf32>
    %457 = arith.select %455, %447, %456 : vector<8x32xi1>, vector<8x32xf32>
    %c48_116 = arith.constant 48 : index
    %c0_117 = arith.constant 0 : index
    %458 = vector.load %arg20[%c48_116, %c0_117] : memref<64x64xf32, #tpu.memory_space<vmem>>, vector<8x32xf32>
    tpu.vector_store %arg20[%c48_116, %c0_117], %431 {strides = array<i32>} : memref<64x64xf32, #tpu.memory_space<vmem>>, vector<8x32xf32>,
    %c8_118 = arith.constant 8 : index
    %c32_119 = arith.constant 32 : index
    %459 = vector.load %arg20[%c8_118, %c32_119] : memref<64x64xf32, #tpu.memory_space<vmem>>, vector<8x32xf32>
    tpu.vector_store %arg20[%c8_118, %c32_119], %457 {strides = array<i32>} : memref<64x64xf32, #tpu.memory_space<vmem>>, vector<8x32xf32>,
    %c56_120 = arith.constant 56 : index
    %c0_121 = arith.constant 0 : index
    %460 = vector.load %arg18[%c56_120, %c0_121] : memref<64x128xf32, #tpu.memory_space<vmem>>, vector<8x128xf32>
    %cst_122 = arith.constant dense<0.000000e+00> : vector<8x128xf32>
    %461 = tpu.matmul %424, %1, %cst_122 {dimension_numbers = #tpu.dot_dimension_numbers<[1], [0], [0], [1], [0, 0, 1, 1], [], []>} : vector<8x32xf32>, vector<32x128xf32>, vector<8x128xf32> -> vector<8x128xf32>
    %462 = arith.addf %460, %461 : vector<8x128xf32>
    %c0_123 = arith.constant 0 : index
    %c0_124 = arith.constant 0 : index
    %463 = vector.load %arg19[%c0_123, %c0_124] : memref<64x128xf32, #tpu.memory_space<vmem>>, vector<8x128xf32>
    %cst_125 = arith.constant dense<0.000000e+00> : vector<8x128xf32>
    %464 = tpu.matmul %450, %2, %cst_125 {dimension_numbers = #tpu.dot_dimension_numbers<[1], [0], [0], [1], [0, 0, 1, 1], [], []>} : vector<8x32xf32>, vector<32x128xf32>, vector<8x128xf32> -> vector<8x128xf32>
    %465 = arith.addf %463, %464 : vector<8x128xf32>
    %466 = vector.extract_strided_slice %462 {offsets = [0, 0], sizes = [8, 96], strides = [1, 1]} : vector<8x128xf32> to vector<8x96xf32>
    %467 = arith.negf %466 : vector<8x96xf32>
    %468 = math.exp %467 : vector<8x96xf32>
    %cst_126 = arith.constant 1.000000e+00 : f32
    %469 = vector.broadcast %cst_126 : f32 to vector<8x96xf32>
    %470 = arith.addf %469, %468 : vector<8x96xf32>
    %471 = arith.divf %469, %470 : vector<8x96xf32>
    %472 = vector.extract_strided_slice %462 {offsets = [0, 96], sizes = [8, 32], strides = [1, 1]} : vector<8x128xf32> to vector<8x32xf32>
    %473 = math.tanh %472 : vector<8x32xf32>
    %474 = vector.extract_strided_slice %471 {offsets = [0, 0], sizes = [8, 32], strides = [1, 1]} : vector<8x96xf32> to vector<8x32xf32>
    %475 = vector.extract_strided_slice %471 {offsets = [0, 32], sizes = [8, 32], strides = [1, 1]} : vector<8x96xf32> to vector<8x32xf32>
    %476 = vector.extract_strided_slice %471 {offsets = [0, 64], sizes = [8, 32], strides = [1, 1]} : vector<8x96xf32> to vector<8x32xf32>
    %477 = arith.mulf %475, %427 : vector<8x32xf32>
    %478 = arith.mulf %474, %473 : vector<8x32xf32>
    %479 = arith.addf %477, %478 : vector<8x32xf32>
    %480 = math.tanh %479 : vector<8x32xf32>
    %481 = arith.mulf %476, %480 : vector<8x32xf32>
    %cst_127 = arith.constant 0.000000e+00 : f32
    %482 = vector.shape_cast %20 : vector<8x1xi1> to vector<8x1xi1>
    %483 = vector.broadcast %482 : vector<8x1xi1> to vector<8x32xi1>
    %484 = vector.broadcast %cst_127 : f32 to vector<8x32xf32>
    %485 = arith.select %483, %481, %484 : vector<8x32xi1>, vector<8x32xf32>
    %486 = vector.extract_strided_slice %465 {offsets = [0, 0], sizes = [8, 96], strides = [1, 1]} : vector<8x128xf32> to vector<8x96xf32>
    %487 = arith.negf %486 : vector<8x96xf32>
    %488 = math.exp %487 : vector<8x96xf32>
    %cst_128 = arith.constant 1.000000e+00 : f32
    %489 = vector.broadcast %cst_128 : f32 to vector<8x96xf32>
    %490 = arith.addf %489, %488 : vector<8x96xf32>
    %491 = arith.divf %489, %490 : vector<8x96xf32>
    %492 = vector.extract_strided_slice %465 {offsets = [0, 96], sizes = [8, 32], strides = [1, 1]} : vector<8x128xf32> to vector<8x32xf32>
    %493 = math.tanh %492 : vector<8x32xf32>
    %494 = vector.extract_strided_slice %491 {offsets = [0, 0], sizes = [8, 32], strides = [1, 1]} : vector<8x96xf32> to vector<8x32xf32>
    %495 = vector.extract_strided_slice %491 {offsets = [0, 32], sizes = [8, 32], strides = [1, 1]} : vector<8x96xf32> to vector<8x32xf32>
    %496 = vector.extract_strided_slice %491 {offsets = [0, 64], sizes = [8, 32], strides = [1, 1]} : vector<8x96xf32> to vector<8x32xf32>
    %497 = arith.mulf %495, %453 : vector<8x32xf32>
    %498 = arith.mulf %494, %493 : vector<8x32xf32>
    %499 = arith.addf %497, %498 : vector<8x32xf32>
    %500 = math.tanh %499 : vector<8x32xf32>
    %501 = arith.mulf %496, %500 : vector<8x32xf32>
    %cst_129 = arith.constant 0.000000e+00 : f32
    %502 = vector.shape_cast %6 : vector<8x1xi1> to vector<8x1xi1>
    %503 = vector.broadcast %502 : vector<8x1xi1> to vector<8x32xi1>
    %504 = vector.broadcast %cst_129 : f32 to vector<8x32xf32>
    %505 = arith.select %503, %501, %504 : vector<8x32xi1>, vector<8x32xf32>
    %c56_130 = arith.constant 56 : index
    %c0_131 = arith.constant 0 : index
    %506 = vector.load %arg20[%c56_130, %c0_131] : memref<64x64xf32, #tpu.memory_space<vmem>>, vector<8x32xf32>
    tpu.vector_store %arg20[%c56_130, %c0_131], %485 {strides = array<i32>} : memref<64x64xf32, #tpu.memory_space<vmem>>, vector<8x32xf32>,
    %c0_132 = arith.constant 0 : index
    %c32_133 = arith.constant 32 : index
    %507 = vector.load %arg20[%c0_132, %c32_133] : memref<64x64xf32, #tpu.memory_space<vmem>>, vector<8x32xf32>
    tpu.vector_store %arg20[%c0_132, %c32_133], %505 {strides = array<i32>} : memref<64x64xf32, #tpu.memory_space<vmem>>, vector<8x32xf32>,
    %c0_134 = arith.constant 0 : index
    %c0_135 = arith.constant 0 : index
    %508 = vector.load %arg20[%c0_134, %c0_135] : memref<64x64xf32, #tpu.memory_space<vmem>>, vector<64x64xf32>
    %509 = arith.truncf %508 : vector<64x64xf32> to vector<64x64xbf16>
    %c0_136 = arith.constant 0 : index
    %c0_137 = arith.constant 0 : index
    %510 = vector.load %arg9[%c0_136, %c0_137] : memref<64x128xbf16, #tpu.memory_space<vmem>>, vector<64x128xbf16>
    %cst_138 = arith.constant dense<0.000000e+00> : vector<64x128xf32>
    %511 = tpu.matmul %509, %510, %cst_138 {dimension_numbers = #tpu.dot_dimension_numbers<[1], [0], [0], [1], [0, 0, 1, 1], [], []>} : vector<64x64xbf16>, vector<64x128xbf16>, vector<64x128xf32> -> vector<64x128xf32>
    %c0_139 = arith.constant 0 : index
    %c0_140 = arith.constant 0 : index
    %512 = vector.load %arg11[%c0_139, %c0_140] : memref<1x128xf32, #tpu.memory_space<vmem>>, vector<1x128xf32>
    %513 = vector.broadcast %512 : vector<1x128xf32> to vector<64x128xf32>
    %514 = arith.addf %511, %513 : vector<64x128xf32>
    %c0_141 = arith.constant 0 : index
    %c0_142 = arith.constant 0 : index
    %515 = vector.load %arg18[%c0_141, %c0_142] : memref<64x128xf32, #tpu.memory_space<vmem>>, vector<64x128xf32>
    tpu.vector_store %arg18[%c0_141, %c0_142], %514 {strides = array<i32>} : memref<64x128xf32, #tpu.memory_space<vmem>>, vector<64x128xf32>,
    %c0_143 = arith.constant 0 : index
    %c0_144 = arith.constant 0 : index
    %516 = vector.load %arg12[%c0_143, %c0_144] : memref<64x128xbf16, #tpu.memory_space<vmem>>, vector<64x128xbf16>
    %cst_145 = arith.constant dense<0.000000e+00> : vector<64x128xf32>
    %517 = tpu.matmul %509, %516, %cst_145 {dimension_numbers = #tpu.dot_dimension_numbers<[1], [0], [0], [1], [0, 0, 1, 1], [], []>} : vector<64x64xbf16>, vector<64x128xbf16>, vector<64x128xf32> -> vector<64x128xf32>
    %c0_146 = arith.constant 0 : index
    %c0_147 = arith.constant 0 : index
    %518 = vector.load %arg14[%c0_146, %c0_147] : memref<1x128xf32, #tpu.memory_space<vmem>>, vector<1x128xf32>
    %519 = vector.broadcast %518 : vector<1x128xf32> to vector<64x128xf32>
    %520 = arith.addf %517, %519 : vector<64x128xf32>
    %c0_148 = arith.constant 0 : index
    %c0_149 = arith.constant 0 : index
    %521 = vector.load %arg19[%c0_148, %c0_149] : memref<64x128xf32, #tpu.memory_space<vmem>>, vector<64x128xf32>
    tpu.vector_store %arg19[%c0_148, %c0_149], %520 {strides = array<i32>} : memref<64x128xf32, #tpu.memory_space<vmem>>, vector<64x128xf32>,
    %cst_150 = arith.constant 0.000000e+00 : f32
    %522 = vector.broadcast %cst_150 : f32 to vector<8x32xf32>
    %cst_151 = arith.constant 0.000000e+00 : f32
    %523 = vector.broadcast %cst_151 : f32 to vector<8x32xf32>
    %cst_152 = arith.constant 0.000000e+00 : f32
    %524 = vector.broadcast %cst_152 : f32 to vector<8x32xf32>
    %cst_153 = arith.constant 0.000000e+00 : f32
    %525 = vector.broadcast %cst_153 : f32 to vector<8x32xf32>
    %c0_154 = arith.constant 0 : index
    %c0_155 = arith.constant 0 : index
    %526 = vector.load %arg18[%c0_154, %c0_155] : memref<64x128xf32, #tpu.memory_space<vmem>>, vector<8x128xf32>
    %cst_156 = arith.constant dense<0.000000e+00> : vector<8x128xf32>
    %527 = tpu.matmul %522, %3, %cst_156 {dimension_numbers = #tpu.dot_dimension_numbers<[1], [0], [0], [1], [0, 0, 1, 1], [], []>} : vector<8x32xf32>, vector<32x128xf32>, vector<8x128xf32> -> vector<8x128xf32>
    %528 = arith.addf %526, %527 : vector<8x128xf32>
    %c56_157 = arith.constant 56 : index
    %c0_158 = arith.constant 0 : index
    %529 = vector.load %arg19[%c56_157, %c0_158] : memref<64x128xf32, #tpu.memory_space<vmem>>, vector<8x128xf32>
    %cst_159 = arith.constant dense<0.000000e+00> : vector<8x128xf32>
    %530 = tpu.matmul %524, %4, %cst_159 {dimension_numbers = #tpu.dot_dimension_numbers<[1], [0], [0], [1], [0, 0, 1, 1], [], []>} : vector<8x32xf32>, vector<32x128xf32>, vector<8x128xf32> -> vector<8x128xf32>
    %531 = arith.addf %529, %530 : vector<8x128xf32>
    %532 = vector.extract_strided_slice %528 {offsets = [0, 0], sizes = [8, 96], strides = [1, 1]} : vector<8x128xf32> to vector<8x96xf32>
    %533 = arith.negf %532 : vector<8x96xf32>
    %534 = math.exp %533 : vector<8x96xf32>
    %cst_160 = arith.constant 1.000000e+00 : f32
    %535 = vector.broadcast %cst_160 : f32 to vector<8x96xf32>
    %536 = arith.addf %535, %534 : vector<8x96xf32>
    %537 = arith.divf %535, %536 : vector<8x96xf32>
    %538 = vector.extract_strided_slice %528 {offsets = [0, 96], sizes = [8, 32], strides = [1, 1]} : vector<8x128xf32> to vector<8x32xf32>
    %539 = math.tanh %538 : vector<8x32xf32>
    %540 = vector.extract_strided_slice %537 {offsets = [0, 0], sizes = [8, 32], strides = [1, 1]} : vector<8x96xf32> to vector<8x32xf32>
    %541 = vector.extract_strided_slice %537 {offsets = [0, 32], sizes = [8, 32], strides = [1, 1]} : vector<8x96xf32> to vector<8x32xf32>
    %542 = vector.extract_strided_slice %537 {offsets = [0, 64], sizes = [8, 32], strides = [1, 1]} : vector<8x96xf32> to vector<8x32xf32>
    %543 = arith.mulf %541, %523 : vector<8x32xf32>
    %544 = arith.mulf %540, %539 : vector<8x32xf32>
    %545 = arith.addf %543, %544 : vector<8x32xf32>
    %546 = math.tanh %545 : vector<8x32xf32>
    %547 = arith.mulf %542, %546 : vector<8x32xf32>
    %548 = vector.shape_cast %6 : vector<8x1xi1> to vector<8x1xi1>
    %549 = vector.broadcast %548 : vector<8x1xi1> to vector<8x32xi1>
    %550 = arith.select %549, %547, %522 : vector<8x32xi1>, vector<8x32xf32>
    %551 = vector.shape_cast %6 : vector<8x1xi1> to vector<8x1xi1>
    %552 = vector.broadcast %551 : vector<8x1xi1> to vector<8x32xi1>
    %553 = arith.select %552, %545, %523 : vector<8x32xi1>, vector<8x32xf32>
    %cst_161 = arith.constant 0.000000e+00 : f32
    %554 = vector.shape_cast %6 : vector<8x1xi1> to vector<8x1xi1>
    %555 = vector.broadcast %554 : vector<8x1xi1> to vector<8x32xi1>
    %556 = vector.broadcast %cst_161 : f32 to vector<8x32xf32>
    %557 = arith.select %555, %547, %556 : vector<8x32xi1>, vector<8x32xf32>
    %558 = vector.extract_strided_slice %531 {offsets = [0, 0], sizes = [8, 96], strides = [1, 1]} : vector<8x128xf32> to vector<8x96xf32>
    %559 = arith.negf %558 : vector<8x96xf32>
    %560 = math.exp %559 : vector<8x96xf32>
    %cst_162 = arith.constant 1.000000e+00 : f32
    %561 = vector.broadcast %cst_162 : f32 to vector<8x96xf32>
    %562 = arith.addf %561, %560 : vector<8x96xf32>
    %563 = arith.divf %561, %562 : vector<8x96xf32>
    %564 = vector.extract_strided_slice %531 {offsets = [0, 96], sizes = [8, 32], strides = [1, 1]} : vector<8x128xf32> to vector<8x32xf32>
    %565 = math.tanh %564 : vector<8x32xf32>
    %566 = vector.extract_strided_slice %563 {offsets = [0, 0], sizes = [8, 32], strides = [1, 1]} : vector<8x96xf32> to vector<8x32xf32>
    %567 = vector.extract_strided_slice %563 {offsets = [0, 32], sizes = [8, 32], strides = [1, 1]} : vector<8x96xf32> to vector<8x32xf32>
    %568 = vector.extract_strided_slice %563 {offsets = [0, 64], sizes = [8, 32], strides = [1, 1]} : vector<8x96xf32> to vector<8x32xf32>
    %569 = arith.mulf %567, %525 : vector<8x32xf32>
    %570 = arith.mulf %566, %565 : vector<8x32xf32>
    %571 = arith.addf %569, %570 : vector<8x32xf32>
    %572 = math.tanh %571 : vector<8x32xf32>
    %573 = arith.mulf %568, %572 : vector<8x32xf32>
    %574 = vector.shape_cast %20 : vector<8x1xi1> to vector<8x1xi1>
    %575 = vector.broadcast %574 : vector<8x1xi1> to vector<8x32xi1>
    %576 = arith.select %575, %573, %524 : vector<8x32xi1>, vector<8x32xf32>
    %577 = vector.shape_cast %20 : vector<8x1xi1> to vector<8x1xi1>
    %578 = vector.broadcast %577 : vector<8x1xi1> to vector<8x32xi1>
    %579 = arith.select %578, %571, %525 : vector<8x32xi1>, vector<8x32xf32>
    %cst_163 = arith.constant 0.000000e+00 : f32
    %580 = vector.shape_cast %20 : vector<8x1xi1> to vector<8x1xi1>
    %581 = vector.broadcast %580 : vector<8x1xi1> to vector<8x32xi1>
    %582 = vector.broadcast %cst_163 : f32 to vector<8x32xf32>
    %583 = arith.select %581, %573, %582 : vector<8x32xi1>, vector<8x32xf32>
    %c0_164 = arith.constant 0 : index
    %c0_165 = arith.constant 0 : index
    %584 = vector.load %arg21[%c0_164, %c0_165] : memref<64x64xf32, #tpu.memory_space<vmem>>, vector<8x32xf32>
    tpu.vector_store %arg21[%c0_164, %c0_165], %557 {strides = array<i32>} : memref<64x64xf32, #tpu.memory_space<vmem>>, vector<8x32xf32>,
    %c56_166 = arith.constant 56 : index
    %c32_167 = arith.constant 32 : index
    %585 = vector.load %arg21[%c56_166, %c32_167] : memref<64x64xf32, #tpu.memory_space<vmem>>, vector<8x32xf32>
    tpu.vector_store %arg21[%c56_166, %c32_167], %583 {strides = array<i32>} : memref<64x64xf32, #tpu.memory_space<vmem>>, vector<8x32xf32>,
    %c8_168 = arith.constant 8 : index
    %c0_169 = arith.constant 0 : index
    %586 = vector.load %arg18[%c8_168, %c0_169] : memref<64x128xf32, #tpu.memory_space<vmem>>, vector<8x128xf32>
    %cst_170 = arith.constant dense<0.000000e+00> : vector<8x128xf32>
    %587 = tpu.matmul %550, %3, %cst_170 {dimension_numbers = #tpu.dot_dimension_numbers<[1], [0], [0], [1], [0, 0, 1, 1], [], []>} : vector<8x32xf32>, vector<32x128xf32>, vector<8x128xf32> -> vector<8x128xf32>
    %588 = arith.addf %586, %587 : vector<8x128xf32>
    %c48_171 = arith.constant 48 : index
    %c0_172 = arith.constant 0 : index
    %589 = vector.load %arg19[%c48_171, %c0_172] : memref<64x128xf32, #tpu.memory_space<vmem>>, vector<8x128xf32>
    %cst_173 = arith.constant dense<0.000000e+00> : vector<8x128xf32>
    %590 = tpu.matmul %576, %4, %cst_173 {dimension_numbers = #tpu.dot_dimension_numbers<[1], [0], [0], [1], [0, 0, 1, 1], [], []>} : vector<8x32xf32>, vector<32x128xf32>, vector<8x128xf32> -> vector<8x128xf32>
    %591 = arith.addf %589, %590 : vector<8x128xf32>
    %592 = vector.extract_strided_slice %588 {offsets = [0, 0], sizes = [8, 96], strides = [1, 1]} : vector<8x128xf32> to vector<8x96xf32>
    %593 = arith.negf %592 : vector<8x96xf32>
    %594 = math.exp %593 : vector<8x96xf32>
    %cst_174 = arith.constant 1.000000e+00 : f32
    %595 = vector.broadcast %cst_174 : f32 to vector<8x96xf32>
    %596 = arith.addf %595, %594 : vector<8x96xf32>
    %597 = arith.divf %595, %596 : vector<8x96xf32>
    %598 = vector.extract_strided_slice %588 {offsets = [0, 96], sizes = [8, 32], strides = [1, 1]} : vector<8x128xf32> to vector<8x32xf32>
    %599 = math.tanh %598 : vector<8x32xf32>
    %600 = vector.extract_strided_slice %597 {offsets = [0, 0], sizes = [8, 32], strides = [1, 1]} : vector<8x96xf32> to vector<8x32xf32>
    %601 = vector.extract_strided_slice %597 {offsets = [0, 32], sizes = [8, 32], strides = [1, 1]} : vector<8x96xf32> to vector<8x32xf32>
    %602 = vector.extract_strided_slice %597 {offsets = [0, 64], sizes = [8, 32], strides = [1, 1]} : vector<8x96xf32> to vector<8x32xf32>
    %603 = arith.mulf %601, %553 : vector<8x32xf32>
    %604 = arith.mulf %600, %599 : vector<8x32xf32>
    %605 = arith.addf %603, %604 : vector<8x32xf32>
    %606 = math.tanh %605 : vector<8x32xf32>
    %607 = arith.mulf %602, %606 : vector<8x32xf32>
    %608 = vector.shape_cast %8 : vector<8x1xi1> to vector<8x1xi1>
    %609 = vector.broadcast %608 : vector<8x1xi1> to vector<8x32xi1>
    %610 = arith.select %609, %607, %550 : vector<8x32xi1>, vector<8x32xf32>
    %611 = vector.shape_cast %8 : vector<8x1xi1> to vector<8x1xi1>
    %612 = vector.broadcast %611 : vector<8x1xi1> to vector<8x32xi1>
    %613 = arith.select %612, %605, %553 : vector<8x32xi1>, vector<8x32xf32>
    %cst_175 = arith.constant 0.000000e+00 : f32
    %614 = vector.shape_cast %8 : vector<8x1xi1> to vector<8x1xi1>
    %615 = vector.broadcast %614 : vector<8x1xi1> to vector<8x32xi1>
    %616 = vector.broadcast %cst_175 : f32 to vector<8x32xf32>
    %617 = arith.select %615, %607, %616 : vector<8x32xi1>, vector<8x32xf32>
    %618 = vector.extract_strided_slice %591 {offsets = [0, 0], sizes = [8, 96], strides = [1, 1]} : vector<8x128xf32> to vector<8x96xf32>
    %619 = arith.negf %618 : vector<8x96xf32>
    %620 = math.exp %619 : vector<8x96xf32>
    %cst_176 = arith.constant 1.000000e+00 : f32
    %621 = vector.broadcast %cst_176 : f32 to vector<8x96xf32>
    %622 = arith.addf %621, %620 : vector<8x96xf32>
    %623 = arith.divf %621, %622 : vector<8x96xf32>
    %624 = vector.extract_strided_slice %591 {offsets = [0, 96], sizes = [8, 32], strides = [1, 1]} : vector<8x128xf32> to vector<8x32xf32>
    %625 = math.tanh %624 : vector<8x32xf32>
    %626 = vector.extract_strided_slice %623 {offsets = [0, 0], sizes = [8, 32], strides = [1, 1]} : vector<8x96xf32> to vector<8x32xf32>
    %627 = vector.extract_strided_slice %623 {offsets = [0, 32], sizes = [8, 32], strides = [1, 1]} : vector<8x96xf32> to vector<8x32xf32>
    %628 = vector.extract_strided_slice %623 {offsets = [0, 64], sizes = [8, 32], strides = [1, 1]} : vector<8x96xf32> to vector<8x32xf32>
    %629 = arith.mulf %627, %579 : vector<8x32xf32>
    %630 = arith.mulf %626, %625 : vector<8x32xf32>
    %631 = arith.addf %629, %630 : vector<8x32xf32>
    %632 = math.tanh %631 : vector<8x32xf32>
    %633 = arith.mulf %628, %632 : vector<8x32xf32>
    %634 = vector.shape_cast %18 : vector<8x1xi1> to vector<8x1xi1>
    %635 = vector.broadcast %634 : vector<8x1xi1> to vector<8x32xi1>
    %636 = arith.select %635, %633, %576 : vector<8x32xi1>, vector<8x32xf32>
    %637 = vector.shape_cast %18 : vector<8x1xi1> to vector<8x1xi1>
    %638 = vector.broadcast %637 : vector<8x1xi1> to vector<8x32xi1>
    %639 = arith.select %638, %631, %579 : vector<8x32xi1>, vector<8x32xf32>
    %cst_177 = arith.constant 0.000000e+00 : f32
    %640 = vector.shape_cast %18 : vector<8x1xi1> to vector<8x1xi1>
    %641 = vector.broadcast %640 : vector<8x1xi1> to vector<8x32xi1>
    %642 = vector.broadcast %cst_177 : f32 to vector<8x32xf32>
    %643 = arith.select %641, %633, %642 : vector<8x32xi1>, vector<8x32xf32>
    %c8_178 = arith.constant 8 : index
    %c0_179 = arith.constant 0 : index
    %644 = vector.load %arg21[%c8_178, %c0_179] : memref<64x64xf32, #tpu.memory_space<vmem>>, vector<8x32xf32>
    tpu.vector_store %arg21[%c8_178, %c0_179], %617 {strides = array<i32>} : memref<64x64xf32, #tpu.memory_space<vmem>>, vector<8x32xf32>,
    %c48_180 = arith.constant 48 : index
    %c32_181 = arith.constant 32 : index
    %645 = vector.load %arg21[%c48_180, %c32_181] : memref<64x64xf32, #tpu.memory_space<vmem>>, vector<8x32xf32>
    tpu.vector_store %arg21[%c48_180, %c32_181], %643 {strides = array<i32>} : memref<64x64xf32, #tpu.memory_space<vmem>>, vector<8x32xf32>,
    %c16_182 = arith.constant 16 : index
    %c0_183 = arith.constant 0 : index
    %646 = vector.load %arg18[%c16_182, %c0_183] : memref<64x128xf32, #tpu.memory_space<vmem>>, vector<8x128xf32>
    %cst_184 = arith.constant dense<0.000000e+00> : vector<8x128xf32>
    %647 = tpu.matmul %610, %3, %cst_184 {dimension_numbers = #tpu.dot_dimension_numbers<[1], [0], [0], [1], [0, 0, 1, 1], [], []>} : vector<8x32xf32>, vector<32x128xf32>, vector<8x128xf32> -> vector<8x128xf32>
    %648 = arith.addf %646, %647 : vector<8x128xf32>
    %c40_185 = arith.constant 40 : index
    %c0_186 = arith.constant 0 : index
    %649 = vector.load %arg19[%c40_185, %c0_186] : memref<64x128xf32, #tpu.memory_space<vmem>>, vector<8x128xf32>
    %cst_187 = arith.constant dense<0.000000e+00> : vector<8x128xf32>
    %650 = tpu.matmul %636, %4, %cst_187 {dimension_numbers = #tpu.dot_dimension_numbers<[1], [0], [0], [1], [0, 0, 1, 1], [], []>} : vector<8x32xf32>, vector<32x128xf32>, vector<8x128xf32> -> vector<8x128xf32>
    %651 = arith.addf %649, %650 : vector<8x128xf32>
    %652 = vector.extract_strided_slice %648 {offsets = [0, 0], sizes = [8, 96], strides = [1, 1]} : vector<8x128xf32> to vector<8x96xf32>
    %653 = arith.negf %652 : vector<8x96xf32>
    %654 = math.exp %653 : vector<8x96xf32>
    %cst_188 = arith.constant 1.000000e+00 : f32
    %655 = vector.broadcast %cst_188 : f32 to vector<8x96xf32>
    %656 = arith.addf %655, %654 : vector<8x96xf32>
    %657 = arith.divf %655, %656 : vector<8x96xf32>
    %658 = vector.extract_strided_slice %648 {offsets = [0, 96], sizes = [8, 32], strides = [1, 1]} : vector<8x128xf32> to vector<8x32xf32>
    %659 = math.tanh %658 : vector<8x32xf32>
    %660 = vector.extract_strided_slice %657 {offsets = [0, 0], sizes = [8, 32], strides = [1, 1]} : vector<8x96xf32> to vector<8x32xf32>
    %661 = vector.extract_strided_slice %657 {offsets = [0, 32], sizes = [8, 32], strides = [1, 1]} : vector<8x96xf32> to vector<8x32xf32>
    %662 = vector.extract_strided_slice %657 {offsets = [0, 64], sizes = [8, 32], strides = [1, 1]} : vector<8x96xf32> to vector<8x32xf32>
    %663 = arith.mulf %661, %613 : vector<8x32xf32>
    %664 = arith.mulf %660, %659 : vector<8x32xf32>
    %665 = arith.addf %663, %664 : vector<8x32xf32>
    %666 = math.tanh %665 : vector<8x32xf32>
    %667 = arith.mulf %662, %666 : vector<8x32xf32>
    %668 = vector.shape_cast %10 : vector<8x1xi1> to vector<8x1xi1>
    %669 = vector.broadcast %668 : vector<8x1xi1> to vector<8x32xi1>
    %670 = arith.select %669, %667, %610 : vector<8x32xi1>, vector<8x32xf32>
    %671 = vector.shape_cast %10 : vector<8x1xi1> to vector<8x1xi1>
    %672 = vector.broadcast %671 : vector<8x1xi1> to vector<8x32xi1>
    %673 = arith.select %672, %665, %613 : vector<8x32xi1>, vector<8x32xf32>
    %cst_189 = arith.constant 0.000000e+00 : f32
    %674 = vector.shape_cast %10 : vector<8x1xi1> to vector<8x1xi1>
    %675 = vector.broadcast %674 : vector<8x1xi1> to vector<8x32xi1>
    %676 = vector.broadcast %cst_189 : f32 to vector<8x32xf32>
    %677 = arith.select %675, %667, %676 : vector<8x32xi1>, vector<8x32xf32>
    %678 = vector.extract_strided_slice %651 {offsets = [0, 0], sizes = [8, 96], strides = [1, 1]} : vector<8x128xf32> to vector<8x96xf32>
    %679 = arith.negf %678 : vector<8x96xf32>
    %680 = math.exp %679 : vector<8x96xf32>
    %cst_190 = arith.constant 1.000000e+00 : f32
    %681 = vector.broadcast %cst_190 : f32 to vector<8x96xf32>
    %682 = arith.addf %681, %680 : vector<8x96xf32>
    %683 = arith.divf %681, %682 : vector<8x96xf32>
    %684 = vector.extract_strided_slice %651 {offsets = [0, 96], sizes = [8, 32], strides = [1, 1]} : vector<8x128xf32> to vector<8x32xf32>
    %685 = math.tanh %684 : vector<8x32xf32>
    %686 = vector.extract_strided_slice %683 {offsets = [0, 0], sizes = [8, 32], strides = [1, 1]} : vector<8x96xf32> to vector<8x32xf32>
    %687 = vector.extract_strided_slice %683 {offsets = [0, 32], sizes = [8, 32], strides = [1, 1]} : vector<8x96xf32> to vector<8x32xf32>
    %688 = vector.extract_strided_slice %683 {offsets = [0, 64], sizes = [8, 32], strides = [1, 1]} : vector<8x96xf32> to vector<8x32xf32>
    %689 = arith.mulf %687, %639 : vector<8x32xf32>
    %690 = arith.mulf %686, %685 : vector<8x32xf32>
    %691 = arith.addf %689, %690 : vector<8x32xf32>
    %692 = math.tanh %691 : vector<8x32xf32>
    %693 = arith.mulf %688, %692 : vector<8x32xf32>
    %694 = vector.shape_cast %16 : vector<8x1xi1> to vector<8x1xi1>
    %695 = vector.broadcast %694 : vector<8x1xi1> to vector<8x32xi1>
    %696 = arith.select %695, %693, %636 : vector<8x32xi1>, vector<8x32xf32>
    %697 = vector.shape_cast %16 : vector<8x1xi1> to vector<8x1xi1>
    %698 = vector.broadcast %697 : vector<8x1xi1> to vector<8x32xi1>
    %699 = arith.select %698, %691, %639 : vector<8x32xi1>, vector<8x32xf32>
    %cst_191 = arith.constant 0.000000e+00 : f32
    %700 = vector.shape_cast %16 : vector<8x1xi1> to vector<8x1xi1>
    %701 = vector.broadcast %700 : vector<8x1xi1> to vector<8x32xi1>
    %702 = vector.broadcast %cst_191 : f32 to vector<8x32xf32>
    %703 = arith.select %701, %693, %702 : vector<8x32xi1>, vector<8x32xf32>
    %c16_192 = arith.constant 16 : index
    %c0_193 = arith.constant 0 : index
    %704 = vector.load %arg21[%c16_192, %c0_193] : memref<64x64xf32, #tpu.memory_space<vmem>>, vector<8x32xf32>
    tpu.vector_store %arg21[%c16_192, %c0_193], %677 {strides = array<i32>} : memref<64x64xf32, #tpu.memory_space<vmem>>, vector<8x32xf32>,
    %c40_194 = arith.constant 40 : index
    %c32_195 = arith.constant 32 : index
    %705 = vector.load %arg21[%c40_194, %c32_195] : memref<64x64xf32, #tpu.memory_space<vmem>>, vector<8x32xf32>
    tpu.vector_store %arg21[%c40_194, %c32_195], %703 {strides = array<i32>} : memref<64x64xf32, #tpu.memory_space<vmem>>, vector<8x32xf32>,
    %c24_196 = arith.constant 24 : index
    %c0_197 = arith.constant 0 : index
    %706 = vector.load %arg18[%c24_196, %c0_197] : memref<64x128xf32, #tpu.memory_space<vmem>>, vector<8x128xf32>
    %cst_198 = arith.constant dense<0.000000e+00> : vector<8x128xf32>
    %707 = tpu.matmul %670, %3, %cst_198 {dimension_numbers = #tpu.dot_dimension_numbers<[1], [0], [0], [1], [0, 0, 1, 1], [], []>} : vector<8x32xf32>, vector<32x128xf32>, vector<8x128xf32> -> vector<8x128xf32>
    %708 = arith.addf %706, %707 : vector<8x128xf32>
    %c32_199 = arith.constant 32 : index
    %c0_200 = arith.constant 0 : index
    %709 = vector.load %arg19[%c32_199, %c0_200] : memref<64x128xf32, #tpu.memory_space<vmem>>, vector<8x128xf32>
    %cst_201 = arith.constant dense<0.000000e+00> : vector<8x128xf32>
    %710 = tpu.matmul %696, %4, %cst_201 {dimension_numbers = #tpu.dot_dimension_numbers<[1], [0], [0], [1], [0, 0, 1, 1], [], []>} : vector<8x32xf32>, vector<32x128xf32>, vector<8x128xf32> -> vector<8x128xf32>
    %711 = arith.addf %709, %710 : vector<8x128xf32>
    %712 = vector.extract_strided_slice %708 {offsets = [0, 0], sizes = [8, 96], strides = [1, 1]} : vector<8x128xf32> to vector<8x96xf32>
    %713 = arith.negf %712 : vector<8x96xf32>
    %714 = math.exp %713 : vector<8x96xf32>
    %cst_202 = arith.constant 1.000000e+00 : f32
    %715 = vector.broadcast %cst_202 : f32 to vector<8x96xf32>
    %716 = arith.addf %715, %714 : vector<8x96xf32>
    %717 = arith.divf %715, %716 : vector<8x96xf32>
    %718 = vector.extract_strided_slice %708 {offsets = [0, 96], sizes = [8, 32], strides = [1, 1]} : vector<8x128xf32> to vector<8x32xf32>
    %719 = math.tanh %718 : vector<8x32xf32>
    %720 = vector.extract_strided_slice %717 {offsets = [0, 0], sizes = [8, 32], strides = [1, 1]} : vector<8x96xf32> to vector<8x32xf32>
    %721 = vector.extract_strided_slice %717 {offsets = [0, 32], sizes = [8, 32], strides = [1, 1]} : vector<8x96xf32> to vector<8x32xf32>
    %722 = vector.extract_strided_slice %717 {offsets = [0, 64], sizes = [8, 32], strides = [1, 1]} : vector<8x96xf32> to vector<8x32xf32>
    %723 = arith.mulf %721, %673 : vector<8x32xf32>
    %724 = arith.mulf %720, %719 : vector<8x32xf32>
    %725 = arith.addf %723, %724 : vector<8x32xf32>
    %726 = math.tanh %725 : vector<8x32xf32>
    %727 = arith.mulf %722, %726 : vector<8x32xf32>
    %728 = vector.shape_cast %12 : vector<8x1xi1> to vector<8x1xi1>
    %729 = vector.broadcast %728 : vector<8x1xi1> to vector<8x32xi1>
    %730 = arith.select %729, %727, %670 : vector<8x32xi1>, vector<8x32xf32>
    %731 = vector.shape_cast %12 : vector<8x1xi1> to vector<8x1xi1>
    %732 = vector.broadcast %731 : vector<8x1xi1> to vector<8x32xi1>
    %733 = arith.select %732, %725, %673 : vector<8x32xi1>, vector<8x32xf32>
    %cst_203 = arith.constant 0.000000e+00 : f32
    %734 = vector.shape_cast %12 : vector<8x1xi1> to vector<8x1xi1>
    %735 = vector.broadcast %734 : vector<8x1xi1> to vector<8x32xi1>
    %736 = vector.broadcast %cst_203 : f32 to vector<8x32xf32>
    %737 = arith.select %735, %727, %736 : vector<8x32xi1>, vector<8x32xf32>
    %738 = vector.extract_strided_slice %711 {offsets = [0, 0], sizes = [8, 96], strides = [1, 1]} : vector<8x128xf32> to vector<8x96xf32>
    %739 = arith.negf %738 : vector<8x96xf32>
    %740 = math.exp %739 : vector<8x96xf32>
    %cst_204 = arith.constant 1.000000e+00 : f32
    %741 = vector.broadcast %cst_204 : f32 to vector<8x96xf32>
    %742 = arith.addf %741, %740 : vector<8x96xf32>
    %743 = arith.divf %741, %742 : vector<8x96xf32>
    %744 = vector.extract_strided_slice %711 {offsets = [0, 96], sizes = [8, 32], strides = [1, 1]} : vector<8x128xf32> to vector<8x32xf32>
    %745 = math.tanh %744 : vector<8x32xf32>
    %746 = vector.extract_strided_slice %743 {offsets = [0, 0], sizes = [8, 32], strides = [1, 1]} : vector<8x96xf32> to vector<8x32xf32>
    %747 = vector.extract_strided_slice %743 {offsets = [0, 32], sizes = [8, 32], strides = [1, 1]} : vector<8x96xf32> to vector<8x32xf32>
    %748 = vector.extract_strided_slice %743 {offsets = [0, 64], sizes = [8, 32], strides = [1, 1]} : vector<8x96xf32> to vector<8x32xf32>
    %749 = arith.mulf %747, %699 : vector<8x32xf32>
    %750 = arith.mulf %746, %745 : vector<8x32xf32>
    %751 = arith.addf %749, %750 : vector<8x32xf32>
    %752 = math.tanh %751 : vector<8x32xf32>
    %753 = arith.mulf %748, %752 : vector<8x32xf32>
    %754 = vector.shape_cast %14 : vector<8x1xi1> to vector<8x1xi1>
    %755 = vector.broadcast %754 : vector<8x1xi1> to vector<8x32xi1>
    %756 = arith.select %755, %753, %696 : vector<8x32xi1>, vector<8x32xf32>
    %757 = vector.shape_cast %14 : vector<8x1xi1> to vector<8x1xi1>
    %758 = vector.broadcast %757 : vector<8x1xi1> to vector<8x32xi1>
    %759 = arith.select %758, %751, %699 : vector<8x32xi1>, vector<8x32xf32>
    %cst_205 = arith.constant 0.000000e+00 : f32
    %760 = vector.shape_cast %14 : vector<8x1xi1> to vector<8x1xi1>
    %761 = vector.broadcast %760 : vector<8x1xi1> to vector<8x32xi1>
    %762 = vector.broadcast %cst_205 : f32 to vector<8x32xf32>
    %763 = arith.select %761, %753, %762 : vector<8x32xi1>, vector<8x32xf32>
    %c24_206 = arith.constant 24 : index
    %c0_207 = arith.constant 0 : index
    %764 = vector.load %arg21[%c24_206, %c0_207] : memref<64x64xf32, #tpu.memory_space<vmem>>, vector<8x32xf32>
    tpu.vector_store %arg21[%c24_206, %c0_207], %737 {strides = array<i32>} : memref<64x64xf32, #tpu.memory_space<vmem>>, vector<8x32xf32>,
    %c32_208 = arith.constant 32 : index
    %c32_209 = arith.constant 32 : index
    %765 = vector.load %arg21[%c32_208, %c32_209] : memref<64x64xf32, #tpu.memory_space<vmem>>, vector<8x32xf32>
    tpu.vector_store %arg21[%c32_208, %c32_209], %763 {strides = array<i32>} : memref<64x64xf32, #tpu.memory_space<vmem>>, vector<8x32xf32>,
    %c32_210 = arith.constant 32 : index
    %c0_211 = arith.constant 0 : index
    %766 = vector.load %arg18[%c32_210, %c0_211] : memref<64x128xf32, #tpu.memory_space<vmem>>, vector<8x128xf32>
    %cst_212 = arith.constant dense<0.000000e+00> : vector<8x128xf32>
    %767 = tpu.matmul %730, %3, %cst_212 {dimension_numbers = #tpu.dot_dimension_numbers<[1], [0], [0], [1], [0, 0, 1, 1], [], []>} : vector<8x32xf32>, vector<32x128xf32>, vector<8x128xf32> -> vector<8x128xf32>
    %768 = arith.addf %766, %767 : vector<8x128xf32>
    %c24_213 = arith.constant 24 : index
    %c0_214 = arith.constant 0 : index
    %769 = vector.load %arg19[%c24_213, %c0_214] : memref<64x128xf32, #tpu.memory_space<vmem>>, vector<8x128xf32>
    %cst_215 = arith.constant dense<0.000000e+00> : vector<8x128xf32>
    %770 = tpu.matmul %756, %4, %cst_215 {dimension_numbers = #tpu.dot_dimension_numbers<[1], [0], [0], [1], [0, 0, 1, 1], [], []>} : vector<8x32xf32>, vector<32x128xf32>, vector<8x128xf32> -> vector<8x128xf32>
    %771 = arith.addf %769, %770 : vector<8x128xf32>
    %772 = vector.extract_strided_slice %768 {offsets = [0, 0], sizes = [8, 96], strides = [1, 1]} : vector<8x128xf32> to vector<8x96xf32>
    %773 = arith.negf %772 : vector<8x96xf32>
    %774 = math.exp %773 : vector<8x96xf32>
    %cst_216 = arith.constant 1.000000e+00 : f32
    %775 = vector.broadcast %cst_216 : f32 to vector<8x96xf32>
    %776 = arith.addf %775, %774 : vector<8x96xf32>
    %777 = arith.divf %775, %776 : vector<8x96xf32>
    %778 = vector.extract_strided_slice %768 {offsets = [0, 96], sizes = [8, 32], strides = [1, 1]} : vector<8x128xf32> to vector<8x32xf32>
    %779 = math.tanh %778 : vector<8x32xf32>
    %780 = vector.extract_strided_slice %777 {offsets = [0, 0], sizes = [8, 32], strides = [1, 1]} : vector<8x96xf32> to vector<8x32xf32>
    %781 = vector.extract_strided_slice %777 {offsets = [0, 32], sizes = [8, 32], strides = [1, 1]} : vector<8x96xf32> to vector<8x32xf32>
    %782 = vector.extract_strided_slice %777 {offsets = [0, 64], sizes = [8, 32], strides = [1, 1]} : vector<8x96xf32> to vector<8x32xf32>
    %783 = arith.mulf %781, %733 : vector<8x32xf32>
    %784 = arith.mulf %780, %779 : vector<8x32xf32>
    %785 = arith.addf %783, %784 : vector<8x32xf32>
    %786 = math.tanh %785 : vector<8x32xf32>
    %787 = arith.mulf %782, %786 : vector<8x32xf32>
    %788 = vector.shape_cast %14 : vector<8x1xi1> to vector<8x1xi1>
    %789 = vector.broadcast %788 : vector<8x1xi1> to vector<8x32xi1>
    %790 = arith.select %789, %787, %730 : vector<8x32xi1>, vector<8x32xf32>
    %791 = vector.shape_cast %14 : vector<8x1xi1> to vector<8x1xi1>
    %792 = vector.broadcast %791 : vector<8x1xi1> to vector<8x32xi1>
    %793 = arith.select %792, %785, %733 : vector<8x32xi1>, vector<8x32xf32>
    %cst_217 = arith.constant 0.000000e+00 : f32
    %794 = vector.shape_cast %14 : vector<8x1xi1> to vector<8x1xi1>
    %795 = vector.broadcast %794 : vector<8x1xi1> to vector<8x32xi1>
    %796 = vector.broadcast %cst_217 : f32 to vector<8x32xf32>
    %797 = arith.select %795, %787, %796 : vector<8x32xi1>, vector<8x32xf32>
    %798 = vector.extract_strided_slice %771 {offsets = [0, 0], sizes = [8, 96], strides = [1, 1]} : vector<8x128xf32> to vector<8x96xf32>
    %799 = arith.negf %798 : vector<8x96xf32>
    %800 = math.exp %799 : vector<8x96xf32>
    %cst_218 = arith.constant 1.000000e+00 : f32
    %801 = vector.broadcast %cst_218 : f32 to vector<8x96xf32>
    %802 = arith.addf %801, %800 : vector<8x96xf32>
    %803 = arith.divf %801, %802 : vector<8x96xf32>
    %804 = vector.extract_strided_slice %771 {offsets = [0, 96], sizes = [8, 32], strides = [1, 1]} : vector<8x128xf32> to vector<8x32xf32>
    %805 = math.tanh %804 : vector<8x32xf32>
    %806 = vector.extract_strided_slice %803 {offsets = [0, 0], sizes = [8, 32], strides = [1, 1]} : vector<8x96xf32> to vector<8x32xf32>
    %807 = vector.extract_strided_slice %803 {offsets = [0, 32], sizes = [8, 32], strides = [1, 1]} : vector<8x96xf32> to vector<8x32xf32>
    %808 = vector.extract_strided_slice %803 {offsets = [0, 64], sizes = [8, 32], strides = [1, 1]} : vector<8x96xf32> to vector<8x32xf32>
    %809 = arith.mulf %807, %759 : vector<8x32xf32>
    %810 = arith.mulf %806, %805 : vector<8x32xf32>
    %811 = arith.addf %809, %810 : vector<8x32xf32>
    %812 = math.tanh %811 : vector<8x32xf32>
    %813 = arith.mulf %808, %812 : vector<8x32xf32>
    %814 = vector.shape_cast %12 : vector<8x1xi1> to vector<8x1xi1>
    %815 = vector.broadcast %814 : vector<8x1xi1> to vector<8x32xi1>
    %816 = arith.select %815, %813, %756 : vector<8x32xi1>, vector<8x32xf32>
    %817 = vector.shape_cast %12 : vector<8x1xi1> to vector<8x1xi1>
    %818 = vector.broadcast %817 : vector<8x1xi1> to vector<8x32xi1>
    %819 = arith.select %818, %811, %759 : vector<8x32xi1>, vector<8x32xf32>
    %cst_219 = arith.constant 0.000000e+00 : f32
    %820 = vector.shape_cast %12 : vector<8x1xi1> to vector<8x1xi1>
    %821 = vector.broadcast %820 : vector<8x1xi1> to vector<8x32xi1>
    %822 = vector.broadcast %cst_219 : f32 to vector<8x32xf32>
    %823 = arith.select %821, %813, %822 : vector<8x32xi1>, vector<8x32xf32>
    %c32_220 = arith.constant 32 : index
    %c0_221 = arith.constant 0 : index
    %824 = vector.load %arg21[%c32_220, %c0_221] : memref<64x64xf32, #tpu.memory_space<vmem>>, vector<8x32xf32>
    tpu.vector_store %arg21[%c32_220, %c0_221], %797 {strides = array<i32>} : memref<64x64xf32, #tpu.memory_space<vmem>>, vector<8x32xf32>,
    %c24_222 = arith.constant 24 : index
    %c32_223 = arith.constant 32 : index
    %825 = vector.load %arg21[%c24_222, %c32_223] : memref<64x64xf32, #tpu.memory_space<vmem>>, vector<8x32xf32>
    tpu.vector_store %arg21[%c24_222, %c32_223], %823 {strides = array<i32>} : memref<64x64xf32, #tpu.memory_space<vmem>>, vector<8x32xf32>,
    %c40_224 = arith.constant 40 : index
    %c0_225 = arith.constant 0 : index
    %826 = vector.load %arg18[%c40_224, %c0_225] : memref<64x128xf32, #tpu.memory_space<vmem>>, vector<8x128xf32>
    %cst_226 = arith.constant dense<0.000000e+00> : vector<8x128xf32>
    %827 = tpu.matmul %790, %3, %cst_226 {dimension_numbers = #tpu.dot_dimension_numbers<[1], [0], [0], [1], [0, 0, 1, 1], [], []>} : vector<8x32xf32>, vector<32x128xf32>, vector<8x128xf32> -> vector<8x128xf32>
    %828 = arith.addf %826, %827 : vector<8x128xf32>
    %c16_227 = arith.constant 16 : index
    %c0_228 = arith.constant 0 : index
    %829 = vector.load %arg19[%c16_227, %c0_228] : memref<64x128xf32, #tpu.memory_space<vmem>>, vector<8x128xf32>
    %cst_229 = arith.constant dense<0.000000e+00> : vector<8x128xf32>
    %830 = tpu.matmul %816, %4, %cst_229 {dimension_numbers = #tpu.dot_dimension_numbers<[1], [0], [0], [1], [0, 0, 1, 1], [], []>} : vector<8x32xf32>, vector<32x128xf32>, vector<8x128xf32> -> vector<8x128xf32>
    %831 = arith.addf %829, %830 : vector<8x128xf32>
    %832 = vector.extract_strided_slice %828 {offsets = [0, 0], sizes = [8, 96], strides = [1, 1]} : vector<8x128xf32> to vector<8x96xf32>
    %833 = arith.negf %832 : vector<8x96xf32>
    %834 = math.exp %833 : vector<8x96xf32>
    %cst_230 = arith.constant 1.000000e+00 : f32
    %835 = vector.broadcast %cst_230 : f32 to vector<8x96xf32>
    %836 = arith.addf %835, %834 : vector<8x96xf32>
    %837 = arith.divf %835, %836 : vector<8x96xf32>
    %838 = vector.extract_strided_slice %828 {offsets = [0, 96], sizes = [8, 32], strides = [1, 1]} : vector<8x128xf32> to vector<8x32xf32>
    %839 = math.tanh %838 : vector<8x32xf32>
    %840 = vector.extract_strided_slice %837 {offsets = [0, 0], sizes = [8, 32], strides = [1, 1]} : vector<8x96xf32> to vector<8x32xf32>
    %841 = vector.extract_strided_slice %837 {offsets = [0, 32], sizes = [8, 32], strides = [1, 1]} : vector<8x96xf32> to vector<8x32xf32>
    %842 = vector.extract_strided_slice %837 {offsets = [0, 64], sizes = [8, 32], strides = [1, 1]} : vector<8x96xf32> to vector<8x32xf32>
    %843 = arith.mulf %841, %793 : vector<8x32xf32>
    %844 = arith.mulf %840, %839 : vector<8x32xf32>
    %845 = arith.addf %843, %844 : vector<8x32xf32>
    %846 = math.tanh %845 : vector<8x32xf32>
    %847 = arith.mulf %842, %846 : vector<8x32xf32>
    %848 = vector.shape_cast %16 : vector<8x1xi1> to vector<8x1xi1>
    %849 = vector.broadcast %848 : vector<8x1xi1> to vector<8x32xi1>
    %850 = arith.select %849, %847, %790 : vector<8x32xi1>, vector<8x32xf32>
    %851 = vector.shape_cast %16 : vector<8x1xi1> to vector<8x1xi1>
    %852 = vector.broadcast %851 : vector<8x1xi1> to vector<8x32xi1>
    %853 = arith.select %852, %845, %793 : vector<8x32xi1>, vector<8x32xf32>
    %cst_231 = arith.constant 0.000000e+00 : f32
    %854 = vector.shape_cast %16 : vector<8x1xi1> to vector<8x1xi1>
    %855 = vector.broadcast %854 : vector<8x1xi1> to vector<8x32xi1>
    %856 = vector.broadcast %cst_231 : f32 to vector<8x32xf32>
    %857 = arith.select %855, %847, %856 : vector<8x32xi1>, vector<8x32xf32>
    %858 = vector.extract_strided_slice %831 {offsets = [0, 0], sizes = [8, 96], strides = [1, 1]} : vector<8x128xf32> to vector<8x96xf32>
    %859 = arith.negf %858 : vector<8x96xf32>
    %860 = math.exp %859 : vector<8x96xf32>
    %cst_232 = arith.constant 1.000000e+00 : f32
    %861 = vector.broadcast %cst_232 : f32 to vector<8x96xf32>
    %862 = arith.addf %861, %860 : vector<8x96xf32>
    %863 = arith.divf %861, %862 : vector<8x96xf32>
    %864 = vector.extract_strided_slice %831 {offsets = [0, 96], sizes = [8, 32], strides = [1, 1]} : vector<8x128xf32> to vector<8x32xf32>
    %865 = math.tanh %864 : vector<8x32xf32>
    %866 = vector.extract_strided_slice %863 {offsets = [0, 0], sizes = [8, 32], strides = [1, 1]} : vector<8x96xf32> to vector<8x32xf32>
    %867 = vector.extract_strided_slice %863 {offsets = [0, 32], sizes = [8, 32], strides = [1, 1]} : vector<8x96xf32> to vector<8x32xf32>
    %868 = vector.extract_strided_slice %863 {offsets = [0, 64], sizes = [8, 32], strides = [1, 1]} : vector<8x96xf32> to vector<8x32xf32>
    %869 = arith.mulf %867, %819 : vector<8x32xf32>
    %870 = arith.mulf %866, %865 : vector<8x32xf32>
    %871 = arith.addf %869, %870 : vector<8x32xf32>
    %872 = math.tanh %871 : vector<8x32xf32>
    %873 = arith.mulf %868, %872 : vector<8x32xf32>
    %874 = vector.shape_cast %10 : vector<8x1xi1> to vector<8x1xi1>
    %875 = vector.broadcast %874 : vector<8x1xi1> to vector<8x32xi1>
    %876 = arith.select %875, %873, %816 : vector<8x32xi1>, vector<8x32xf32>
    %877 = vector.shape_cast %10 : vector<8x1xi1> to vector<8x1xi1>
    %878 = vector.broadcast %877 : vector<8x1xi1> to vector<8x32xi1>
    %879 = arith.select %878, %871, %819 : vector<8x32xi1>, vector<8x32xf32>
    %cst_233 = arith.constant 0.000000e+00 : f32
    %880 = vector.shape_cast %10 : vector<8x1xi1> to vector<8x1xi1>
    %881 = vector.broadcast %880 : vector<8x1xi1> to vector<8x32xi1>
    %882 = vector.broadcast %cst_233 : f32 to vector<8x32xf32>
    %883 = arith.select %881, %873, %882 : vector<8x32xi1>, vector<8x32xf32>
    %c40_234 = arith.constant 40 : index
    %c0_235 = arith.constant 0 : index
    %884 = vector.load %arg21[%c40_234, %c0_235] : memref<64x64xf32, #tpu.memory_space<vmem>>, vector<8x32xf32>
    tpu.vector_store %arg21[%c40_234, %c0_235], %857 {strides = array<i32>} : memref<64x64xf32, #tpu.memory_space<vmem>>, vector<8x32xf32>,
    %c16_236 = arith.constant 16 : index
    %c32_237 = arith.constant 32 : index
    %885 = vector.load %arg21[%c16_236, %c32_237] : memref<64x64xf32, #tpu.memory_space<vmem>>, vector<8x32xf32>
    tpu.vector_store %arg21[%c16_236, %c32_237], %883 {strides = array<i32>} : memref<64x64xf32, #tpu.memory_space<vmem>>, vector<8x32xf32>,
    %c48_238 = arith.constant 48 : index
    %c0_239 = arith.constant 0 : index
    %886 = vector.load %arg18[%c48_238, %c0_239] : memref<64x128xf32, #tpu.memory_space<vmem>>, vector<8x128xf32>
    %cst_240 = arith.constant dense<0.000000e+00> : vector<8x128xf32>
    %887 = tpu.matmul %850, %3, %cst_240 {dimension_numbers = #tpu.dot_dimension_numbers<[1], [0], [0], [1], [0, 0, 1, 1], [], []>} : vector<8x32xf32>, vector<32x128xf32>, vector<8x128xf32> -> vector<8x128xf32>
    %888 = arith.addf %886, %887 : vector<8x128xf32>
    %c8_241 = arith.constant 8 : index
    %c0_242 = arith.constant 0 : index
    %889 = vector.load %arg19[%c8_241, %c0_242] : memref<64x128xf32, #tpu.memory_space<vmem>>, vector<8x128xf32>
    %cst_243 = arith.constant dense<0.000000e+00> : vector<8x128xf32>
    %890 = tpu.matmul %876, %4, %cst_243 {dimension_numbers = #tpu.dot_dimension_numbers<[1], [0], [0], [1], [0, 0, 1, 1], [], []>} : vector<8x32xf32>, vector<32x128xf32>, vector<8x128xf32> -> vector<8x128xf32>
    %891 = arith.addf %889, %890 : vector<8x128xf32>
    %892 = vector.extract_strided_slice %888 {offsets = [0, 0], sizes = [8, 96], strides = [1, 1]} : vector<8x128xf32> to vector<8x96xf32>
    %893 = arith.negf %892 : vector<8x96xf32>
    %894 = math.exp %893 : vector<8x96xf32>
    %cst_244 = arith.constant 1.000000e+00 : f32
    %895 = vector.broadcast %cst_244 : f32 to vector<8x96xf32>
    %896 = arith.addf %895, %894 : vector<8x96xf32>
    %897 = arith.divf %895, %896 : vector<8x96xf32>
    %898 = vector.extract_strided_slice %888 {offsets = [0, 96], sizes = [8, 32], strides = [1, 1]} : vector<8x128xf32> to vector<8x32xf32>
    %899 = math.tanh %898 : vector<8x32xf32>
    %900 = vector.extract_strided_slice %897 {offsets = [0, 0], sizes = [8, 32], strides = [1, 1]} : vector<8x96xf32> to vector<8x32xf32>
    %901 = vector.extract_strided_slice %897 {offsets = [0, 32], sizes = [8, 32], strides = [1, 1]} : vector<8x96xf32> to vector<8x32xf32>
    %902 = vector.extract_strided_slice %897 {offsets = [0, 64], sizes = [8, 32], strides = [1, 1]} : vector<8x96xf32> to vector<8x32xf32>
    %903 = arith.mulf %901, %853 : vector<8x32xf32>
    %904 = arith.mulf %900, %899 : vector<8x32xf32>
    %905 = arith.addf %903, %904 : vector<8x32xf32>
    %906 = math.tanh %905 : vector<8x32xf32>
    %907 = arith.mulf %902, %906 : vector<8x32xf32>
    %908 = vector.shape_cast %18 : vector<8x1xi1> to vector<8x1xi1>
    %909 = vector.broadcast %908 : vector<8x1xi1> to vector<8x32xi1>
    %910 = arith.select %909, %907, %850 : vector<8x32xi1>, vector<8x32xf32>
    %911 = vector.shape_cast %18 : vector<8x1xi1> to vector<8x1xi1>
    %912 = vector.broadcast %911 : vector<8x1xi1> to vector<8x32xi1>
    %913 = arith.select %912, %905, %853 : vector<8x32xi1>, vector<8x32xf32>
    %cst_245 = arith.constant 0.000000e+00 : f32
    %914 = vector.shape_cast %18 : vector<8x1xi1> to vector<8x1xi1>
    %915 = vector.broadcast %914 : vector<8x1xi1> to vector<8x32xi1>
    %916 = vector.broadcast %cst_245 : f32 to vector<8x32xf32>
    %917 = arith.select %915, %907, %916 : vector<8x32xi1>, vector<8x32xf32>
    %918 = vector.extract_strided_slice %891 {offsets = [0, 0], sizes = [8, 96], strides = [1, 1]} : vector<8x128xf32> to vector<8x96xf32>
    %919 = arith.negf %918 : vector<8x96xf32>
    %920 = math.exp %919 : vector<8x96xf32>
    %cst_246 = arith.constant 1.000000e+00 : f32
    %921 = vector.broadcast %cst_246 : f32 to vector<8x96xf32>
    %922 = arith.addf %921, %920 : vector<8x96xf32>
    %923 = arith.divf %921, %922 : vector<8x96xf32>
    %924 = vector.extract_strided_slice %891 {offsets = [0, 96], sizes = [8, 32], strides = [1, 1]} : vector<8x128xf32> to vector<8x32xf32>
    %925 = math.tanh %924 : vector<8x32xf32>
    %926 = vector.extract_strided_slice %923 {offsets = [0, 0], sizes = [8, 32], strides = [1, 1]} : vector<8x96xf32> to vector<8x32xf32>
    %927 = vector.extract_strided_slice %923 {offsets = [0, 32], sizes = [8, 32], strides = [1, 1]} : vector<8x96xf32> to vector<8x32xf32>
    %928 = vector.extract_strided_slice %923 {offsets = [0, 64], sizes = [8, 32], strides = [1, 1]} : vector<8x96xf32> to vector<8x32xf32>
    %929 = arith.mulf %927, %879 : vector<8x32xf32>
    %930 = arith.mulf %926, %925 : vector<8x32xf32>
    %931 = arith.addf %929, %930 : vector<8x32xf32>
    %932 = math.tanh %931 : vector<8x32xf32>
    %933 = arith.mulf %928, %932 : vector<8x32xf32>
    %934 = vector.shape_cast %8 : vector<8x1xi1> to vector<8x1xi1>
    %935 = vector.broadcast %934 : vector<8x1xi1> to vector<8x32xi1>
    %936 = arith.select %935, %933, %876 : vector<8x32xi1>, vector<8x32xf32>
    %937 = vector.shape_cast %8 : vector<8x1xi1> to vector<8x1xi1>
    %938 = vector.broadcast %937 : vector<8x1xi1> to vector<8x32xi1>
    %939 = arith.select %938, %931, %879 : vector<8x32xi1>, vector<8x32xf32>
    %cst_247 = arith.constant 0.000000e+00 : f32
    %940 = vector.shape_cast %8 : vector<8x1xi1> to vector<8x1xi1>
    %941 = vector.broadcast %940 : vector<8x1xi1> to vector<8x32xi1>
    %942 = vector.broadcast %cst_247 : f32 to vector<8x32xf32>
    %943 = arith.select %941, %933, %942 : vector<8x32xi1>, vector<8x32xf32>
    %c48_248 = arith.constant 48 : index
    %c0_249 = arith.constant 0 : index
    %944 = vector.load %arg21[%c48_248, %c0_249] : memref<64x64xf32, #tpu.memory_space<vmem>>, vector<8x32xf32>
    tpu.vector_store %arg21[%c48_248, %c0_249], %917 {strides = array<i32>} : memref<64x64xf32, #tpu.memory_space<vmem>>, vector<8x32xf32>,
    %c8_250 = arith.constant 8 : index
    %c32_251 = arith.constant 32 : index
    %945 = vector.load %arg21[%c8_250, %c32_251] : memref<64x64xf32, #tpu.memory_space<vmem>>, vector<8x32xf32>
    tpu.vector_store %arg21[%c8_250, %c32_251], %943 {strides = array<i32>} : memref<64x64xf32, #tpu.memory_space<vmem>>, vector<8x32xf32>,
    %c56_252 = arith.constant 56 : index
    %c0_253 = arith.constant 0 : index
    %946 = vector.load %arg18[%c56_252, %c0_253] : memref<64x128xf32, #tpu.memory_space<vmem>>, vector<8x128xf32>
    %cst_254 = arith.constant dense<0.000000e+00> : vector<8x128xf32>
    %947 = tpu.matmul %910, %3, %cst_254 {dimension_numbers = #tpu.dot_dimension_numbers<[1], [0], [0], [1], [0, 0, 1, 1], [], []>} : vector<8x32xf32>, vector<32x128xf32>, vector<8x128xf32> -> vector<8x128xf32>
    %948 = arith.addf %946, %947 : vector<8x128xf32>
    %c0_255 = arith.constant 0 : index
    %c0_256 = arith.constant 0 : index
    %949 = vector.load %arg19[%c0_255, %c0_256] : memref<64x128xf32, #tpu.memory_space<vmem>>, vector<8x128xf32>
    %cst_257 = arith.constant dense<0.000000e+00> : vector<8x128xf32>
    %950 = tpu.matmul %936, %4, %cst_257 {dimension_numbers = #tpu.dot_dimension_numbers<[1], [0], [0], [1], [0, 0, 1, 1], [], []>} : vector<8x32xf32>, vector<32x128xf32>, vector<8x128xf32> -> vector<8x128xf32>
    %951 = arith.addf %949, %950 : vector<8x128xf32>
    %952 = vector.extract_strided_slice %948 {offsets = [0, 0], sizes = [8, 96], strides = [1, 1]} : vector<8x128xf32> to vector<8x96xf32>
    %953 = arith.negf %952 : vector<8x96xf32>
    %954 = math.exp %953 : vector<8x96xf32>
    %cst_258 = arith.constant 1.000000e+00 : f32
    %955 = vector.broadcast %cst_258 : f32 to vector<8x96xf32>
    %956 = arith.addf %955, %954 : vector<8x96xf32>
    %957 = arith.divf %955, %956 : vector<8x96xf32>
    %958 = vector.extract_strided_slice %948 {offsets = [0, 96], sizes = [8, 32], strides = [1, 1]} : vector<8x128xf32> to vector<8x32xf32>
    %959 = math.tanh %958 : vector<8x32xf32>
    %960 = vector.extract_strided_slice %957 {offsets = [0, 0], sizes = [8, 32], strides = [1, 1]} : vector<8x96xf32> to vector<8x32xf32>
    %961 = vector.extract_strided_slice %957 {offsets = [0, 32], sizes = [8, 32], strides = [1, 1]} : vector<8x96xf32> to vector<8x32xf32>
    %962 = vector.extract_strided_slice %957 {offsets = [0, 64], sizes = [8, 32], strides = [1, 1]} : vector<8x96xf32> to vector<8x32xf32>
    %963 = arith.mulf %961, %913 : vector<8x32xf32>
    %964 = arith.mulf %960, %959 : vector<8x32xf32>
    %965 = arith.addf %963, %964 : vector<8x32xf32>
    %966 = math.tanh %965 : vector<8x32xf32>
    %967 = arith.mulf %962, %966 : vector<8x32xf32>
    %cst_259 = arith.constant 0.000000e+00 : f32
    %968 = vector.shape_cast %20 : vector<8x1xi1> to vector<8x1xi1>
    %969 = vector.broadcast %968 : vector<8x1xi1> to vector<8x32xi1>
    %970 = vector.broadcast %cst_259 : f32 to vector<8x32xf32>
    %971 = arith.select %969, %967, %970 : vector<8x32xi1>, vector<8x32xf32>
    %972 = vector.extract_strided_slice %951 {offsets = [0, 0], sizes = [8, 96], strides = [1, 1]} : vector<8x128xf32> to vector<8x96xf32>
    %973 = arith.negf %972 : vector<8x96xf32>
    %974 = math.exp %973 : vector<8x96xf32>
    %cst_260 = arith.constant 1.000000e+00 : f32
    %975 = vector.broadcast %cst_260 : f32 to vector<8x96xf32>
    %976 = arith.addf %975, %974 : vector<8x96xf32>
    %977 = arith.divf %975, %976 : vector<8x96xf32>
    %978 = vector.extract_strided_slice %951 {offsets = [0, 96], sizes = [8, 32], strides = [1, 1]} : vector<8x128xf32> to vector<8x32xf32>
    %979 = math.tanh %978 : vector<8x32xf32>
    %980 = vector.extract_strided_slice %977 {offsets = [0, 0], sizes = [8, 32], strides = [1, 1]} : vector<8x96xf32> to vector<8x32xf32>
    %981 = vector.extract_strided_slice %977 {offsets = [0, 32], sizes = [8, 32], strides = [1, 1]} : vector<8x96xf32> to vector<8x32xf32>
    %982 = vector.extract_strided_slice %977 {offsets = [0, 64], sizes = [8, 32], strides = [1, 1]} : vector<8x96xf32> to vector<8x32xf32>
    %983 = arith.mulf %981, %939 : vector<8x32xf32>
    %984 = arith.mulf %980, %979 : vector<8x32xf32>
    %985 = arith.addf %983, %984 : vector<8x32xf32>
    %986 = math.tanh %985 : vector<8x32xf32>
    %987 = arith.mulf %982, %986 : vector<8x32xf32>
    %cst_261 = arith.constant 0.000000e+00 : f32
    %988 = vector.shape_cast %6 : vector<8x1xi1> to vector<8x1xi1>
    %989 = vector.broadcast %988 : vector<8x1xi1> to vector<8x32xi1>
    %990 = vector.broadcast %cst_261 : f32 to vector<8x32xf32>
    %991 = arith.select %989, %987, %990 : vector<8x32xi1>, vector<8x32xf32>
    %c56_262 = arith.constant 56 : index
    %c0_263 = arith.constant 0 : index
    %992 = vector.load %arg21[%c56_262, %c0_263] : memref<64x64xf32, #tpu.memory_space<vmem>>, vector<8x32xf32>
    tpu.vector_store %arg21[%c56_262, %c0_263], %971 {strides = array<i32>} : memref<64x64xf32, #tpu.memory_space<vmem>>, vector<8x32xf32>,
    %c0_264 = arith.constant 0 : index
    %c32_265 = arith.constant 32 : index
    %993 = vector.load %arg21[%c0_264, %c32_265] : memref<64x64xf32, #tpu.memory_space<vmem>>, vector<8x32xf32>
    tpu.vector_store %arg21[%c0_264, %c32_265], %991 {strides = array<i32>} : memref<64x64xf32, #tpu.memory_space<vmem>>, vector<8x32xf32>,
    %c0_266 = arith.constant 0 : index
    %c0_267 = arith.constant 0 : index
    %994 = vector.load %arg21[%c0_266, %c0_267] : memref<64x64xf32, #tpu.memory_space<vmem>>, vector<64x64xf32>
    %995 = arith.truncf %994 : vector<64x64xf32> to vector<64x64xbf16>
    %c0_268 = arith.constant 0 : index
    %c0_269 = arith.constant 0 : index
    %996 = vector.load %arg15[%c0_268, %c0_269] : memref<64x128xbf16, #tpu.memory_space<vmem>>, vector<64x128xbf16>
    %cst_270 = arith.constant dense<0.000000e+00> : vector<64x128xf32>
    %997 = tpu.matmul %995, %996, %cst_270 {dimension_numbers = #tpu.dot_dimension_numbers<[1], [0], [0], [1], [0, 0, 1, 1], [], []>} : vector<64x64xbf16>, vector<64x128xbf16>, vector<64x128xf32> -> vector<64x128xf32>
    %c0_271 = arith.constant 0 : index
    %c0_272 = arith.constant 0 : index
    %998 = vector.load %arg16[%c0_271, %c0_272] : memref<1x128xf32, #tpu.memory_space<vmem>>, vector<1x128xf32>
    %999 = vector.broadcast %998 : vector<1x128xf32> to vector<64x128xf32>
    %1000 = arith.addf %997, %999 : vector<64x128xf32>
    %1001 = vector.shape_cast %1000 : vector<64x128xf32> to vector<8x8x128xf32>
    %1002 = tpu.iota {dimensions = array<i32: 0>} : vector<8x8x128xi32>
    %1003 = tpu.iota {dimensions = array<i32: 2>} : vector<8x8x128xi32>
    %1004 = vector.shape_cast %0 : vector<8x1xi32> to vector<1x8x1xi32>
    %1005 = vector.broadcast %1004 : vector<1x8x1xi32> to vector<8x8x128xi32>
    %1006 = arith.cmpi slt, %1002, %1005 : vector<8x8x128xi32>
    %cst_273 = arith.constant 0.000000e+00 : f32
    %1007 = vector.broadcast %cst_273 : f32 to vector<8x8x128xf32>
    %1008 = arith.select %1006, %1001, %1007 : vector<8x8x128xi1>, vector<8x8x128xf32>
    %c8_i32 = arith.constant 8 : i32
    %1009 = vector.broadcast %c8_i32 : i32 to vector<8x8x128xi32>
    %1010 = arith.cmpi slt, %1003, %1009 : vector<8x8x128xi32>
    %cst_274 = arith.constant 0xFF800000 : f32
    %1011 = vector.broadcast %cst_274 : f32 to vector<8x8x128xf32>
    %1012 = arith.select %1010, %1008, %1011 : vector<8x8x128xi1>, vector<8x8x128xf32>
    %cst_275 = arith.constant dense<0xFF800000> : vector<8x8xf32>
    %1013 = vector.multi_reduction <maximumf>, %1012, %cst_275 [2] : vector<8x8x128xf32> to vector<8x8xf32>
    %1014 = vector.shape_cast %1013 : vector<8x8xf32> to vector<8x8x1xf32>
    %1015 = vector.broadcast %1014 : vector<8x8x1xf32> to vector<8x8x128xf32>
    %1016 = arith.subf %1012, %1015 : vector<8x8x128xf32>
    %1017 = math.exp %1016 : vector<8x8x128xf32>
    %cst_276 = arith.constant dense<0.000000e+00> : vector<8x8xf32>
    %1018 = vector.multi_reduction <add>, %1017, %cst_276 [2] : vector<8x8x128xf32> to vector<8x8xf32>
    %1019 = vector.shape_cast %1018 : vector<8x8xf32> to vector<8x8x1xf32>
    %1020 = vector.broadcast %1019 : vector<8x8x1xf32> to vector<8x8x128xf32>
    %1021 = arith.divf %1017, %1020 : vector<8x8x128xf32>
    %c0_277 = arith.constant 0 : index
    %c0_278 = arith.constant 0 : index
    %c0_279 = arith.constant 0 : index
    %1022 = vector.load %arg17[%c0_277, %c0_278, %c0_279] : memref<8x8x128xf32, #tpu.memory_space<vmem>>, vector<8x8x128xf32>
    tpu.vector_store %arg17[%c0_277, %c0_278, %c0_279], %1021 {strides = array<i32>} : memref<8x8x128xf32, #tpu.memory_space<vmem>>, vector<8x8x128xf32>,
    return
  }
  func.func @transform_0(%arg0: i32) -> (i32, i32, i32) {
    %c0_i32 = arith.constant 0 : i32
    %c0_i32_0 = arith.constant 0 : i32
    %c0_i32_1 = arith.constant 0 : i32
    return %c0_i32, %arg0, %c0_i32_0 : i32, i32, i32
  }
  func.func @transform_1(%arg0: i32) -> (i32, i32) {
    %c0_i32 = arith.constant 0 : i32
    %c0_i32_0 = arith.constant 0 : i32
    return %arg0, %c0_i32 : i32, i32
  }
  func.func @transform_2(%arg0: i32) -> (i32, i32) {
    %c0_i32 = arith.constant 0 : i32
    %c0_i32_0 = arith.constant 0 : i32
    %c0_i32_1 = arith.constant 0 : i32
    return %c0_i32, %c0_i32_0 : i32, i32
  }
  func.func @transform_3(%arg0: i32) -> (i32, i32) {
    %c0_i32 = arith.constant 0 : i32
    %c0_i32_0 = arith.constant 0 : i32
    %c0_i32_1 = arith.constant 0 : i32
    return %c0_i32, %c0_i32_0 : i32, i32
  }
  func.func @transform_4(%arg0: i32) -> (i32, i32) {
    %c0_i32 = arith.constant 0 : i32
    %c0_i32_0 = arith.constant 0 : i32
    %c0_i32_1 = arith.constant 0 : i32
    return %c0_i32, %c0_i32_0 : i32, i32
  }
  func.func @transform_5(%arg0: i32) -> (i32, i32) {
    %c0_i32 = arith.constant 0 : i32
    %c0_i32_0 = arith.constant 0 : i32
    %c0_i32_1 = arith.constant 0 : i32
    return %c0_i32, %c0_i32_0 : i32, i32
  }
  func.func @transform_6(%arg0: i32) -> (i32, i32) {
    %c0_i32 = arith.constant 0 : i32
    %c0_i32_0 = arith.constant 0 : i32
    %c0_i32_1 = arith.constant 0 : i32
    return %c0_i32, %c0_i32_0 : i32, i32
  }
  func.func @transform_7(%arg0: i32) -> (i32, i32) {
    %c0_i32 = arith.constant 0 : i32
    %c0_i32_0 = arith.constant 0 : i32
    %c0_i32_1 = arith.constant 0 : i32
    return %c0_i32, %c0_i32_0 : i32, i32
  }
  func.func @transform_8(%arg0: i32) -> (i32, i32) {
    %c0_i32 = arith.constant 0 : i32
    %c0_i32_0 = arith.constant 0 : i32
    %c0_i32_1 = arith.constant 0 : i32
    return %c0_i32, %c0_i32_0 : i32, i32
  }
  func.func @transform_9(%arg0: i32) -> (i32, i32) {
    %c0_i32 = arith.constant 0 : i32
    %c0_i32_0 = arith.constant 0 : i32
    %c0_i32_1 = arith.constant 0 : i32
    return %c0_i32, %c0_i32_0 : i32, i32
  }
  func.func @transform_10(%arg0: i32) -> (i32, i32) {
    %c0_i32 = arith.constant 0 : i32
    %c0_i32_0 = arith.constant 0 : i32
    %c0_i32_1 = arith.constant 0 : i32
    return %c0_i32, %c0_i32_0 : i32, i32
  }
  func.func @transform_11(%arg0: i32) -> (i32, i32) {
    %c0_i32 = arith.constant 0 : i32
    %c0_i32_0 = arith.constant 0 : i32
    %c0_i32_1 = arith.constant 0 : i32
    return %c0_i32, %c0_i32_0 : i32, i32
  }
  func.func @transform_12(%arg0: i32) -> (i32, i32) {
    %c0_i32 = arith.constant 0 : i32
    %c0_i32_0 = arith.constant 0 : i32
    %c0_i32_1 = arith.constant 0 : i32
    return %c0_i32, %c0_i32_0 : i32, i32
  }
  func.func @transform_13(%arg0: i32) -> (i32, i32) {
    %c0_i32 = arith.constant 0 : i32
    %c0_i32_0 = arith.constant 0 : i32
    %c0_i32_1 = arith.constant 0 : i32
    return %c0_i32, %c0_i32_0 : i32, i32
  }
  func.func @transform_14(%arg0: i32) -> (i32, i32) {
    %c0_i32 = arith.constant 0 : i32
    %c0_i32_0 = arith.constant 0 : i32
    %c0_i32_1 = arith.constant 0 : i32
    return %c0_i32, %c0_i32_0 : i32, i32
  }
  func.func @transform_15(%arg0: i32) -> (i32, i32) {
    %c0_i32 = arith.constant 0 : i32
    %c0_i32_0 = arith.constant 0 : i32
    %c0_i32_1 = arith.constant 0 : i32
    return %c0_i32, %c0_i32_0 : i32, i32
  }
  func.func @transform_16(%arg0: i32) -> (i32, i32, i32) {
    %c0_i32 = arith.constant 0 : i32
    %c0_i32_0 = arith.constant 0 : i32
    %c0_i32_1 = arith.constant 0 : i32
    return %c0_i32, %arg0, %c0_i32_0 : i32, i32, i32
  }
}

</mosaic_0001>

<llo_original>
// kernel: bilstm_tagger_forward.1
$region0: #{bilstm_tagger_forward.1}
  #allocation0 [shape = 'u32[]', space=smem, size = 0x4, offset = 0x4, fixed_abs, tag = 'smem constant byte address 0x4 - core index']
  #allocation1 [shape = 'u32[72,128]{1,0:T(1,128)}', space=vmem, size = 0x9000, scoped, tag = 'internal scratch']
  #allocation2 [shape = 'f32[64,128]{1,0:T(8,128)}', space=vmem, size = 0x8000, scoped, tag = 'scratch operand']
  #allocation3 [shape = 'f32[64,128]{1,0:T(8,128)}', space=vmem, size = 0x8000, scoped, tag = 'scratch operand']
  #allocation4 [shape = 'f32[64,64]{1,0:T(8,128)}', space=vmem, size = 0x8000, scoped, tag = 'scratch operand']
  #allocation5 [shape = 'f32[64,64]{1,0:T(8,128)}', space=vmem, size = 0x8000, scoped, tag = 'scratch operand']
  %s0 = inlined_call_operand.vmem [shape: f32[8,8,32], index: 0, kind: input, shape index: {}]
  %s1 = inlined_call_operand.vmem [shape: s32[8,1], index: 1, kind: input, shape index: {}]
  %s2 = inlined_call_operand.vmem [shape: bf16[32,128], index: 2, kind: input, shape index: {}]
  %s3 = inlined_call_operand.vmem [shape: f32[32,128], index: 3, kind: input, shape index: {}]
  %s4 = inlined_call_operand.vmem [shape: f32[1,128], index: 4, kind: input, shape index: {}]
  %s5 = inlined_call_operand.vmem [shape: bf16[32,128], index: 5, kind: input, shape index: {}]
  %s6 = inlined_call_operand.vmem [shape: f32[32,128], index: 6, kind: input, shape index: {}]
  %s7 = inlined_call_operand.vmem [shape: f32[1,128], index: 7, kind: input, shape index: {}]
  %s8 = inlined_call_operand.vmem [shape: bf16[64,128], index: 8, kind: input, shape index: {}]
  %s9 = inlined_call_operand.vmem [shape: f32[32,128], index: 9, kind: input, shape index: {}]
  %s10 = inlined_call_operand.vmem [shape: f32[1,128], index: 10, kind: input, shape index: {}]
  %s11 = inlined_call_operand.vmem [shape: bf16[64,128], index: 11, kind: input, shape index: {}]
  %s12 = inlined_call_operand.vmem [shape: f32[32,128], index: 12, kind: input, shape index: {}]
  %s13 = inlined_call_operand.vmem [shape: f32[1,128], index: 13, kind: input, shape index: {}]
  %s14 = inlined_call_operand.vmem [shape: bf16[64,128], index: 14, kind: input, shape index: {}]
  %s15 = inlined_call_operand.vmem [shape: f32[1,128], index: 15, kind: input, shape index: {}]
  %s16 = inlined_call_operand.vmem [shape: f32[8,8,128], index: 16, kind: output, shape index: {}]
  %s17 = sld [smem:[#allocation0]]
  $region74: #{bilstm_tagger_forward.1} parent=0
    _
  %s19 = ssub.s32 1, %s17
  %s20 = scalar_select 0, %s19, %s17
  // Predicated region
  $region2: #{bilstm_tagger_forward.1} parent=0 // pred_check
    _
  $region3: #{bilstm_tagger_forward.1} parent=0 // pred_check_branch
    %22 = sbr.rel (0) target = $region5
  $region4: #{bilstm_tagger_forward.1} parent=0 // pred_region
    _
  $region5: #{bilstm_tagger_forward.1} parent=0 // pred_fallthru
    _
  // Predicated region
  $region6: #{bilstm_tagger_forward.1} parent=0 // pred_check
    _
  $region7: #{bilstm_tagger_forward.1} parent=0 // pred_check_branch
    %24 = sbr.rel (0) target = $region9
  $region8: #{bilstm_tagger_forward.1} parent=0 // pred_region
    _
  $region9: #{bilstm_tagger_forward.1} parent=0 // pred_fallthru
    _
  // Predicated region
  $region10: #{bilstm_tagger_forward.1} parent=0 // pred_check
    _
  $region11: #{bilstm_tagger_forward.1} parent=0 // pred_check_branch
    %26 = sbr.rel (0) target = $region13
  $region12: #{bilstm_tagger_forward.1} parent=0 // pred_region
    _
  $region13: #{bilstm_tagger_forward.1} parent=0 // pred_fallthru
    _
  // Predicated region
  $region14: #{bilstm_tagger_forward.1} parent=0 // pred_check
    _
  $region15: #{bilstm_tagger_forward.1} parent=0 // pred_check_branch
    %28 = sbr.rel (0) target = $region17
  $region16: #{bilstm_tagger_forward.1} parent=0 // pred_region
    _
  $region17: #{bilstm_tagger_forward.1} parent=0 // pred_fallthru
    _
  // Predicated region
  $region18: #{bilstm_tagger_forward.1} parent=0 // pred_check
    _
  $region19: #{bilstm_tagger_forward.1} parent=0 // pred_check_branch
    %30 = sbr.rel (0) target = $region21
  $region20: #{bilstm_tagger_forward.1} parent=0 // pred_region
    _
  $region21: #{bilstm_tagger_forward.1} parent=0 // pred_fallthru
    _
  // Predicated region
  $region22: #{bilstm_tagger_forward.1} parent=0 // pred_check
    _
  $region23: #{bilstm_tagger_forward.1} parent=0 // pred_check_branch
    %32 = sbr.rel (0) target = $region25
  $region24: #{bilstm_tagger_forward.1} parent=0 // pred_region
    _
  $region25: #{bilstm_tagger_forward.1} parent=0 // pred_fallthru
    _
  // Predicated region
  $region26: #{bilstm_tagger_forward.1} parent=0 // pred_check
    _
  $region27: #{bilstm_tagger_forward.1} parent=0 // pred_check_branch
    %34 = sbr.rel (0) target = $region29
  $region28: #{bilstm_tagger_forward.1} parent=0 // pred_region
    _
  $region29: #{bilstm_tagger_forward.1} parent=0 // pred_fallthru
    _
  // Predicated region
  $region30: #{bilstm_tagger_forward.1} parent=0 // pred_check
    _
  $region31: #{bilstm_tagger_forward.1} parent=0 // pred_check_branch
    %36 = sbr.rel (0) target = $region33
  $region32: #{bilstm_tagger_forward.1} parent=0 // pred_region
    _
  $region33: #{bilstm_tagger_forward.1} parent=0 // pred_fallthru
    _
  // Predicated region
  $region34: #{bilstm_tagger_forward.1} parent=0 // pred_check
    _
  $region35: #{bilstm_tagger_forward.1} parent=0 // pred_check_branch
    %38 = sbr.rel (0) target = $region37
  $region36: #{bilstm_tagger_forward.1} parent=0 // pred_region
    _
  $region37: #{bilstm_tagger_forward.1} parent=0 // pred_fallthru
    _
  // Predicated region
  $region38: #{bilstm_tagger_forward.1} parent=0 // pred_check
    _
  $region39: #{bilstm_tagger_forward.1} parent=0 // pred_check_branch
    %40 = sbr.rel (0) target = $region41
  $region40: #{bilstm_tagger_forward.1} parent=0 // pred_region
    _
  $region41: #{bilstm_tagger_forward.1} parent=0 // pred_fallthru
    _
  // Predicated region
  $region42: #{bilstm_tagger_forward.1} parent=0 // pred_check
    _
  $region43: #{bilstm_tagger_forward.1} parent=0 // pred_check_branch
    %42 = sbr.rel (0) target = $region45
  $region44: #{bilstm_tagger_forward.1} parent=0 // pred_region
    _
  $region45: #{bilstm_tagger_forward.1} parent=0 // pred_fallthru
    _
  // Predicated region
  $region46: #{bilstm_tagger_forward.1} parent=0 // pred_check
    _
  $region47: #{bilstm_tagger_forward.1} parent=0 // pred_check_branch
    %44 = sbr.rel (0) target = $region49
  $region48: #{bilstm_tagger_forward.1} parent=0 // pred_region
    _
  $region49: #{bilstm_tagger_forward.1} parent=0 // pred_fallthru
    _
  // Predicated region
  $region50: #{bilstm_tagger_forward.1} parent=0 // pred_check
    _
  $region51: #{bilstm_tagger_forward.1} parent=0 // pred_check_branch
    %46 = sbr.rel (0) target = $region53
  $region52: #{bilstm_tagger_forward.1} parent=0 // pred_region
    _
  $region53: #{bilstm_tagger_forward.1} parent=0 // pred_fallthru
    _
  // Predicated region
  $region54: #{bilstm_tagger_forward.1} parent=0 // pred_check
    _
  $region55: #{bilstm_tagger_forward.1} parent=0 // pred_check_branch
    %48 = sbr.rel (0) target = $region57
  $region56: #{bilstm_tagger_forward.1} parent=0 // pred_region
    _
  $region57: #{bilstm_tagger_forward.1} parent=0 // pred_fallthru
    _
  // Predicated region
  $region58: #{bilstm_tagger_forward.1} parent=0 // pred_check
    _
  $region59: #{bilstm_tagger_forward.1} parent=0 // pred_check_branch
    %50 = sbr.rel (0) target = $region61
  $region60: #{bilstm_tagger_forward.1} parent=0 // pred_region
    _
  $region61: #{bilstm_tagger_forward.1} parent=0 // pred_fallthru
    _
  // Predicated region
  $region62: #{bilstm_tagger_forward.1} parent=0 // pred_check
    _
  $region63: #{bilstm_tagger_forward.1} parent=0 // pred_check_branch
    %52 = sbr.rel (0) target = $region65
  $region64: #{bilstm_tagger_forward.1} parent=0 // pred_region
    _
  $region65: #{bilstm_tagger_forward.1} parent=0 // pred_fallthru
    _
  %v54 = vld [vmem:[%s1] sm:$0xff]
  %v55 = vld [vmem:[%s3] sm:$0xff]
  %v56 = vld [vmem:[%s3 + $0x8] sm:$0xff]
  %v57 = vld [vmem:[%s3 + $0x10] sm:$0xff]
  %v58 = vld [vmem:[%s3 + $0x18] sm:$0xff]
  %v59 = vld [vmem:[%s6] sm:$0xff]
  %v60 = vld [vmem:[%s6 + $0x8] sm:$0xff]
  %v61 = vld [vmem:[%s6 + $0x10] sm:$0xff]
  %v62 = vld [vmem:[%s6 + $0x18] sm:$0xff]
  %v63 = vld [vmem:[%s9] sm:$0xff]
  %v64 = vld [vmem:[%s9 + $0x8] sm:$0xff]
  %v65 = vld [vmem:[%s9 + $0x10] sm:$0xff]
  %v66 = vld [vmem:[%s9 + $0x18] sm:$0xff]
  %v67 = vld [vmem:[%s12] sm:$0xff]
  %v68 = vld [vmem:[%s12 + $0x8] sm:$0xff]
  %v69 = vld [vmem:[%s12 + $0x10] sm:$0xff]
  %v70 = vld [vmem:[%s12 + $0x18] sm:$0xff]
  %vm71 = vcmp.gt.s32.totalorder %v54, 0
  %vm72 = vcmp.gt.s32.totalorder %v54, 1
  %vm73 = vcmp.gt.s32.totalorder %v54, 2
  %vm74 = vcmp.gt.s32.totalorder %v54, 3
  %vm75 = vcmp.gt.s32.totalorder %v54, 4
  %vm76 = vcmp.gt.s32.totalorder %v54, 5
  %vm77 = vcmp.gt.s32.totalorder %v54, 6
  %vm78 = vcmp.gt.s32.totalorder %v54, 7
  %v79 = vld [vmem:[%s0] sm:$0xff]
  %v80 = vld [vmem:[%s0 + $0x8] sm:$0xff]
  %v81 = vld [vmem:[%s0 + $0x10] sm:$0xff]
  %v82 = vld [vmem:[%s0 + $0x18] sm:$0xff]
  %v83 = vld [vmem:[%s0 + $0x20] sm:$0xff]
  %v84 = vld [vmem:[%s0 + $0x28] sm:$0xff]
  %v85 = vld [vmem:[%s0 + $0x30] sm:$0xff]
  %v86 = vld [vmem:[%s0 + $0x38] sm:$0xff]
  %v87 = vpack.c.bf16 %v80, %v79
  %v88 = vpack.c.bf16 %v82, %v81
  %v89 = vpack.c.bf16 %v84, %v83
  %v90 = vpack.c.bf16 %v86, %v85
  %v91 = vld [vmem:[%s2] sm:$0xf]
  %v92 = vld [vmem:[%s2 + $0x4] sm:$0xf]
  %v93 = vld [vmem:[%s2 + $0x8] sm:$0xf]
  %v94 = vld [vmem:[%s2 + $0xc] sm:$0xf]
  %v95 = vld [vmem:[%s4] sm:$0x1]
  %v97 = vperm.slane %v95, 0
  %v103 = vunpack.c.l.b16 %v91
  %v104 = vunpack.c.l.b16 %v92
  %v105 = vunpack.c.l.b16 %v93
  %v106 = vunpack.c.l.b16 %v94
  %v107 = vpack.c.b16 %v104, %v103
  %v108 = vpack.c.b16 %v106, %v105
  %vm111 = vcmask 261120
  %v113 = vsel %vm111, %v87, 0
  %v116 = vsel %vm111, %v88, 0
  %v119 = vsel %vm111, %v89, 0
  %v122 = vsel %vm111, %v90, 0
  %124 = vmatpush.bf16.msra.mxu0 0
  %125 = vmatpush.bf16.msra.mxu0 0
  %126 = vmatpush.bf16.msra.mxu0 0
  %127 = vmatpush.bf16.msra.mxu0 0
  %128 = vmatpush.bf16.msra.mxu0 0
  %129 = vmatpush.bf16.msra.mxu0 0
  %130 = vmatpush.bf16.msra.mxu0 %v108
  %131 = vmatpush.bf16.msra.mxu0 %v107
  %132 = vmatmul.bf16.gmra.mxu0 %v113
  %v133 = vpop.f32.mrf.mxu0
  %v134 = vadd.f32 %v97, %v133
  %v135 = vpop.f32.mrf.mxu0
  %v136 = vadd.f32 %v97, %v135
  %137 = vmatmul.bf16.gmra.mxu0 %v116
  %v138 = vpop.f32.mrf.mxu0
  %v139 = vadd.f32 %v97, %v138
  %v140 = vpop.f32.mrf.mxu0
  %v141 = vadd.f32 %v97, %v140
  %142 = vmatmul.bf16.gmra.mxu0 %v119
  %v143 = vpop.f32.mrf.mxu0
  %v144 = vadd.f32 %v97, %v143
  %v145 = vpop.f32.mrf.mxu0
  %v146 = vadd.f32 %v97, %v145
  %147 = vmatmul.bf16.gmra.mxu0 %v122
  %v148 = vpop.f32.mrf.mxu0
  %v149 = vadd.f32 %v97, %v148
  %v150 = vpop.f32.mrf.mxu0
  %v151 = vadd.f32 %v97, %v150
  %152 = vdwg.mxu0
  %153 = vst [vmem:[#allocation2] sm:$0xff] %v134
  %154 = vst [vmem:[#allocation2 + $0x8] sm:$0xff] %v136
  %155 = vst [vmem:[#allocation2 + $0x10] sm:$0xff] %v139
  %156 = vst [vmem:[#allocation2 + $0x18] sm:$0xff] %v141
  %157 = vst [vmem:[#allocation2 + $0x20] sm:$0xff] %v144
  %158 = vst [vmem:[#allocation2 + $0x28] sm:$0xff] %v146
  %159 = vst [vmem:[#allocation2 + $0x30] sm:$0xff] %v149
  %160 = vst [vmem:[#allocation2 + $0x38] sm:$0xff] %v151
  %v161 = vld [vmem:[%s5] sm:$0xf]
  %v162 = vld [vmem:[%s5 + $0x4] sm:$0xf]
  %v163 = vld [vmem:[%s5 + $0x8] sm:$0xf]
  %v164 = vld [vmem:[%s5 + $0xc] sm:$0xf]
  %v165 = vld [vmem:[%s7] sm:$0x1]
  %v167 = vperm.slane %v165, 0
  %v173 = vunpack.c.l.b16 %v161
  %v174 = vunpack.c.l.b16 %v162
  %v175 = vunpack.c.l.b16 %v163
  %v176 = vunpack.c.l.b16 %v164
  %v177 = vpack.c.b16 %v174, %v173
  %v178 = vpack.c.b16 %v176, %v175
  %181 = vmatpush.bf16.msra.mxu0 0
  %182 = vmatpush.bf16.msra.mxu0 0
  %183 = vmatpush.bf16.msra.mxu0 0
  %184 = vmatpush.bf16.msra.mxu0 0
  %185 = vmatpush.bf16.msra.mxu0 0
  %186 = vmatpush.bf16.msra.mxu0 0
  %187 = vmatpush.bf16.msra.mxu0 %v178
  %188 = vmatpush.bf16.msra.mxu0 %v177
  %189 = vmatmul.bf16.gmra.mxu0 %v113
  %v190 = vpop.f32.mrf.mxu0
  %v191 = vadd.f32 %v167, %v190
  %v192 = vpop.f32.mrf.mxu0
  %v193 = vadd.f32 %v167, %v192
  %194 = vmatmul.bf16.gmra.mxu0 %v116
  %v195 = vpop.f32.mrf.mxu0
  %v196 = vadd.f32 %v167, %v195
  %v197 = vpop.f32.mrf.mxu0
  %v198 = vadd.f32 %v167, %v197
  %199 = vmatmul.bf16.gmra.mxu0 %v119
  %v200 = vpop.f32.mrf.mxu0
  %v201 = vadd.f32 %v167, %v200
  %v202 = vpop.f32.mrf.mxu0
  %v203 = vadd.f32 %v167, %v202
  %204 = vmatmul.bf16.gmra.mxu0 %v122
  %v205 = vpop.f32.mrf.mxu0
  %v206 = vadd.f32 %v167, %v205
  %v207 = vpop.f32.mrf.mxu0
  %v208 = vadd.f32 %v167, %v207
  %209 = vdwg.mxu0
  %210 = vst [vmem:[#allocation3] sm:$0xff] %v191
  %211 = vst [vmem:[#allocation3 + $0x8] sm:$0xff] %v193
  %212 = vst [vmem:[#allocation3 + $0x10] sm:$0xff] %v196
  %213 = vst [vmem:[#allocation3 + $0x18] sm:$0xff] %v198
  %214 = vst [vmem:[#allocation3 + $0x20] sm:$0xff] %v201
  %215 = vst [vmem:[#allocation3 + $0x28] sm:$0xff] %v203
  %216 = vst [vmem:[#allocation3 + $0x30] sm:$0xff] %v206
  %217 = vst [vmem:[#allocation3 + $0x38] sm:$0xff] %v208
  %v218 = vld [vmem:[#allocation2] sm:$0xff]
  %v220 = vsel %vm111, 0.0, 0
  %222 = vmatpush.msra.mxu0 0.0
  %223 = vmatpush.msra.mxu0 0.0
  %224 = vmatpush.msra.mxu0 0.0
  %225 = vmatpush.msra.mxu0 0.0
  %226 = vmatpush.msra.mxu0 0.0
  %227 = vmatpush.msra.mxu0 0.0
  %228 = vmatpush.msra.mxu0 0.0
  %229 = vmatpush.msra.mxu0 0.0
  %230 = vmatpush.msra.mxu0 0.0
  %231 = vmatpush.msra.mxu0 0.0
  %232 = vmatpush.msra.mxu0 0.0
  %233 = vmatpush.msra.mxu0 0.0
  %234 = vmatpush.msra.mxu0 %v58
  %235 = vmatpush.msra.mxu0 %v57
  %236 = vmatpush.msra.mxu0 %v56
  %237 = vmatpush.msra.mxu0 %v55
  %238 = vmatmul.f32.gmra.mxu0 %v220
  %v239 = vpop.f32.mrf.mxu0
  %v240 = vadd.f32 0.0, %v239
  %241 = vdwg.mxu0
  %v242 = vadd.f32 %v218, %v240
  %v243 = vld [vmem:[#allocation3 + $0x38] sm:$0xff]
  %244 = vmatpush.msra.mxu0 0.0
  %245 = vmatpush.msra.mxu0 0.0
  %246 = vmatpush.msra.mxu0 0.0
  %247 = vmatpush.msra.mxu0 0.0
  %248 = vmatpush.msra.mxu0 0.0
  %249 = vmatpush.msra.mxu0 0.0
  %250 = vmatpush.msra.mxu0 0.0
  %251 = vmatpush.msra.mxu0 0.0
  %252 = vmatpush.msra.mxu0 0.0
  %253 = vmatpush.msra.mxu0 0.0
  %254 = vmatpush.msra.mxu0 0.0
  %255 = vmatpush.msra.mxu0 0.0
  %256 = vmatpush.msra.mxu0 %v62
  %257 = vmatpush.msra.mxu0 %v61
  %258 = vmatpush.msra.mxu0 %v60
  %259 = vmatpush.msra.mxu0 %v59
  %260 = vmatmul.f32.gmra.mxu0 %v220
  %v261 = vpop.f32.mrf.mxu0
  %v262 = vadd.f32 0.0, %v261
  %263 = vdwg.mxu0
  %v264 = vadd.f32 %v243, %v262
  %v265 = vxor.u32 %v242, 2147483648
  %v266 = vmul.f32 %v265, 1.442695
  %v267 = vpow.pop %v266
  %v268 = vadd.f32 %v267, 1.0
  %v269 = vrcp.pop %v268
  %v270 = vmul.f32 %v268, %v269
  %v271 = vsub.f32 1.0, %v270
  %v272 = vmul.f32 %v269, %v271
  %v273 = vadd.f32 %v269, %v272
  %vm274 = vweird.f32 %v268
  %vm275 = vweird.f32 %v269
  %vm276 = vmor %vm274, %vm275
  %v277 = vsel %vm276, %v269, %v273
  %v278 = vand.u32 2147483647, %v268
  %vm279 = vcmp.eq.f32.partialorder %v278, 8.507059e+37
  %v280 = vand.u32 %v268, 2147483648
  %v281 = vor.u32 1.1754944e-38, %v280
  %v282 = vsel %vm279, %v281, %v277
  %v283 = vmul.f32 1.0, %v282
  %v284 = vtanh.pop %v242
  %v285 = vmul.f32 %v283, 0.0
  %287 = vrot.lane.b32.xlu0 %v284, 32
  %v288 = vpop.permute.xlu0 %287
  %v290 = vmul.f32 %v283, %v288
  %292 = vrot.lane.b32.xlu0 %v290, 32
  %v293 = vpop.permute.xlu0 %292
  %v295 = vadd.f32 %v285, %v293
  %v296 = vtanh.pop %v295
  %298 = vrot.lane.b32.xlu0 %v296, 32
  %v299 = vpop.permute.xlu0 %298
  %v301 = vmul.f32 %v283, %v299
  %v302 = vsel %vm71, 1, 0
  %303 = vset.pattern.permute.xlu0 0
  %304 = vperm.xlu0 %303, %v302
  %v305 = vpop.permute.xlu0 %304
  %vm306 = vcmp.eq.s32.totalorder %v305, 1
  %v307 = vsel %vm306, %v301, 0.0
  %v308 = vsel %vm306, %v295, 0.0
  %v309 = vxor.u32 %v264, 2147483648
  %v310 = vmul.f32 %v309, 1.442695
  %v311 = vpow.pop %v310
  %v312 = vadd.f32 %v311, 1.0
  %v313 = vrcp.pop %v312
  %v314 = vmul.f32 %v312, %v313
  %v315 = vsub.f32 1.0, %v314
  %v316 = vmul.f32 %v313, %v315
  %v317 = vadd.f32 %v313, %v316
  %vm318 = vweird.f32 %v312
  %vm319 = vweird.f32 %v313
  %vm320 = vmor %vm318, %vm319
  %v321 = vsel %vm320, %v313, %v317
  %v322 = vand.u32 2147483647, %v312
  %vm323 = vcmp.eq.f32.partialorder %v322, 8.507059e+37
  %v324 = vand.u32 %v312, 2147483648
  %v325 = vor.u32 1.1754944e-38, %v324
  %v326 = vsel %vm323, %v325, %v321
  %v327 = vmul.f32 1.0, %v326
  %v328 = vtanh.pop %v264
  %v329 = vmul.f32 %v327, 0.0
  %331 = vrot.lane.b32.xlu0 %v328, 32
  %v332 = vpop.permute.xlu0 %331
  %v334 = vmul.f32 %v327, %v332
  %336 = vrot.lane.b32.xlu0 %v334, 32
  %v337 = vpop.permute.xlu0 %336
  %v339 = vadd.f32 %v329, %v337
  %v340 = vtanh.pop %v339
  %342 = vrot.lane.b32.xlu0 %v340, 32
  %v343 = vpop.permute.xlu0 %342
  %v345 = vmul.f32 %v327, %v343
  %v346 = vsel %vm78, 1, 0
  %347 = vset.pattern.permute.xlu0 0
  %348 = vperm.xlu0 %347, %v346
  %v349 = vpop.permute.xlu0 %348
  %vm350 = vcmp.eq.s32.totalorder %v349, 1
  %v351 = vsel %vm350, %v345, 0.0
  %v352 = vsel %vm350, %v339, 0.0
  %354 = vrot.lane.b32.xlu0 %v307, 64
  %v355 = vpop.permute.xlu0 %354
  %357 = vst.msk [vmem:[#allocation4] sm:$0xff] %vm111, %v355
  %359 = vrot.lane.b32.xlu0 %v351, 96
  %v360 = vpop.permute.xlu0 %359
  %vm362 = vcmask 523520
  %363 = vst.msk [vmem:[#allocation4 + $0x38] sm:$0xff] %vm362, %v360
  %v364 = vld [vmem:[#allocation2 + $0x8] sm:$0xff]
  %v365 = vsel %vm111, %v355, 0
  %367 = vmatpush.msra.mxu0 0.0
  %368 = vmatpush.msra.mxu0 0.0
  %369 = vmatpush.msra.mxu0 0.0
  %370 = vmatpush.msra.mxu0 0.0
  %371 = vmatpush.msra.mxu0 0.0
  %372 = vmatpush.msra.mxu0 0.0
  %373 = vmatpush.msra.mxu0 0.0
  %374 = vmatpush.msra.mxu0 0.0
  %375 = vmatpush.msra.mxu0 0.0
  %376 = vmatpush.msra.mxu0 0.0
  %377 = vmatpush.msra.mxu0 0.0
  %378 = vmatpush.msra.mxu0 0.0
  %379 = vmatpush.msra.mxu0 %v58
  %380 = vmatpush.msra.mxu0 %v57
  %381 = vmatpush.msra.mxu0 %v56
  %382 = vmatpush.msra.mxu0 %v55
  %383 = vmatmul.f32.gmra.mxu0 %v365
  %v384 = vpop.f32.mrf.mxu0
  %v385 = vadd.f32 0.0, %v384
  %386 = vdwg.mxu0
  %v387 = vadd.f32 %v364, %v385
  %v388 = vld [vmem:[#allocation3 + $0x30] sm:$0xff]
  %389 = vrot.lane.b32.xlu0 %v351, 64
  %v390 = vpop.permute.xlu0 %389
  %v391 = vsel %vm111, %v390, 0
  %393 = vmatpush.msra.mxu0 0.0
  %394 = vmatpush.msra.mxu0 0.0
  %395 = vmatpush.msra.mxu0 0.0
  %396 = vmatpush.msra.mxu0 0.0
  %397 = vmatpush.msra.mxu0 0.0
  %398 = vmatpush.msra.mxu0 0.0
  %399 = vmatpush.msra.mxu0 0.0
  %400 = vmatpush.msra.mxu0 0.0
  %401 = vmatpush.msra.mxu0 0.0
  %402 = vmatpush.msra.mxu0 0.0
  %403 = vmatpush.msra.mxu0 0.0
  %404 = vmatpush.msra.mxu0 0.0
  %405 = vmatpush.msra.mxu0 %v62
  %406 = vmatpush.msra.mxu0 %v61
  %407 = vmatpush.msra.mxu0 %v60
  %408 = vmatpush.msra.mxu0 %v59
  %409 = vmatmul.f32.gmra.mxu0 %v391
  %v410 = vpop.f32.mrf.mxu0
  %v411 = vadd.f32 0.0, %v410
  %412 = vdwg.mxu0
  %v413 = vadd.f32 %v388, %v411
  %v414 = vxor.u32 %v387, 2147483648
  %v415 = vmul.f32 %v414, 1.442695
  %v416 = vpow.pop %v415
  %v417 = vadd.f32 %v416, 1.0
  %v418 = vrcp.pop %v417
  %v419 = vmul.f32 %v417, %v418
  %v420 = vsub.f32 1.0, %v419
  %v421 = vmul.f32 %v418, %v420
  %v422 = vadd.f32 %v418, %v421
  %vm423 = vweird.f32 %v417
  %vm424 = vweird.f32 %v418
  %vm425 = vmor %vm423, %vm424
  %v426 = vsel %vm425, %v418, %v422
  %v427 = vand.u32 2147483647, %v417
  %vm428 = vcmp.eq.f32.partialorder %v427, 8.507059e+37
  %v429 = vand.u32 %v417, 2147483648
  %v430 = vor.u32 1.1754944e-38, %v429
  %v431 = vsel %vm428, %v430, %v426
  %v432 = vmul.f32 1.0, %v431
  %v433 = vtanh.pop %v387
  %v434 = vmul.f32 %v432, %v308
  %436 = vrot.lane.b32.xlu0 %v433, 32
  %v437 = vpop.permute.xlu0 %436
  %v439 = vmul.f32 %v432, %v437
  %441 = vrot.lane.b32.xlu0 %v439, 32
  %v442 = vpop.permute.xlu0 %441
  %v444 = vadd.f32 %v434, %v442
  %v445 = vtanh.pop %v444
  %447 = vrot.lane.b32.xlu0 %v445, 32
  %v448 = vpop.permute.xlu0 %447
  %v450 = vmul.f32 %v432, %v448
  %v451 = vsel %vm72, 1, 0
  %452 = vset.pattern.permute.xlu0 0
  %453 = vperm.xlu0 %452, %v451
  %v454 = vpop.permute.xlu0 %453
  %vm455 = vcmp.eq.s32.totalorder %v454, 1
  %v456 = vsel %vm455, %v450, %v307
  %v457 = vsel %vm455, %v444, %v308
  %v458 = vsel %vm455, %v450, 0.0
  %v459 = vxor.u32 %v413, 2147483648
  %v460 = vmul.f32 %v459, 1.442695
  %v461 = vpow.pop %v460
  %v462 = vadd.f32 %v461, 1.0
  %v463 = vrcp.pop %v462
  %v464 = vmul.f32 %v462, %v463
  %v465 = vsub.f32 1.0, %v464
  %v466 = vmul.f32 %v463, %v465
  %v467 = vadd.f32 %v463, %v466
  %vm468 = vweird.f32 %v462
  %vm469 = vweird.f32 %v463
  %vm470 = vmor %vm468, %vm469
  %v471 = vsel %vm470, %v463, %v467
  %v472 = vand.u32 2147483647, %v462
  %vm473 = vcmp.eq.f32.partialorder %v472, 8.507059e+37
  %v474 = vand.u32 %v462, 2147483648
  %v475 = vor.u32 1.1754944e-38, %v474
  %v476 = vsel %vm473, %v475, %v471
  %v477 = vmul.f32 1.0, %v476
  %v478 = vtanh.pop %v413
  %v479 = vmul.f32 %v477, %v352
  %481 = vrot.lane.b32.xlu0 %v478, 32
  %v482 = vpop.permute.xlu0 %481
  %v484 = vmul.f32 %v477, %v482
  %486 = vrot.lane.b32.xlu0 %v484, 32
  %v487 = vpop.permute.xlu0 %486
  %v489 = vadd.f32 %v479, %v487
  %v490 = vtanh.pop %v489
  %492 = vrot.lane.b32.xlu0 %v490, 32
  %v493 = vpop.permute.xlu0 %492
  %v495 = vmul.f32 %v477, %v493
  %v496 = vsel %vm77, 1, 0
  %497 = vset.pattern.permute.xlu0 0
  %498 = vperm.xlu0 %497, %v496
  %v499 = vpop.permute.xlu0 %498
  %vm500 = vcmp.eq.s32.totalorder %v499, 1
  %v501 = vsel %vm500, %v495, %v351
  %v502 = vsel %vm500, %v489, %v352
  %v503 = vsel %vm500, %v495, 0.0
  %505 = vrot.lane.b32.xlu0 %v458, 64
  %v506 = vpop.permute.xlu0 %505
  %508 = vst.msk [vmem:[#allocation4 + $0x8] sm:$0xff] %vm111, %v506
  %510 = vrot.lane.b32.xlu0 %v503, 96
  %v511 = vpop.permute.xlu0 %510
  %513 = vst.msk [vmem:[#allocation4 + $0x30] sm:$0xff] %vm362, %v511
  %v514 = vld [vmem:[#allocation2 + $0x10] sm:$0xff]
  %516 = vrot.lane.b32.xlu0 %v456, 64
  %v517 = vpop.permute.xlu0 %516
  %v518 = vsel %vm111, %v517, 0
  %520 = vmatpush.msra.mxu0 0.0
  %521 = vmatpush.msra.mxu0 0.0
  %522 = vmatpush.msra.mxu0 0.0
  %523 = vmatpush.msra.mxu0 0.0
  %524 = vmatpush.msra.mxu0 0.0
  %525 = vmatpush.msra.mxu0 0.0
  %526 = vmatpush.msra.mxu0 0.0
  %527 = vmatpush.msra.mxu0 0.0
  %528 = vmatpush.msra.mxu0 0.0
  %529 = vmatpush.msra.mxu0 0.0
  %530 = vmatpush.msra.mxu0 0.0
  %531 = vmatpush.msra.mxu0 0.0
  %532 = vmatpush.msra.mxu0 %v58
  %533 = vmatpush.msra.mxu0 %v57
  %534 = vmatpush.msra.mxu0 %v56
  %535 = vmatpush.msra.mxu0 %v55
  %536 = vmatmul.f32.gmra.mxu0 %v518
  %v537 = vpop.f32.mrf.mxu0
  %v538 = vadd.f32 0.0, %v537
  %539 = vdwg.mxu0
  %v540 = vadd.f32 %v514, %v538
  %v541 = vld [vmem:[#allocation3 + $0x28] sm:$0xff]
  %543 = vrot.lane.b32.xlu0 %v501, 64
  %v544 = vpop.permute.xlu0 %543
  %v545 = vsel %vm111, %v544, 0
  %547 = vmatpush.msra.mxu0 0.0
  %548 = vmatpush.msra.mxu0 0.0
  %549 = vmatpush.msra.mxu0 0.0
  %550 = vmatpush.msra.mxu0 0.0
  %551 = vmatpush.msra.mxu0 0.0
  %552 = vmatpush.msra.mxu0 0.0
  %553 = vmatpush.msra.mxu0 0.0
  %554 = vmatpush.msra.mxu0 0.0
  %555 = vmatpush.msra.mxu0 0.0
  %556 = vmatpush.msra.mxu0 0.0
  %557 = vmatpush.msra.mxu0 0.0
  %558 = vmatpush.msra.mxu0 0.0
  %559 = vmatpush.msra.mxu0 %v62
  %560 = vmatpush.msra.mxu0 %v61
  %561 = vmatpush.msra.mxu0 %v60
  %562 = vmatpush.msra.mxu0 %v59
  %563 = vmatmul.f32.gmra.mxu0 %v545
  %v564 = vpop.f32.mrf.mxu0
  %v565 = vadd.f32 0.0, %v564
  %566 = vdwg.mxu0
  %v567 = vadd.f32 %v541, %v565
  %v568 = vxor.u32 %v540, 2147483648
  %v569 = vmul.f32 %v568, 1.442695
  %v570 = vpow.pop %v569
  %v571 = vadd.f32 %v570, 1.0
  %v572 = vrcp.pop %v571
  %v573 = vmul.f32 %v571, %v572
  %v574 = vsub.f32 1.0, %v573
  %v575 = vmul.f32 %v572, %v574
  %v576 = vadd.f32 %v572, %v575
  %vm577 = vweird.f32 %v571
  %vm578 = vweird.f32 %v572
  %vm579 = vmor %vm577, %vm578
  %v580 = vsel %vm579, %v572, %v576
  %v581 = vand.u32 2147483647, %v571
  %vm582 = vcmp.eq.f32.partialorder %v581, 8.507059e+37
  %v583 = vand.u32 %v571, 2147483648
  %v584 = vor.u32 1.1754944e-38, %v583
  %v585 = vsel %vm582, %v584, %v580
  %v586 = vmul.f32 1.0, %v585
  %v587 = vtanh.pop %v540
  %v588 = vmul.f32 %v586, %v457
  %590 = vrot.lane.b32.xlu0 %v587, 32
  %v591 = vpop.permute.xlu0 %590
  %v593 = vmul.f32 %v586, %v591
  %595 = vrot.lane.b32.xlu0 %v593, 32
  %v596 = vpop.permute.xlu0 %595
  %v598 = vadd.f32 %v588, %v596
  %v599 = vtanh.pop %v598
  %601 = vrot.lane.b32.xlu0 %v599, 32
  %v602 = vpop.permute.xlu0 %601
  %v604 = vmul.f32 %v586, %v602
  %v605 = vsel %vm73, 1, 0
  %606 = vset.pattern.permute.xlu0 0
  %607 = vperm.xlu0 %606, %v605
  %v608 = vpop.permute.xlu0 %607
  %vm609 = vcmp.eq.s32.totalorder %v608, 1
  %v610 = vsel %vm609, %v604, %v456
  %v611 = vsel %vm609, %v598, %v457
  %v612 = vsel %vm609, %v604, 0.0
  %v613 = vxor.u32 %v567, 2147483648
  %v614 = vmul.f32 %v613, 1.442695
  %v615 = vpow.pop %v614
  %v616 = vadd.f32 %v615, 1.0
  %v617 = vrcp.pop %v616
  %v618 = vmul.f32 %v616, %v617
  %v619 = vsub.f32 1.0, %v618
  %v620 = vmul.f32 %v617, %v619
  %v621 = vadd.f32 %v617, %v620
  %vm622 = vweird.f32 %v616
  %vm623 = vweird.f32 %v617
  %vm624 = vmor %vm622, %vm623
  %v625 = vsel %vm624, %v617, %v621
  %v626 = vand.u32 2147483647, %v616
  %vm627 = vcmp.eq.f32.partialorder %v626, 8.507059e+37
  %v628 = vand.u32 %v616, 2147483648
  %v629 = vor.u32 1.1754944e-38, %v628
  %v630 = vsel %vm627, %v629, %v625
  %v631 = vmul.f32 1.0, %v630
  %v632 = vtanh.pop %v567
  %v633 = vmul.f32 %v631, %v502
  %635 = vrot.lane.b32.xlu0 %v632, 32
  %v636 = vpop.permute.xlu0 %635
  %v638 = vmul.f32 %v631, %v636
  %640 = vrot.lane.b32.xlu0 %v638, 32
  %v641 = vpop.permute.xlu0 %640
  %v643 = vadd.f32 %v633, %v641
  %v644 = vtanh.pop %v643
  %646 = vrot.lane.b32.xlu0 %v644, 32
  %v647 = vpop.permute.xlu0 %646
  %v649 = vmul.f32 %v631, %v647
  %v650 = vsel %vm76, 1, 0
  %651 = vset.pattern.permute.xlu0 0
  %652 = vperm.xlu0 %651, %v650
  %v653 = vpop.permute.xlu0 %652
  %vm654 = vcmp.eq.s32.totalorder %v653, 1
  %v655 = vsel %vm654, %v649, %v501
  %v656 = vsel %vm654, %v643, %v502
  %v657 = vsel %vm654, %v649, 0.0
  %659 = vrot.lane.b32.xlu0 %v612, 64
  %v660 = vpop.permute.xlu0 %659
  %662 = vst.msk [vmem:[#allocation4 + $0x10] sm:$0xff] %vm111, %v660
  %664 = vrot.lane.b32.xlu0 %v657, 96
  %v665 = vpop.permute.xlu0 %664
  %667 = vst.msk [vmem:[#allocation4 + $0x28] sm:$0xff] %vm362, %v665
  %v668 = vld [vmem:[#allocation2 + $0x18] sm:$0xff]
  %670 = vrot.lane.b32.xlu0 %v610, 64
  %v671 = vpop.permute.xlu0 %670
  %v672 = vsel %vm111, %v671, 0
  %674 = vmatpush.msra.mxu0 0.0
  %675 = vmatpush.msra.mxu0 0.0
  %676 = vmatpush.msra.mxu0 0.0
  %677 = vmatpush.msra.mxu0 0.0
  %678 = vmatpush.msra.mxu0 0.0
  %679 = vmatpush.msra.mxu0 0.0
  %680 = vmatpush.msra.mxu0 0.0
  %681 = vmatpush.msra.mxu0 0.0
  %682 = vmatpush.msra.mxu0 0.0
  %683 = vmatpush.msra.mxu0 0.0
  %684 = vmatpush.msra.mxu0 0.0
  %685 = vmatpush.msra.mxu0 0.0
  %686 = vmatpush.msra.mxu0 %v58
  %687 = vmatpush.msra.mxu0 %v57
  %688 = vmatpush.msra.mxu0 %v56
  %689 = vmatpush.msra.mxu0 %v55
  %690 = vmatmul.f32.gmra.mxu0 %v672
  %v691 = vpop.f32.mrf.mxu0
  %v692 = vadd.f32 0.0, %v691
  %693 = vdwg.mxu0
  %v694 = vadd.f32 %v668, %v692
  %v695 = vld [vmem:[#allocation3 + $0x20] sm:$0xff]
  %697 = vrot.lane.b32.xlu0 %v655, 64
  %v698 = vpop.permute.xlu0 %697
  %v699 = vsel %vm111, %v698, 0
  %701 = vmatpush.msra.mxu0 0.0
  %702 = vmatpush.msra.mxu0 0.0
  %703 = vmatpush.msra.mxu0 0.0
  %704 = vmatpush.msra.mxu0 0.0
  %705 = vmatpush.msra.mxu0 0.0
  %706 = vmatpush.msra.mxu0 0.0
  %707 = vmatpush.msra.mxu0 0.0
  %708 = vmatpush.msra.mxu0 0.0
  %709 = vmatpush.msra.mxu0 0.0
  %710 = vmatpush.msra.mxu0 0.0
  %711 = vmatpush.msra.mxu0 0.0
  %712 = vmatpush.msra.mxu0 0.0
  %713 = vmatpush.msra.mxu0 %v62
  %714 = vmatpush.msra.mxu0 %v61
  %715 = vmatpush.msra.mxu0 %v60
  %716 = vmatpush.msra.mxu0 %v59
  %717 = vmatmul.f32.gmra.mxu0 %v699
  %v718 = vpop.f32.mrf.mxu0
  %v719 = vadd.f32 0.0, %v718
  %720 = vdwg.mxu0
  %v721 = vadd.f32 %v695, %v719
  %v722 = vxor.u32 %v694, 2147483648
  %v723 = vmul.f32 %v722, 1.442695
  %v724 = vpow.pop %v723
  %v725 = vadd.f32 %v724, 1.0
  %v726 = vrcp.pop %v725
  %v727 = vmul.f32 %v725, %v726
  %v728 = vsub.f32 1.0, %v727
  %v729 = vmul.f32 %v726, %v728
  %v730 = vadd.f32 %v726, %v729
  %vm731 = vweird.f32 %v725
  %vm732 = vweird.f32 %v726
  %vm733 = vmor %vm731, %vm732
  %v734 = vsel %vm733, %v726, %v730
  %v735 = vand.u32 2147483647, %v725
  %vm736 = vcmp.eq.f32.partialorder %v735, 8.507059e+37
  %v737 = vand.u32 %v725, 2147483648
  %v738 = vor.u32 1.1754944e-38, %v737
  %v739 = vsel %vm736, %v738, %v734
  %v740 = vmul.f32 1.0, %v739
  %v741 = vtanh.pop %v694
  %v742 = vmul.f32 %v740, %v611
  %744 = vrot.lane.b32.xlu0 %v741, 32
  %v745 = vpop.permute.xlu0 %744
  %v747 = vmul.f32 %v740, %v745
  %749 = vrot.lane.b32.xlu0 %v747, 32
  %v750 = vpop.permute.xlu0 %749
  %v752 = vadd.f32 %v742, %v750
  %v753 = vtanh.pop %v752
  %755 = vrot.lane.b32.xlu0 %v753, 32
  %v756 = vpop.permute.xlu0 %755
  %v758 = vmul.f32 %v740, %v756
  %v759 = vsel %vm74, 1, 0
  %760 = vset.pattern.permute.xlu0 0
  %761 = vperm.xlu0 %760, %v759
  %v762 = vpop.permute.xlu0 %761
  %vm763 = vcmp.eq.s32.totalorder %v762, 1
  %v764 = vsel %vm763, %v758, %v610
  %v765 = vsel %vm763, %v752, %v611
  %v766 = vsel %vm763, %v758, 0.0
  %v767 = vxor.u32 %v721, 2147483648
  %v768 = vmul.f32 %v767, 1.442695
  %v769 = vpow.pop %v768
  %v770 = vadd.f32 %v769, 1.0
  %v771 = vrcp.pop %v770
  %v772 = vmul.f32 %v770, %v771
  %v773 = vsub.f32 1.0, %v772
  %v774 = vmul.f32 %v771, %v773
  %v775 = vadd.f32 %v771, %v774
  %vm776 = vweird.f32 %v770
  %vm777 = vweird.f32 %v771
  %vm778 = vmor %vm776, %vm777
  %v779 = vsel %vm778, %v771, %v775
  %v780 = vand.u32 2147483647, %v770
  %vm781 = vcmp.eq.f32.partialorder %v780, 8.507059e+37
  %v782 = vand.u32 %v770, 2147483648
  %v783 = vor.u32 1.1754944e-38, %v782
  %v784 = vsel %vm781, %v783, %v779
  %v785 = vmul.f32 1.0, %v784
  %v786 = vtanh.pop %v721
  %v787 = vmul.f32 %v785, %v656
  %789 = vrot.lane.b32.xlu0 %v786, 32
  %v790 = vpop.permute.xlu0 %789
  %v792 = vmul.f32 %v785, %v790
  %794 = vrot.lane.b32.xlu0 %v792, 32
  %v795 = vpop.permute.xlu0 %794
  %v797 = vadd.f32 %v787, %v795
  %v798 = vtanh.pop %v797
  %800 = vrot.lane.b32.xlu0 %v798, 32
  %v801 = vpop.permute.xlu0 %800
  %v803 = vmul.f32 %v785, %v801
  %v804 = vsel %vm75, 1, 0
  %805 = vset.pattern.permute.xlu0 0
  %806 = vperm.xlu0 %805, %v804
  %v807 = vpop.permute.xlu0 %806
  %vm808 = vcmp.eq.s32.totalorder %v807, 1
  %v809 = vsel %vm808, %v803, %v655
  %v810 = vsel %vm808, %v797, %v656
  %v811 = vsel %vm808, %v803, 0.0
  %813 = vrot.lane.b32.xlu0 %v766, 64
  %v814 = vpop.permute.xlu0 %813
  %816 = vst.msk [vmem:[#allocation4 + $0x18] sm:$0xff] %vm111, %v814
  %818 = vrot.lane.b32.xlu0 %v811, 96
  %v819 = vpop.permute.xlu0 %818
  %821 = vst.msk [vmem:[#allocation4 + $0x20] sm:$0xff] %vm362, %v819
  %v822 = vld [vmem:[#allocation2 + $0x20] sm:$0xff]
  %824 = vrot.lane.b32.xlu0 %v764, 64
  %v825 = vpop.permute.xlu0 %824
  %v826 = vsel %vm111, %v825, 0
  %828 = vmatpush.msra.mxu0 0.0
  %829 = vmatpush.msra.mxu0 0.0
  %830 = vmatpush.msra.mxu0 0.0
  %831 = vmatpush.msra.mxu0 0.0
  %832 = vmatpush.msra.mxu0 0.0
  %833 = vmatpush.msra.mxu0 0.0
  %834 = vmatpush.msra.mxu0 0.0
  %835 = vmatpush.msra.mxu0 0.0
  %836 = vmatpush.msra.mxu0 0.0
  %837 = vmatpush.msra.mxu0 0.0
  %838 = vmatpush.msra.mxu0 0.0
  %839 = vmatpush.msra.mxu0 0.0
  %840 = vmatpush.msra.mxu0 %v58
  %841 = vmatpush.msra.mxu0 %v57
  %842 = vmatpush.msra.mxu0 %v56
  %843 = vmatpush.msra.mxu0 %v55
  %844 = vmatmul.f32.gmra.mxu0 %v826
  %v845 = vpop.f32.mrf.mxu0
  %v846 = vadd.f32 0.0, %v845
  %847 = vdwg.mxu0
  %v848 = vadd.f32 %v822, %v846
  %v849 = vld [vmem:[#allocation3 + $0x18] sm:$0xff]
  %851 = vrot.lane.b32.xlu0 %v809, 64
  %v852 = vpop.permute.xlu0 %851
  %v853 = vsel %vm111, %v852, 0
  %855 = vmatpush.msra.mxu0 0.0
  %856 = vmatpush.msra.mxu0 0.0
  %857 = vmatpush.msra.mxu0 0.0
  %858 = vmatpush.msra.mxu0 0.0
  %859 = vmatpush.msra.mxu0 0.0
  %860 = vmatpush.msra.mxu0 0.0
  %861 = vmatpush.msra.mxu0 0.0
  %862 = vmatpush.msra.mxu0 0.0
  %863 = vmatpush.msra.mxu0 0.0
  %864 = vmatpush.msra.mxu0 0.0
  %865 = vmatpush.msra.mxu0 0.0
  %866 = vmatpush.msra.mxu0 0.0
  %867 = vmatpush.msra.mxu0 %v62
  %868 = vmatpush.msra.mxu0 %v61
  %869 = vmatpush.msra.mxu0 %v60
  %870 = vmatpush.msra.mxu0 %v59
  %871 = vmatmul.f32.gmra.mxu0 %v853
  %v872 = vpop.f32.mrf.mxu0
  %v873 = vadd.f32 0.0, %v872
  %874 = vdwg.mxu0
  %v875 = vadd.f32 %v849, %v873
  %v876 = vxor.u32 %v848, 2147483648
  %v877 = vmul.f32 %v876, 1.442695
  %v878 = vpow.pop %v877
  %v879 = vadd.f32 %v878, 1.0
  %v880 = vrcp.pop %v879
  %v881 = vmul.f32 %v879, %v880
  %v882 = vsub.f32 1.0, %v881
  %v883 = vmul.f32 %v880, %v882
  %v884 = vadd.f32 %v880, %v883
  %vm885 = vweird.f32 %v879
  %vm886 = vweird.f32 %v880
  %vm887 = vmor %vm885, %vm886
  %v888 = vsel %vm887, %v880, %v884
  %v889 = vand.u32 2147483647, %v879
  %vm890 = vcmp.eq.f32.partialorder %v889, 8.507059e+37
  %v891 = vand.u32 %v879, 2147483648
  %v892 = vor.u32 1.1754944e-38, %v891
  %v893 = vsel %vm890, %v892, %v888
  %v894 = vmul.f32 1.0, %v893
  %v895 = vtanh.pop %v848
  %v896 = vmul.f32 %v894, %v765
  %898 = vrot.lane.b32.xlu0 %v895, 32
  %v899 = vpop.permute.xlu0 %898
  %v901 = vmul.f32 %v894, %v899
  %903 = vrot.lane.b32.xlu0 %v901, 32
  %v904 = vpop.permute.xlu0 %903
  %v906 = vadd.f32 %v896, %v904
  %v907 = vtanh.pop %v906
  %909 = vrot.lane.b32.xlu0 %v907, 32
  %v910 = vpop.permute.xlu0 %909
  %v912 = vmul.f32 %v894, %v910
  %v913 = vsel %vm808, %v912, %v764
  %v914 = vsel %vm808, %v906, %v765
  %v915 = vsel %vm808, %v912, 0.0
  %v916 = vxor.u32 %v875, 2147483648
  %v917 = vmul.f32 %v916, 1.442695
  %v918 = vpow.pop %v917
  %v919 = vadd.f32 %v918, 1.0
  %v920 = vrcp.pop %v919
  %v921 = vmul.f32 %v919, %v920
  %v922 = vsub.f32 1.0, %v921
  %v923 = vmul.f32 %v920, %v922
  %v924 = vadd.f32 %v920, %v923
  %vm925 = vweird.f32 %v919
  %vm926 = vweird.f32 %v920
  %vm927 = vmor %vm925, %vm926
  %v928 = vsel %vm927, %v920, %v924
  %v929 = vand.u32 2147483647, %v919
  %vm930 = vcmp.eq.f32.partialorder %v929, 8.507059e+37
  %v931 = vand.u32 %v919, 2147483648
  %v932 = vor.u32 1.1754944e-38, %v931
  %v933 = vsel %vm930, %v932, %v928
  %v934 = vmul.f32 1.0, %v933
  %v935 = vtanh.pop %v875
  %v936 = vmul.f32 %v934, %v810
  %938 = vrot.lane.b32.xlu0 %v935, 32
  %v939 = vpop.permute.xlu0 %938
  %v941 = vmul.f32 %v934, %v939
  %943 = vrot.lane.b32.xlu0 %v941, 32
  %v944 = vpop.permute.xlu0 %943
  %v946 = vadd.f32 %v936, %v944
  %v947 = vtanh.pop %v946
  %949 = vrot.lane.b32.xlu0 %v947, 32
  %v950 = vpop.permute.xlu0 %949
  %v952 = vmul.f32 %v934, %v950
  %v953 = vsel %vm763, %v952, %v809
  %v954 = vsel %vm763, %v946, %v810
  %v955 = vsel %vm763, %v952, 0.0
  %957 = vrot.lane.b32.xlu0 %v915, 64
  %v958 = vpop.permute.xlu0 %957
  %960 = vst.msk [vmem:[#allocation4 + $0x20] sm:$0xff] %vm111, %v958
  %962 = vrot.lane.b32.xlu0 %v955, 96
  %v963 = vpop.permute.xlu0 %962
  %965 = vst.msk [vmem:[#allocation4 + $0x18] sm:$0xff] %vm362, %v963
  %v966 = vld [vmem:[#allocation2 + $0x28] sm:$0xff]
  %968 = vrot.lane.b32.xlu0 %v913, 64
  %v969 = vpop.permute.xlu0 %968
  %v970 = vsel %vm111, %v969, 0
  %972 = vmatpush.msra.mxu0 0.0
  %973 = vmatpush.msra.mxu0 0.0
  %974 = vmatpush.msra.mxu0 0.0
  %975 = vmatpush.msra.mxu0 0.0
  %976 = vmatpush.msra.mxu0 0.0
  %977 = vmatpush.msra.mxu0 0.0
  %978 = vmatpush.msra.mxu0 0.0
  %979 = vmatpush.msra.mxu0 0.0
  %980 = vmatpush.msra.mxu0 0.0
  %981 = vmatpush.msra.mxu0 0.0
  %982 = vmatpush.msra.mxu0 0.0
  %983 = vmatpush.msra.mxu0 0.0
  %984 = vmatpush.msra.mxu0 %v58
  %985 = vmatpush.msra.mxu0 %v57
  %986 = vmatpush.msra.mxu0 %v56
  %987 = vmatpush.msra.mxu0 %v55
  %988 = vmatmul.f32.gmra.mxu0 %v970
  %v989 = vpop.f32.mrf.mxu0
  %v990 = vadd.f32 0.0, %v989
  %991 = vdwg.mxu0
  %v992 = vadd.f32 %v966, %v990
  %v993 = vld [vmem:[#allocation3 + $0x10] sm:$0xff]
  %995 = vrot.lane.b32.xlu0 %v953, 64
  %v996 = vpop.permute.xlu0 %995
  %v997 = vsel %vm111, %v996, 0
  %999 = vmatpush.msra.mxu0 0.0
  %1000 = vmatpush.msra.mxu0 0.0
  %1001 = vmatpush.msra.mxu0 0.0
  %1002 = vmatpush.msra.mxu0 0.0
  %1003 = vmatpush.msra.mxu0 0.0
  %1004 = vmatpush.msra.mxu0 0.0
  %1005 = vmatpush.msra.mxu0 0.0
  %1006 = vmatpush.msra.mxu0 0.0
  %1007 = vmatpush.msra.mxu0 0.0
  %1008 = vmatpush.msra.mxu0 0.0
  %1009 = vmatpush.msra.mxu0 0.0
  %1010 = vmatpush.msra.mxu0 0.0
  %1011 = vmatpush.msra.mxu0 %v62
  %1012 = vmatpush.msra.mxu0 %v61
  %1013 = vmatpush.msra.mxu0 %v60
  %1014 = vmatpush.msra.mxu0 %v59
  %1015 = vmatmul.f32.gmra.mxu0 %v997
  %v1016 = vpop.f32.mrf.mxu0
  %v1017 = vadd.f32 0.0, %v1016
  %1018 = vdwg.mxu0
  %v1019 = vadd.f32 %v993, %v1017
  %v1020 = vxor.u32 %v992, 2147483648
  %v1021 = vmul.f32 %v1020, 1.442695
  %v1022 = vpow.pop %v1021
  %v1023 = vadd.f32 %v1022, 1.0
  %v1024 = vrcp.pop %v1023
  %v1025 = vmul.f32 %v1023, %v1024
  %v1026 = vsub.f32 1.0, %v1025
  %v1027 = vmul.f32 %v1024, %v1026
  %v1028 = vadd.f32 %v1024, %v1027
  %vm1029 = vweird.f32 %v1023
  %vm1030 = vweird.f32 %v1024
  %vm1031 = vmor %vm1029, %vm1030
  %v1032 = vsel %vm1031, %v1024, %v1028
  %v1033 = vand.u32 2147483647, %v1023
  %vm1034 = vcmp.eq.f32.partialorder %v1033, 8.507059e+37
  %v1035 = vand.u32 %v1023, 2147483648
  %v1036 = vor.u32 1.1754944e-38, %v1035
  %v1037 = vsel %vm1034, %v1036, %v1032
  %v1038 = vmul.f32 1.0, %v1037
  %v1039 = vtanh.pop %v992
  %v1040 = vmul.f32 %v1038, %v914
  %1042 = vrot.lane.b32.xlu0 %v1039, 32
  %v1043 = vpop.permute.xlu0 %1042
  %v1045 = vmul.f32 %v1038, %v1043
  %1047 = vrot.lane.b32.xlu0 %v1045, 32
  %v1048 = vpop.permute.xlu0 %1047
  %v1050 = vadd.f32 %v1040, %v1048
  %v1051 = vtanh.pop %v1050
  %1053 = vrot.lane.b32.xlu0 %v1051, 32
  %v1054 = vpop.permute.xlu0 %1053
  %v1056 = vmul.f32 %v1038, %v1054
  %v1057 = vsel %vm654, %v1056, %v913
  %v1058 = vsel %vm654, %v1050, %v914
  %v1059 = vsel %vm654, %v1056, 0.0
  %v1060 = vxor.u32 %v1019, 2147483648
  %v1061 = vmul.f32 %v1060, 1.442695
  %v1062 = vpow.pop %v1061
  %v1063 = vadd.f32 %v1062, 1.0
  %v1064 = vrcp.pop %v1063
  %v1065 = vmul.f32 %v1063, %v1064
  %v1066 = vsub.f32 1.0, %v1065
  %v1067 = vmul.f32 %v1064, %v1066
  %v1068 = vadd.f32 %v1064, %v1067
  %vm1069 = vweird.f32 %v1063
  %vm1070 = vweird.f32 %v1064
  %vm1071 = vmor %vm1069, %vm1070
  %v1072 = vsel %vm1071, %v1064, %v1068
  %v1073 = vand.u32 2147483647, %v1063
  %vm1074 = vcmp.eq.f32.partialorder %v1073, 8.507059e+37
  %v1075 = vand.u32 %v1063, 2147483648
  %v1076 = vor.u32 1.1754944e-38, %v1075
  %v1077 = vsel %vm1074, %v1076, %v1072
  %v1078 = vmul.f32 1.0, %v1077
  %v1079 = vtanh.pop %v1019
  %v1080 = vmul.f32 %v1078, %v954
  %1082 = vrot.lane.b32.xlu0 %v1079, 32
  %v1083 = vpop.permute.xlu0 %1082
  %v1085 = vmul.f32 %v1078, %v1083
  %1087 = vrot.lane.b32.xlu0 %v1085, 32
  %v1088 = vpop.permute.xlu0 %1087
  %v1090 = vadd.f32 %v1080, %v1088
  %v1091 = vtanh.pop %v1090
  %1093 = vrot.lane.b32.xlu0 %v1091, 32
  %v1094 = vpop.permute.xlu0 %1093
  %v1096 = vmul.f32 %v1078, %v1094
  %v1097 = vsel %vm609, %v1096, %v953
  %v1098 = vsel %vm609, %v1090, %v954
  %v1099 = vsel %vm609, %v1096, 0.0
  %1101 = vrot.lane.b32.xlu0 %v1059, 64
  %v1102 = vpop.permute.xlu0 %1101
  %1104 = vst.msk [vmem:[#allocation4 + $0x28] sm:$0xff] %vm111, %v1102
  %1106 = vrot.lane.b32.xlu0 %v1099, 96
  %v1107 = vpop.permute.xlu0 %1106
  %1109 = vst.msk [vmem:[#allocation4 + $0x10] sm:$0xff] %vm362, %v1107
  %v1110 = vld [vmem:[#allocation2 + $0x30] sm:$0xff]
  %1112 = vrot.lane.b32.xlu0 %v1057, 64
  %v1113 = vpop.permute.xlu0 %1112
  %v1114 = vsel %vm111, %v1113, 0
  %1116 = vmatpush.msra.mxu0 0.0
  %1117 = vmatpush.msra.mxu0 0.0
  %1118 = vmatpush.msra.mxu0 0.0
  %1119 = vmatpush.msra.mxu0 0.0
  %1120 = vmatpush.msra.mxu0 0.0
  %1121 = vmatpush.msra.mxu0 0.0
  %1122 = vmatpush.msra.mxu0 0.0
  %1123 = vmatpush.msra.mxu0 0.0
  %1124 = vmatpush.msra.mxu0 0.0
  %1125 = vmatpush.msra.mxu0 0.0
  %1126 = vmatpush.msra.mxu0 0.0
  %1127 = vmatpush.msra.mxu0 0.0
  %1128 = vmatpush.msra.mxu0 %v58
  %1129 = vmatpush.msra.mxu0 %v57
  %1130 = vmatpush.msra.mxu0 %v56
  %1131 = vmatpush.msra.mxu0 %v55
  %1132 = vmatmul.f32.gmra.mxu0 %v1114
  %v1133 = vpop.f32.mrf.mxu0
  %v1134 = vadd.f32 0.0, %v1133
  %1135 = vdwg.mxu0
  %v1136 = vadd.f32 %v1110, %v1134
  %v1137 = vld [vmem:[#allocation3 + $0x8] sm:$0xff]
  %1139 = vrot.lane.b32.xlu0 %v1097, 64
  %v1140 = vpop.permute.xlu0 %1139
  %v1141 = vsel %vm111, %v1140, 0
  %1143 = vmatpush.msra.mxu0 0.0
  %1144 = vmatpush.msra.mxu0 0.0
  %1145 = vmatpush.msra.mxu0 0.0
  %1146 = vmatpush.msra.mxu0 0.0
  %1147 = vmatpush.msra.mxu0 0.0
  %1148 = vmatpush.msra.mxu0 0.0
  %1149 = vmatpush.msra.mxu0 0.0
  %1150 = vmatpush.msra.mxu0 0.0
  %1151 = vmatpush.msra.mxu0 0.0
  %1152 = vmatpush.msra.mxu0 0.0
  %1153 = vmatpush.msra.mxu0 0.0
  %1154 = vmatpush.msra.mxu0 0.0
  %1155 = vmatpush.msra.mxu0 %v62
  %1156 = vmatpush.msra.mxu0 %v61
  %1157 = vmatpush.msra.mxu0 %v60
  %1158 = vmatpush.msra.mxu0 %v59
  %1159 = vmatmul.f32.gmra.mxu0 %v1141
  %v1160 = vpop.f32.mrf.mxu0
  %v1161 = vadd.f32 0.0, %v1160
  %1162 = vdwg.mxu0
  %v1163 = vadd.f32 %v1137, %v1161
  %v1164 = vxor.u32 %v1136, 2147483648
  %v1165 = vmul.f32 %v1164, 1.442695
  %v1166 = vpow.pop %v1165
  %v1167 = vadd.f32 %v1166, 1.0
  %v1168 = vrcp.pop %v1167
  %v1169 = vmul.f32 %v1167, %v1168
  %v1170 = vsub.f32 1.0, %v1169
  %v1171 = vmul.f32 %v1168, %v1170
  %v1172 = vadd.f32 %v1168, %v1171
  %vm1173 = vweird.f32 %v1167
  %vm1174 = vweird.f32 %v1168
  %vm1175 = vmor %vm1173, %vm1174
  %v1176 = vsel %vm1175, %v1168, %v1172
  %v1177 = vand.u32 2147483647, %v1167
  %vm1178 = vcmp.eq.f32.partialorder %v1177, 8.507059e+37
  %v1179 = vand.u32 %v1167, 2147483648
  %v1180 = vor.u32 1.1754944e-38, %v1179
  %v1181 = vsel %vm1178, %v1180, %v1176
  %v1182 = vmul.f32 1.0, %v1181
  %v1183 = vtanh.pop %v1136
  %v1184 = vmul.f32 %v1182, %v1058
  %1186 = vrot.lane.b32.xlu0 %v1183, 32
  %v1187 = vpop.permute.xlu0 %1186
  %v1189 = vmul.f32 %v1182, %v1187
  %1191 = vrot.lane.b32.xlu0 %v1189, 32
  %v1192 = vpop.permute.xlu0 %1191
  %v1194 = vadd.f32 %v1184, %v1192
  %v1195 = vtanh.pop %v1194
  %1197 = vrot.lane.b32.xlu0 %v1195, 32
  %v1198 = vpop.permute.xlu0 %1197
  %v1200 = vmul.f32 %v1182, %v1198
  %v1201 = vsel %vm500, %v1200, %v1057
  %v1202 = vsel %vm500, %v1194, %v1058
  %v1203 = vsel %vm500, %v1200, 0.0
  %v1204 = vxor.u32 %v1163, 2147483648
  %v1205 = vmul.f32 %v1204, 1.442695
  %v1206 = vpow.pop %v1205
  %v1207 = vadd.f32 %v1206, 1.0
  %v1208 = vrcp.pop %v1207
  %v1209 = vmul.f32 %v1207, %v1208
  %v1210 = vsub.f32 1.0, %v1209
  %v1211 = vmul.f32 %v1208, %v1210
  %v1212 = vadd.f32 %v1208, %v1211
  %vm1213 = vweird.f32 %v1207
  %vm1214 = vweird.f32 %v1208
  %vm1215 = vmor %vm1213, %vm1214
  %v1216 = vsel %vm1215, %v1208, %v1212
  %v1217 = vand.u32 2147483647, %v1207
  %vm1218 = vcmp.eq.f32.partialorder %v1217, 8.507059e+37
  %v1219 = vand.u32 %v1207, 2147483648
  %v1220 = vor.u32 1.1754944e-38, %v1219
  %v1221 = vsel %vm1218, %v1220, %v1216
  %v1222 = vmul.f32 1.0, %v1221
  %v1223 = vtanh.pop %v1163
  %v1224 = vmul.f32 %v1222, %v1098
  %1226 = vrot.lane.b32.xlu0 %v1223, 32
  %v1227 = vpop.permute.xlu0 %1226
  %v1229 = vmul.f32 %v1222, %v1227
  %1231 = vrot.lane.b32.xlu0 %v1229, 32
  %v1232 = vpop.permute.xlu0 %1231
  %v1234 = vadd.f32 %v1224, %v1232
  %v1235 = vtanh.pop %v1234
  %1237 = vrot.lane.b32.xlu0 %v1235, 32
  %v1238 = vpop.permute.xlu0 %1237
  %v1240 = vmul.f32 %v1222, %v1238
  %v1241 = vsel %vm455, %v1240, %v1097
  %v1242 = vsel %vm455, %v1234, %v1098
  %v1243 = vsel %vm455, %v1240, 0.0
  %1245 = vrot.lane.b32.xlu0 %v1203, 64
  %v1246 = vpop.permute.xlu0 %1245
  %1248 = vst.msk [vmem:[#allocation4 + $0x30] sm:$0xff] %vm111, %v1246
  %1250 = vrot.lane.b32.xlu0 %v1243, 96
  %v1251 = vpop.permute.xlu0 %1250
  %1253 = vst.msk [vmem:[#allocation4 + $0x8] sm:$0xff] %vm362, %v1251
  %v1254 = vld [vmem:[#allocation2 + $0x38] sm:$0xff]
  %1256 = vrot.lane.b32.xlu0 %v1201, 64
  %v1257 = vpop.permute.xlu0 %1256
  %v1258 = vsel %vm111, %v1257, 0
  %1260 = vmatpush.msra.mxu0 0.0
  %1261 = vmatpush.msra.mxu0 0.0
  %1262 = vmatpush.msra.mxu0 0.0
  %1263 = vmatpush.msra.mxu0 0.0
  %1264 = vmatpush.msra.mxu0 0.0
  %1265 = vmatpush.msra.mxu0 0.0
  %1266 = vmatpush.msra.mxu0 0.0
  %1267 = vmatpush.msra.mxu0 0.0
  %1268 = vmatpush.msra.mxu0 0.0
  %1269 = vmatpush.msra.mxu0 0.0
  %1270 = vmatpush.msra.mxu0 0.0
  %1271 = vmatpush.msra.mxu0 0.0
  %1272 = vmatpush.msra.mxu0 %v58
  %1273 = vmatpush.msra.mxu0 %v57
  %1274 = vmatpush.msra.mxu0 %v56
  %1275 = vmatpush.msra.mxu0 %v55
  %1276 = vmatmul.f32.gmra.mxu0 %v1258
  %v1277 = vpop.f32.mrf.mxu0
  %v1278 = vadd.f32 0.0, %v1277
  %1279 = vdwg.mxu0
  %v1280 = vadd.f32 %v1254, %v1278
  %v1281 = vld [vmem:[#allocation3] sm:$0xff]
  %1283 = vrot.lane.b32.xlu0 %v1241, 64
  %v1284 = vpop.permute.xlu0 %1283
  %v1285 = vsel %vm111, %v1284, 0
  %1287 = vmatpush.msra.mxu0 0.0
  %1288 = vmatpush.msra.mxu0 0.0
  %1289 = vmatpush.msra.mxu0 0.0
  %1290 = vmatpush.msra.mxu0 0.0
  %1291 = vmatpush.msra.mxu0 0.0
  %1292 = vmatpush.msra.mxu0 0.0
  %1293 = vmatpush.msra.mxu0 0.0
  %1294 = vmatpush.msra.mxu0 0.0
  %1295 = vmatpush.msra.mxu0 0.0
  %1296 = vmatpush.msra.mxu0 0.0
  %1297 = vmatpush.msra.mxu0 0.0
  %1298 = vmatpush.msra.mxu0 0.0
  %1299 = vmatpush.msra.mxu0 %v62
  %1300 = vmatpush.msra.mxu0 %v61
  %1301 = vmatpush.msra.mxu0 %v60
  %1302 = vmatpush.msra.mxu0 %v59
  %1303 = vmatmul.f32.gmra.mxu0 %v1285
  %v1304 = vpop.f32.mrf.mxu0
  %v1305 = vadd.f32 0.0, %v1304
  %1306 = vdwg.mxu0
  %v1307 = vadd.f32 %v1281, %v1305
  %v1308 = vxor.u32 %v1280, 2147483648
  %v1309 = vmul.f32 %v1308, 1.442695
  %v1310 = vpow.pop %v1309
  %v1311 = vadd.f32 %v1310, 1.0
  %v1312 = vrcp.pop %v1311
  %v1313 = vmul.f32 %v1311, %v1312
  %v1314 = vsub.f32 1.0, %v1313
  %v1315 = vmul.f32 %v1312, %v1314
  %v1316 = vadd.f32 %v1312, %v1315
  %vm1317 = vweird.f32 %v1311
  %vm1318 = vweird.f32 %v1312
  %vm1319 = vmor %vm1317, %vm1318
  %v1320 = vsel %vm1319, %v1312, %v1316
  %v1321 = vand.u32 2147483647, %v1311
  %vm1322 = vcmp.eq.f32.partialorder %v1321, 8.507059e+37
  %v1323 = vand.u32 %v1311, 2147483648
  %v1324 = vor.u32 1.1754944e-38, %v1323
  %v1325 = vsel %vm1322, %v1324, %v1320
  %v1326 = vmul.f32 1.0, %v1325
  %v1327 = vtanh.pop %v1280
  %v1328 = vmul.f32 %v1326, %v1202
  %1330 = vrot.lane.b32.xlu0 %v1327, 32
  %v1331 = vpop.permute.xlu0 %1330
  %v1333 = vmul.f32 %v1326, %v1331
  %1335 = vrot.lane.b32.xlu0 %v1333, 32
  %v1336 = vpop.permute.xlu0 %1335
  %v1338 = vadd.f32 %v1328, %v1336
  %v1339 = vtanh.pop %v1338
  %1341 = vrot.lane.b32.xlu0 %v1339, 32
  %v1342 = vpop.permute.xlu0 %1341
  %v1344 = vmul.f32 %v1326, %v1342
  %v1345 = vsel %vm350, %v1344, 0.0
  %v1346 = vxor.u32 %v1307, 2147483648
  %v1347 = vmul.f32 %v1346, 1.442695
  %v1348 = vpow.pop %v1347
  %v1349 = vadd.f32 %v1348, 1.0
  %v1350 = vrcp.pop %v1349
  %v1351 = vmul.f32 %v1349, %v1350
  %v1352 = vsub.f32 1.0, %v1351
  %v1353 = vmul.f32 %v1350, %v1352
  %v1354 = vadd.f32 %v1350, %v1353
  %vm1355 = vweird.f32 %v1349
  %vm1356 = vweird.f32 %v1350
  %vm1357 = vmor %vm1355, %vm1356
  %v1358 = vsel %vm1357, %v1350, %v1354
  %v1359 = vand.u32 2147483647, %v1349
  %vm1360 = vcmp.eq.f32.partialorder %v1359, 8.507059e+37
  %v1361 = vand.u32 %v1349, 2147483648
  %v1362 = vor.u32 1.1754944e-38, %v1361
  %v1363 = vsel %vm1360, %v1362, %v1358
  %v1364 = vmul.f32 1.0, %v1363
  %v1365 = vtanh.pop %v1307
  %v1366 = vmul.f32 %v1364, %v1242
  %1368 = vrot.lane.b32.xlu0 %v1365, 32
  %v1369 = vpop.permute.xlu0 %1368
  %v1371 = vmul.f32 %v1364, %v1369
  %1373 = vrot.lane.b32.xlu0 %v1371, 32
  %v1374 = vpop.permute.xlu0 %1373
  %v1376 = vadd.f32 %v1366, %v1374
  %v1377 = vtanh.pop %v1376
  %1379 = vrot.lane.b32.xlu0 %v1377, 32
  %v1380 = vpop.permute.xlu0 %1379
  %v1382 = vmul.f32 %v1364, %v1380
  %v1383 = vsel %vm306, %v1382, 0.0
  %1385 = vrot.lane.b32.xlu0 %v1345, 64
  %v1386 = vpop.permute.xlu0 %1385
  %1388 = vst.msk [vmem:[#allocation4 + $0x38] sm:$0xff] %vm111, %v1386
  %1390 = vrot.lane.b32.xlu0 %v1383, 96
  %v1391 = vpop.permute.xlu0 %1390
  %1393 = vst.msk [vmem:[#allocation4] sm:$0xff] %vm362, %v1391
  %v1394 = vld [vmem:[#allocation4] sm:$0xff]
  %v1395 = vld [vmem:[#allocation4 + $0x8] sm:$0xff]
  %v1396 = vld [vmem:[#allocation4 + $0x10] sm:$0xff]
  %v1397 = vld [vmem:[#allocation4 + $0x18] sm:$0xff]
  %v1398 = vld [vmem:[#allocation4 + $0x20] sm:$0xff]
  %v1399 = vld [vmem:[#allocation4 + $0x28] sm:$0xff]
  %v1400 = vld [vmem:[#allocation4 + $0x30] sm:$0xff]
  %v1401 = vld [vmem:[#allocation4 + $0x38] sm:$0xff]
  %v1402 = vpack.c.bf16 %v1395, %v1394
  %v1403 = vpack.c.bf16 %v1397, %v1396
  %v1404 = vpack.c.bf16 %v1399, %v1398
  %v1405 = vpack.c.bf16 %v1401, %v1400
  %v1406 = vld [vmem:[%s8] sm:$0xf]
  %v1407 = vld [vmem:[%s8 + $0x4] sm:$0xf]
  %v1408 = vld [vmem:[%s8 + $0x8] sm:$0xf]
  %v1409 = vld [vmem:[%s8 + $0xc] sm:$0xf]
  %v1410 = vld [vmem:[%s8 + $0x10] sm:$0xf]
  %v1411 = vld [vmem:[%s8 + $0x14] sm:$0xf]
  %v1412 = vld [vmem:[%s8 + $0x18] sm:$0xf]
  %v1413 = vld [vmem:[%s8 + $0x1c] sm:$0xf]
  %v1414 = vld [vmem:[%s10] sm:$0x1]
  %v1416 = vperm.slane %v1414, 0
  %v1426 = vunpack.c.l.b16 %v1406
  %v1427 = vunpack.c.l.b16 %v1407
  %v1428 = vunpack.c.l.b16 %v1408
  %v1429 = vunpack.c.l.b16 %v1409
  %v1430 = vunpack.c.l.b16 %v1410
  %v1431 = vunpack.c.l.b16 %v1411
  %v1432 = vunpack.c.l.b16 %v1412
  %v1433 = vunpack.c.l.b16 %v1413
  %v1434 = vpack.c.b16 %v1427, %v1426
  %v1435 = vpack.c.b16 %v1429, %v1428
  %v1436 = vpack.c.b16 %v1431, %v1430
  %v1437 = vpack.c.b16 %v1433, %v1432
  %vm1442 = vcmask 523264
  %v1444 = vsel %vm1442, %v1402, 0
  %v1447 = vsel %vm1442, %v1403, 0
  %v1450 = vsel %vm1442, %v1404, 0
  %v1453 = vsel %vm1442, %v1405, 0
  %1455 = vmatpush.bf16.msra.mxu0 0
  %1456 = vmatpush.bf16.msra.mxu0 0
  %1457 = vmatpush.bf16.msra.mxu0 0
  %1458 = vmatpush.bf16.msra.mxu0 0
  %1459 = vmatpush.bf16.msra.mxu0 %v1437
  %1460 = vmatpush.bf16.msra.mxu0 %v1436
  %1461 = vmatpush.bf16.msra.mxu0 %v1435
  %1462 = vmatpush.bf16.msra.mxu0 %v1434
  %1463 = vmatmul.bf16.gmra.mxu0 %v1444
  %v1464 = vpop.f32.mrf.mxu0
  %v1465 = vadd.f32 %v1416, %v1464
  %v1466 = vpop.f32.mrf.mxu0
  %v1467 = vadd.f32 %v1416, %v1466
  %1468 = vmatmul.bf16.gmra.mxu0 %v1447
  %v1469 = vpop.f32.mrf.mxu0
  %v1470 = vadd.f32 %v1416, %v1469
  %v1471 = vpop.f32.mrf.mxu0
  %v1472 = vadd.f32 %v1416, %v1471
  %1473 = vmatmul.bf16.gmra.mxu0 %v1450
  %v1474 = vpop.f32.mrf.mxu0
  %v1475 = vadd.f32 %v1416, %v1474
  %v1476 = vpop.f32.mrf.mxu0
  %v1477 = vadd.f32 %v1416, %v1476
  %1478 = vmatmul.bf16.gmra.mxu0 %v1453
  %v1479 = vpop.f32.mrf.mxu0
  %v1480 = vadd.f32 %v1416, %v1479
  %v1481 = vpop.f32.mrf.mxu0
  %v1482 = vadd.f32 %v1416, %v1481
  %1483 = vdwg.mxu0
  %1484 = vst [vmem:[#allocation2] sm:$0xff] %v1465
  %1485 = vst [vmem:[#allocation2 + $0x8] sm:$0xff] %v1467
  %1486 = vst [vmem:[#allocation2 + $0x10] sm:$0xff] %v1470
  %1487 = vst [vmem:[#allocation2 + $0x18] sm:$0xff] %v1472
  %1488 = vst [vmem:[#allocation2 + $0x20] sm:$0xff] %v1475
  %1489 = vst [vmem:[#allocation2 + $0x28] sm:$0xff] %v1477
  %1490 = vst [vmem:[#allocation2 + $0x30] sm:$0xff] %v1480
  %1491 = vst [vmem:[#allocation2 + $0x38] sm:$0xff] %v1482
  %v1492 = vld [vmem:[%s11] sm:$0xf]
  %v1493 = vld [vmem:[%s11 + $0x4] sm:$0xf]
  %v1494 = vld [vmem:[%s11 + $0x8] sm:$0xf]
  %v1495 = vld [vmem:[%s11 + $0xc] sm:$0xf]
  %v1496 = vld [vmem:[%s11 + $0x10] sm:$0xf]
  %v1497 = vld [vmem:[%s11 + $0x14] sm:$0xf]
  %v1498 = vld [vmem:[%s11 + $0x18] sm:$0xf]
  %v1499 = vld [vmem:[%s11 + $0x1c] sm:$0xf]
  %v1500 = vld [vmem:[%s13] sm:$0x1]
  %v1502 = vperm.slane %v1500, 0
  %v1512 = vunpack.c.l.b16 %v1492
  %v1513 = vunpack.c.l.b16 %v1493
  %v1514 = vunpack.c.l.b16 %v1494
  %v1515 = vunpack.c.l.b16 %v1495
  %v1516 = vunpack.c.l.b16 %v1496
  %v1517 = vunpack.c.l.b16 %v1497
  %v1518 = vunpack.c.l.b16 %v1498
  %v1519 = vunpack.c.l.b16 %v1499
  %v1520 = vpack.c.b16 %v1513, %v1512
  %v1521 = vpack.c.b16 %v1515, %v1514
  %v1522 = vpack.c.b16 %v1517, %v1516
  %v1523 = vpack.c.b16 %v1519, %v1518
  %1528 = vmatpush.bf16.msra.mxu0 0
  %1529 = vmatpush.bf16.msra.mxu0 0
  %1530 = vmatpush.bf16.msra.mxu0 0
  %1531 = vmatpush.bf16.msra.mxu0 0
  %1532 = vmatpush.bf16.msra.mxu0 %v1523
  %1533 = vmatpush.bf16.msra.mxu0 %v1522
  %1534 = vmatpush.bf16.msra.mxu0 %v1521
  %1535 = vmatpush.bf16.msra.mxu0 %v1520
  %1536 = vmatmul.bf16.gmra.mxu0 %v1444
  %v1537 = vpop.f32.mrf.mxu0
  %v1538 = vadd.f32 %v1502, %v1537
  %v1539 = vpop.f32.mrf.mxu0
  %v1540 = vadd.f32 %v1502, %v1539
  %1541 = vmatmul.bf16.gmra.mxu0 %v1447
  %v1542 = vpop.f32.mrf.mxu0
  %v1543 = vadd.f32 %v1502, %v1542
  %v1544 = vpop.f32.mrf.mxu0
  %v1545 = vadd.f32 %v1502, %v1544
  %1546 = vmatmul.bf16.gmra.mxu0 %v1450
  %v1547 = vpop.f32.mrf.mxu0
  %v1548 = vadd.f32 %v1502, %v1547
  %v1549 = vpop.f32.mrf.mxu0
  %v1550 = vadd.f32 %v1502, %v1549
  %1551 = vmatmul.bf16.gmra.mxu0 %v1453
  %v1552 = vpop.f32.mrf.mxu0
  %v1553 = vadd.f32 %v1502, %v1552
  %v1554 = vpop.f32.mrf.mxu0
  %v1555 = vadd.f32 %v1502, %v1554
  %1556 = vdwg.mxu0
  %1557 = vst [vmem:[#allocation3] sm:$0xff] %v1538
  %1558 = vst [vmem:[#allocation3 + $0x8] sm:$0xff] %v1540
  %1559 = vst [vmem:[#allocation3 + $0x10] sm:$0xff] %v1543
  %1560 = vst [vmem:[#allocation3 + $0x18] sm:$0xff] %v1545
  %1561 = vst [vmem:[#allocation3 + $0x20] sm:$0xff] %v1548
  %1562 = vst [vmem:[#allocation3 + $0x28] sm:$0xff] %v1550
  %1563 = vst [vmem:[#allocation3 + $0x30] sm:$0xff] %v1553
  %1564 = vst [vmem:[#allocation3 + $0x38] sm:$0xff] %v1555
  %v1565 = vld [vmem:[#allocation2] sm:$0xff]
  %1566 = vmatpush.msra.mxu0 0.0
  %1567 = vmatpush.msra.mxu0 0.0
  %1568 = vmatpush.msra.mxu0 0.0
  %1569 = vmatpush.msra.mxu0 0.0
  %1570 = vmatpush.msra.mxu0 0.0
  %1571 = vmatpush.msra.mxu0 0.0
  %1572 = vmatpush.msra.mxu0 0.0
  %1573 = vmatpush.msra.mxu0 0.0
  %1574 = vmatpush.msra.mxu0 0.0
  %1575 = vmatpush.msra.mxu0 0.0
  %1576 = vmatpush.msra.mxu0 0.0
  %1577 = vmatpush.msra.mxu0 0.0
  %1578 = vmatpush.msra.mxu0 %v66
  %1579 = vmatpush.msra.mxu0 %v65
  %1580 = vmatpush.msra.mxu0 %v64
  %1581 = vmatpush.msra.mxu0 %v63
  %1582 = vmatmul.f32.gmra.mxu0 %v220
  %v1583 = vpop.f32.mrf.mxu0
  %v1584 = vadd.f32 0.0, %v1583
  %1585 = vdwg.mxu0
  %v1586 = vadd.f32 %v1565, %v1584
  %v1587 = vld [vmem:[#allocation3 + $0x38] sm:$0xff]
  %1588 = vmatpush.msra.mxu0 0.0
  %1589 = vmatpush.msra.mxu0 0.0
  %1590 = vmatpush.msra.mxu0 0.0
  %1591 = vmatpush.msra.mxu0 0.0
  %1592 = vmatpush.msra.mxu0 0.0
  %1593 = vmatpush.msra.mxu0 0.0
  %1594 = vmatpush.msra.mxu0 0.0
  %1595 = vmatpush.msra.mxu0 0.0
  %1596 = vmatpush.msra.mxu0 0.0
  %1597 = vmatpush.msra.mxu0 0.0
  %1598 = vmatpush.msra.mxu0 0.0
  %1599 = vmatpush.msra.mxu0 0.0
  %1600 = vmatpush.msra.mxu0 %v70
  %1601 = vmatpush.msra.mxu0 %v69
  %1602 = vmatpush.msra.mxu0 %v68
  %1603 = vmatpush.msra.mxu0 %v67
  %1604 = vmatmul.f32.gmra.mxu0 %v220
  %v1605 = vpop.f32.mrf.mxu0
  %v1606 = vadd.f32 0.0, %v1605
  %1607 = vdwg.mxu0
  %v1608 = vadd.f32 %v1587, %v1606
  %v1609 = vxor.u32 %v1586, 2147483648
  %v1610 = vmul.f32 %v1609, 1.442695
  %v1611 = vpow.pop %v1610
  %v1612 = vadd.f32 %v1611, 1.0
  %v1613 = vrcp.pop %v1612
  %v1614 = vmul.f32 %v1612, %v1613
  %v1615 = vsub.f32 1.0, %v1614
  %v1616 = vmul.f32 %v1613, %v1615
  %v1617 = vadd.f32 %v1613, %v1616
  %vm1618 = vweird.f32 %v1612
  %vm1619 = vweird.f32 %v1613
  %vm1620 = vmor %vm1618, %vm1619
  %v1621 = vsel %vm1620, %v1613, %v1617
  %v1622 = vand.u32 2147483647, %v1612
  %vm1623 = vcmp.eq.f32.partialorder %v1622, 8.507059e+37
  %v1624 = vand.u32 %v1612, 2147483648
  %v1625 = vor.u32 1.1754944e-38, %v1624
  %v1626 = vsel %vm1623, %v1625, %v1621
  %v1627 = vmul.f32 1.0, %v1626
  %v1628 = vtanh.pop %v1586
  %v1629 = vmul.f32 %v1627, 0.0
  %1631 = vrot.lane.b32.xlu0 %v1628, 32
  %v1632 = vpop.permute.xlu0 %1631
  %v1634 = vmul.f32 %v1627, %v1632
  %1636 = vrot.lane.b32.xlu0 %v1634, 32
  %v1637 = vpop.permute.xlu0 %1636
  %v1639 = vadd.f32 %v1629, %v1637
  %v1640 = vtanh.pop %v1639
  %1642 = vrot.lane.b32.xlu0 %v1640, 32
  %v1643 = vpop.permute.xlu0 %1642
  %v1645 = vmul.f32 %v1627, %v1643
  %v1646 = vsel %vm306, %v1645, 0.0
  %v1647 = vsel %vm306, %v1639, 0.0
  %v1648 = vxor.u32 %v1608, 2147483648
  %v1649 = vmul.f32 %v1648, 1.442695
  %v1650 = vpow.pop %v1649
  %v1651 = vadd.f32 %v1650, 1.0
  %v1652 = vrcp.pop %v1651
  %v1653 = vmul.f32 %v1651, %v1652
  %v1654 = vsub.f32 1.0, %v1653
  %v1655 = vmul.f32 %v1652, %v1654
  %v1656 = vadd.f32 %v1652, %v1655
  %vm1657 = vweird.f32 %v1651
  %vm1658 = vweird.f32 %v1652
  %vm1659 = vmor %vm1657, %vm1658
  %v1660 = vsel %vm1659, %v1652, %v1656
  %v1661 = vand.u32 2147483647, %v1651
  %vm1662 = vcmp.eq.f32.partialorder %v1661, 8.507059e+37
  %v1663 = vand.u32 %v1651, 2147483648
  %v1664 = vor.u32 1.1754944e-38, %v1663
  %v1665 = vsel %vm1662, %v1664, %v1660
  %v1666 = vmul.f32 1.0, %v1665
  %v1667 = vtanh.pop %v1608
  %v1668 = vmul.f32 %v1666, 0.0
  %1670 = vrot.lane.b32.xlu0 %v1667, 32
  %v1671 = vpop.permute.xlu0 %1670
  %v1673 = vmul.f32 %v1666, %v1671
  %1675 = vrot.lane.b32.xlu0 %v1673, 32
  %v1676 = vpop.permute.xlu0 %1675
  %v1678 = vadd.f32 %v1668, %v1676
  %v1679 = vtanh.pop %v1678
  %1681 = vrot.lane.b32.xlu0 %v1679, 32
  %v1682 = vpop.permute.xlu0 %1681
  %v1684 = vmul.f32 %v1666, %v1682
  %v1685 = vsel %vm350, %v1684, 0.0
  %v1686 = vsel %vm350, %v1678, 0.0
  %1688 = vrot.lane.b32.xlu0 %v1646, 64
  %v1689 = vpop.permute.xlu0 %1688
  %1691 = vst.msk [vmem:[#allocation5] sm:$0xff] %vm111, %v1689
  %1693 = vrot.lane.b32.xlu0 %v1685, 96
  %v1694 = vpop.permute.xlu0 %1693
  %1696 = vst.msk [vmem:[#allocation5 + $0x38] sm:$0xff] %vm362, %v1694
  %v1697 = vld [vmem:[#allocation2 + $0x8] sm:$0xff]
  %v1698 = vsel %vm111, %v1689, 0
  %1700 = vmatpush.msra.mxu0 0.0
  %1701 = vmatpush.msra.mxu0 0.0
  %1702 = vmatpush.msra.mxu0 0.0
  %1703 = vmatpush.msra.mxu0 0.0
  %1704 = vmatpush.msra.mxu0 0.0
  %1705 = vmatpush.msra.mxu0 0.0
  %1706 = vmatpush.msra.mxu0 0.0
  %1707 = vmatpush.msra.mxu0 0.0
  %1708 = vmatpush.msra.mxu0 0.0
  %1709 = vmatpush.msra.mxu0 0.0
  %1710 = vmatpush.msra.mxu0 0.0
  %1711 = vmatpush.msra.mxu0 0.0
  %1712 = vmatpush.msra.mxu0 %v66
  %1713 = vmatpush.msra.mxu0 %v65
  %1714 = vmatpush.msra.mxu0 %v64
  %1715 = vmatpush.msra.mxu0 %v63
  %1716 = vmatmul.f32.gmra.mxu0 %v1698
  %v1717 = vpop.f32.mrf.mxu0
  %v1718 = vadd.f32 0.0, %v1717
  %1719 = vdwg.mxu0
  %v1720 = vadd.f32 %v1697, %v1718
  %v1721 = vld [vmem:[#allocation3 + $0x30] sm:$0xff]
  %1722 = vrot.lane.b32.xlu0 %v1685, 64
  %v1723 = vpop.permute.xlu0 %1722
  %v1724 = vsel %vm111, %v1723, 0
  %1726 = vmatpush.msra.mxu0 0.0
  %1727 = vmatpush.msra.mxu0 0.0
  %1728 = vmatpush.msra.mxu0 0.0
  %1729 = vmatpush.msra.mxu0 0.0
  %1730 = vmatpush.msra.mxu0 0.0
  %1731 = vmatpush.msra.mxu0 0.0
  %1732 = vmatpush.msra.mxu0 0.0
  %1733 = vmatpush.msra.mxu0 0.0
  %1734 = vmatpush.msra.mxu0 0.0
  %1735 = vmatpush.msra.mxu0 0.0
  %1736 = vmatpush.msra.mxu0 0.0
  %1737 = vmatpush.msra.mxu0 0.0
  %1738 = vmatpush.msra.mxu0 %v70
  %1739 = vmatpush.msra.mxu0 %v69
  %1740 = vmatpush.msra.mxu0 %v68
  %1741 = vmatpush.msra.mxu0 %v67
  %1742 = vmatmul.f32.gmra.mxu0 %v1724
  %v1743 = vpop.f32.mrf.mxu0
  %v1744 = vadd.f32 0.0, %v1743
  %1745 = vdwg.mxu0
  %v1746 = vadd.f32 %v1721, %v1744
  %v1747 = vxor.u32 %v1720, 2147483648
  %v1748 = vmul.f32 %v1747, 1.442695
  %v1749 = vpow.pop %v1748
  %v1750 = vadd.f32 %v1749, 1.0
  %v1751 = vrcp.pop %v1750
  %v1752 = vmul.f32 %v1750, %v1751
  %v1753 = vsub.f32 1.0, %v1752
  %v1754 = vmul.f32 %v1751, %v1753
  %v1755 = vadd.f32 %v1751, %v1754
  %vm1756 = vweird.f32 %v1750
  %vm1757 = vweird.f32 %v1751
  %vm1758 = vmor %vm1756, %vm1757
  %v1759 = vsel %vm1758, %v1751, %v1755
  %v1760 = vand.u32 2147483647, %v1750
  %vm1761 = vcmp.eq.f32.partialorder %v1760, 8.507059e+37
  %v1762 = vand.u32 %v1750, 2147483648
  %v1763 = vor.u32 1.1754944e-38, %v1762
  %v1764 = vsel %vm1761, %v1763, %v1759
  %v1765 = vmul.f32 1.0, %v1764
  %v1766 = vtanh.pop %v1720
  %v1767 = vmul.f32 %v1765, %v1647
  %1769 = vrot.lane.b32.xlu0 %v1766, 32
  %v1770 = vpop.permute.xlu0 %1769
  %v1772 = vmul.f32 %v1765, %v1770
  %1774 = vrot.lane.b32.xlu0 %v1772, 32
  %v1775 = vpop.permute.xlu0 %1774
  %v1777 = vadd.f32 %v1767, %v1775
  %v1778 = vtanh.pop %v1777
  %1780 = vrot.lane.b32.xlu0 %v1778, 32
  %v1781 = vpop.permute.xlu0 %1780
  %v1783 = vmul.f32 %v1765, %v1781
  %v1784 = vsel %vm455, %v1783, %v1646
  %v1785 = vsel %vm455, %v1777, %v1647
  %v1786 = vsel %vm455, %v1783, 0.0
  %v1787 = vxor.u32 %v1746, 2147483648
  %v1788 = vmul.f32 %v1787, 1.442695
  %v1789 = vpow.pop %v1788
  %v1790 = vadd.f32 %v1789, 1.0
  %v1791 = vrcp.pop %v1790
  %v1792 = vmul.f32 %v1790, %v1791
  %v1793 = vsub.f32 1.0, %v1792
  %v1794 = vmul.f32 %v1791, %v1793
  %v1795 = vadd.f32 %v1791, %v1794
  %vm1796 = vweird.f32 %v1790
  %vm1797 = vweird.f32 %v1791
  %vm1798 = vmor %vm1796, %vm1797
  %v1799 = vsel %vm1798, %v1791, %v1795
  %v1800 = vand.u32 2147483647, %v1790
  %vm1801 = vcmp.eq.f32.partialorder %v1800, 8.507059e+37
  %v1802 = vand.u32 %v1790, 2147483648
  %v1803 = vor.u32 1.1754944e-38, %v1802
  %v1804 = vsel %vm1801, %v1803, %v1799
  %v1805 = vmul.f32 1.0, %v1804
  %v1806 = vtanh.pop %v1746
  %v1807 = vmul.f32 %v1805, %v1686
  %1809 = vrot.lane.b32.xlu0 %v1806, 32
  %v1810 = vpop.permute.xlu0 %1809
  %v1812 = vmul.f32 %v1805, %v1810
  %1814 = vrot.lane.b32.xlu0 %v1812, 32
  %v1815 = vpop.permute.xlu0 %1814
  %v1817 = vadd.f32 %v1807, %v1815
  %v1818 = vtanh.pop %v1817
  %1820 = vrot.lane.b32.xlu0 %v1818, 32
  %v1821 = vpop.permute.xlu0 %1820
  %v1823 = vmul.f32 %v1805, %v1821
  %v1824 = vsel %vm500, %v1823, %v1685
  %v1825 = vsel %vm500, %v1817, %v1686
  %v1826 = vsel %vm500, %v1823, 0.0
  %1828 = vrot.lane.b32.xlu0 %v1786, 64
  %v1829 = vpop.permute.xlu0 %1828
  %1831 = vst.msk [vmem:[#allocation5 + $0x8] sm:$0xff] %vm111, %v1829
  %1833 = vrot.lane.b32.xlu0 %v1826, 96
  %v1834 = vpop.permute.xlu0 %1833
  %1836 = vst.msk [vmem:[#allocation5 + $0x30] sm:$0xff] %vm362, %v1834
  %v1837 = vld [vmem:[#allocation2 + $0x10] sm:$0xff]
  %1839 = vrot.lane.b32.xlu0 %v1784, 64
  %v1840 = vpop.permute.xlu0 %1839
  %v1841 = vsel %vm111, %v1840, 0
  %1843 = vmatpush.msra.mxu0 0.0
  %1844 = vmatpush.msra.mxu0 0.0
  %1845 = vmatpush.msra.mxu0 0.0
  %1846 = vmatpush.msra.mxu0 0.0
  %1847 = vmatpush.msra.mxu0 0.0
  %1848 = vmatpush.msra.mxu0 0.0
  %1849 = vmatpush.msra.mxu0 0.0
  %1850 = vmatpush.msra.mxu0 0.0
  %1851 = vmatpush.msra.mxu0 0.0
  %1852 = vmatpush.msra.mxu0 0.0
  %1853 = vmatpush.msra.mxu0 0.0
  %1854 = vmatpush.msra.mxu0 0.0
  %1855 = vmatpush.msra.mxu0 %v66
  %1856 = vmatpush.msra.mxu0 %v65
  %1857 = vmatpush.msra.mxu0 %v64
  %1858 = vmatpush.msra.mxu0 %v63
  %1859 = vmatmul.f32.gmra.mxu0 %v1841
  %v1860 = vpop.f32.mrf.mxu0
  %v1861 = vadd.f32 0.0, %v1860
  %1862 = vdwg.mxu0
  %v1863 = vadd.f32 %v1837, %v1861
  %v1864 = vld [vmem:[#allocation3 + $0x28] sm:$0xff]
  %1866 = vrot.lane.b32.xlu0 %v1824, 64
  %v1867 = vpop.permute.xlu0 %1866
  %v1868 = vsel %vm111, %v1867, 0
  %1870 = vmatpush.msra.mxu0 0.0
  %1871 = vmatpush.msra.mxu0 0.0
  %1872 = vmatpush.msra.mxu0 0.0
  %1873 = vmatpush.msra.mxu0 0.0
  %1874 = vmatpush.msra.mxu0 0.0
  %1875 = vmatpush.msra.mxu0 0.0
  %1876 = vmatpush.msra.mxu0 0.0
  %1877 = vmatpush.msra.mxu0 0.0
  %1878 = vmatpush.msra.mxu0 0.0
  %1879 = vmatpush.msra.mxu0 0.0
  %1880 = vmatpush.msra.mxu0 0.0
  %1881 = vmatpush.msra.mxu0 0.0
  %1882 = vmatpush.msra.mxu0 %v70
  %1883 = vmatpush.msra.mxu0 %v69
  %1884 = vmatpush.msra.mxu0 %v68
  %1885 = vmatpush.msra.mxu0 %v67
  %1886 = vmatmul.f32.gmra.mxu0 %v1868
  %v1887 = vpop.f32.mrf.mxu0
  %v1888 = vadd.f32 0.0, %v1887
  %1889 = vdwg.mxu0
  %v1890 = vadd.f32 %v1864, %v1888
  %v1891 = vxor.u32 %v1863, 2147483648
  %v1892 = vmul.f32 %v1891, 1.442695
  %v1893 = vpow.pop %v1892
  %v1894 = vadd.f32 %v1893, 1.0
  %v1895 = vrcp.pop %v1894
  %v1896 = vmul.f32 %v1894, %v1895
  %v1897 = vsub.f32 1.0, %v1896
  %v1898 = vmul.f32 %v1895, %v1897
  %v1899 = vadd.f32 %v1895, %v1898
  %vm1900 = vweird.f32 %v1894
  %vm1901 = vweird.f32 %v1895
  %vm1902 = vmor %vm1900, %vm1901
  %v1903 = vsel %vm1902, %v1895, %v1899
  %v1904 = vand.u32 2147483647, %v1894
  %vm1905 = vcmp.eq.f32.partialorder %v1904, 8.507059e+37
  %v1906 = vand.u32 %v1894, 2147483648
  %v1907 = vor.u32 1.1754944e-38, %v1906
  %v1908 = vsel %vm1905, %v1907, %v1903
  %v1909 = vmul.f32 1.0, %v1908
  %v1910 = vtanh.pop %v1863
  %v1911 = vmul.f32 %v1909, %v1785
  %1913 = vrot.lane.b32.xlu0 %v1910, 32
  %v1914 = vpop.permute.xlu0 %1913
  %v1916 = vmul.f32 %v1909, %v1914
  %1918 = vrot.lane.b32.xlu0 %v1916, 32
  %v1919 = vpop.permute.xlu0 %1918
  %v1921 = vadd.f32 %v1911, %v1919
  %v1922 = vtanh.pop %v1921
  %1924 = vrot.lane.b32.xlu0 %v1922, 32
  %v1925 = vpop.permute.xlu0 %1924
  %v1927 = vmul.f32 %v1909, %v1925
  %v1928 = vsel %vm609, %v1927, %v1784
  %v1929 = vsel %vm609, %v1921, %v1785
  %v1930 = vsel %vm609, %v1927, 0.0
  %v1931 = vxor.u32 %v1890, 2147483648
  %v1932 = vmul.f32 %v1931, 1.442695
  %v1933 = vpow.pop %v1932
  %v1934 = vadd.f32 %v1933, 1.0
  %v1935 = vrcp.pop %v1934
  %v1936 = vmul.f32 %v1934, %v1935
  %v1937 = vsub.f32 1.0, %v1936
  %v1938 = vmul.f32 %v1935, %v1937
  %v1939 = vadd.f32 %v1935, %v1938
  %vm1940 = vweird.f32 %v1934
  %vm1941 = vweird.f32 %v1935
  %vm1942 = vmor %vm1940, %vm1941
  %v1943 = vsel %vm1942, %v1935, %v1939
  %v1944 = vand.u32 2147483647, %v1934
  %vm1945 = vcmp.eq.f32.partialorder %v1944, 8.507059e+37
  %v1946 = vand.u32 %v1934, 2147483648
  %v1947 = vor.u32 1.1754944e-38, %v1946
  %v1948 = vsel %vm1945, %v1947, %v1943
  %v1949 = vmul.f32 1.0, %v1948
  %v1950 = vtanh.pop %v1890
  %v1951 = vmul.f32 %v1949, %v1825
  %1953 = vrot.lane.b32.xlu0 %v1950, 32
  %v1954 = vpop.permute.xlu0 %1953
  %v1956 = vmul.f32 %v1949, %v1954
  %1958 = vrot.lane.b32.xlu0 %v1956, 32
  %v1959 = vpop.permute.xlu0 %1958
  %v1961 = vadd.f32 %v1951, %v1959
  %v1962 = vtanh.pop %v1961
  %1964 = vrot.lane.b32.xlu0 %v1962, 32
  %v1965 = vpop.permute.xlu0 %1964
  %v1967 = vmul.f32 %v1949, %v1965
  %v1968 = vsel %vm654, %v1967, %v1824
  %v1969 = vsel %vm654, %v1961, %v1825
  %v1970 = vsel %vm654, %v1967, 0.0
  %1972 = vrot.lane.b32.xlu0 %v1930, 64
  %v1973 = vpop.permute.xlu0 %1972
  %1975 = vst.msk [vmem:[#allocation5 + $0x10] sm:$0xff] %vm111, %v1973
  %1977 = vrot.lane.b32.xlu0 %v1970, 96
  %v1978 = vpop.permute.xlu0 %1977
  %1980 = vst.msk [vmem:[#allocation5 + $0x28] sm:$0xff] %vm362, %v1978
  %v1981 = vld [vmem:[#allocation2 + $0x18] sm:$0xff]
  %1983 = vrot.lane.b32.xlu0 %v1928, 64
  %v1984 = vpop.permute.xlu0 %1983
  %v1985 = vsel %vm111, %v1984, 0
  %1987 = vmatpush.msra.mxu0 0.0
  %1988 = vmatpush.msra.mxu0 0.0
  %1989 = vmatpush.msra.mxu0 0.0
  %1990 = vmatpush.msra.mxu0 0.0
  %1991 = vmatpush.msra.mxu0 0.0
  %1992 = vmatpush.msra.mxu0 0.0
  %1993 = vmatpush.msra.mxu0 0.0
  %1994 = vmatpush.msra.mxu0 0.0
  %1995 = vmatpush.msra.mxu0 0.0
  %1996 = vmatpush.msra.mxu0 0.0
  %1997 = vmatpush.msra.mxu0 0.0
  %1998 = vmatpush.msra.mxu0 0.0
  %1999 = vmatpush.msra.mxu0 %v66
  %2000 = vmatpush.msra.mxu0 %v65
  %2001 = vmatpush.msra.mxu0 %v64
  %2002 = vmatpush.msra.mxu0 %v63
  %2003 = vmatmul.f32.gmra.mxu0 %v1985
  %v2004 = vpop.f32.mrf.mxu0
  %v2005 = vadd.f32 0.0, %v2004
  %2006 = vdwg.mxu0
  %v2007 = vadd.f32 %v1981, %v2005
  %v2008 = vld [vmem:[#allocation3 + $0x20] sm:$0xff]
  %2010 = vrot.lane.b32.xlu0 %v1968, 64
  %v2011 = vpop.permute.xlu0 %2010
  %v2012 = vsel %vm111, %v2011, 0
  %2014 = vmatpush.msra.mxu0 0.0
  %2015 = vmatpush.msra.mxu0 0.0
  %2016 = vmatpush.msra.mxu0 0.0
  %2017 = vmatpush.msra.mxu0 0.0
  %2018 = vmatpush.msra.mxu0 0.0
  %2019 = vmatpush.msra.mxu0 0.0
  %2020 = vmatpush.msra.mxu0 0.0
  %2021 = vmatpush.msra.mxu0 0.0
  %2022 = vmatpush.msra.mxu0 0.0
  %2023 = vmatpush.msra.mxu0 0.0
  %2024 = vmatpush.msra.mxu0 0.0
  %2025 = vmatpush.msra.mxu0 0.0
  %2026 = vmatpush.msra.mxu0 %v70
  %2027 = vmatpush.msra.mxu0 %v69
  %2028 = vmatpush.msra.mxu0 %v68
  %2029 = vmatpush.msra.mxu0 %v67
  %2030 = vmatmul.f32.gmra.mxu0 %v2012
  %v2031 = vpop.f32.mrf.mxu0
  %v2032 = vadd.f32 0.0, %v2031
  %2033 = vdwg.mxu0
  %v2034 = vadd.f32 %v2008, %v2032
  %v2035 = vxor.u32 %v2007, 2147483648
  %v2036 = vmul.f32 %v2035, 1.442695
  %v2037 = vpow.pop %v2036
  %v2038 = vadd.f32 %v2037, 1.0
  %v2039 = vrcp.pop %v2038
  %v2040 = vmul.f32 %v2038, %v2039
  %v2041 = vsub.f32 1.0, %v2040
  %v2042 = vmul.f32 %v2039, %v2041
  %v2043 = vadd.f32 %v2039, %v2042
  %vm2044 = vweird.f32 %v2038
  %vm2045 = vweird.f32 %v2039
  %vm2046 = vmor %vm2044, %vm2045
  %v2047 = vsel %vm2046, %v2039, %v2043
  %v2048 = vand.u32 2147483647, %v2038
  %vm2049 = vcmp.eq.f32.partialorder %v2048, 8.507059e+37
  %v2050 = vand.u32 %v2038, 2147483648
  %v2051 = vor.u32 1.1754944e-38, %v2050
  %v2052 = vsel %vm2049, %v2051, %v2047
  %v2053 = vmul.f32 1.0, %v2052
  %v2054 = vtanh.pop %v2007
  %v2055 = vmul.f32 %v2053, %v1929
  %2057 = vrot.lane.b32.xlu0 %v2054, 32
  %v2058 = vpop.permute.xlu0 %2057
  %v2060 = vmul.f32 %v2053, %v2058
  %2062 = vrot.lane.b32.xlu0 %v2060, 32
  %v2063 = vpop.permute.xlu0 %2062
  %v2065 = vadd.f32 %v2055, %v2063
  %v2066 = vtanh.pop %v2065
  %2068 = vrot.lane.b32.xlu0 %v2066, 32
  %v2069 = vpop.permute.xlu0 %2068
  %v2071 = vmul.f32 %v2053, %v2069
  %v2072 = vsel %vm763, %v2071, %v1928
  %v2073 = vsel %vm763, %v2065, %v1929
  %v2074 = vsel %vm763, %v2071, 0.0
  %v2075 = vxor.u32 %v2034, 2147483648
  %v2076 = vmul.f32 %v2075, 1.442695
  %v2077 = vpow.pop %v2076
  %v2078 = vadd.f32 %v2077, 1.0
  %v2079 = vrcp.pop %v2078
  %v2080 = vmul.f32 %v2078, %v2079
  %v2081 = vsub.f32 1.0, %v2080
  %v2082 = vmul.f32 %v2079, %v2081
  %v2083 = vadd.f32 %v2079, %v2082
  %vm2084 = vweird.f32 %v2078
  %vm2085 = vweird.f32 %v2079
  %vm2086 = vmor %vm2084, %vm2085
  %v2087 = vsel %vm2086, %v2079, %v2083
  %v2088 = vand.u32 2147483647, %v2078
  %vm2089 = vcmp.eq.f32.partialorder %v2088, 8.507059e+37
  %v2090 = vand.u32 %v2078, 2147483648
  %v2091 = vor.u32 1.1754944e-38, %v2090
  %v2092 = vsel %vm2089, %v2091, %v2087
  %v2093 = vmul.f32 1.0, %v2092
  %v2094 = vtanh.pop %v2034
  %v2095 = vmul.f32 %v2093, %v1969
  %2097 = vrot.lane.b32.xlu0 %v2094, 32
  %v2098 = vpop.permute.xlu0 %2097
  %v2100 = vmul.f32 %v2093, %v2098
  %2102 = vrot.lane.b32.xlu0 %v2100, 32
  %v2103 = vpop.permute.xlu0 %2102
  %v2105 = vadd.f32 %v2095, %v2103
  %v2106 = vtanh.pop %v2105
  %2108 = vrot.lane.b32.xlu0 %v2106, 32
  %v2109 = vpop.permute.xlu0 %2108
  %v2111 = vmul.f32 %v2093, %v2109
  %v2112 = vsel %vm808, %v2111, %v1968
  %v2113 = vsel %vm808, %v2105, %v1969
  %v2114 = vsel %vm808, %v2111, 0.0
  %2116 = vrot.lane.b32.xlu0 %v2074, 64
  %v2117 = vpop.permute.xlu0 %2116
  %2119 = vst.msk [vmem:[#allocation5 + $0x18] sm:$0xff] %vm111, %v2117
  %2121 = vrot.lane.b32.xlu0 %v2114, 96
  %v2122 = vpop.permute.xlu0 %2121
  %2124 = vst.msk [vmem:[#allocation5 + $0x20] sm:$0xff] %vm362, %v2122
  %v2125 = vld [vmem:[#allocation2 + $0x20] sm:$0xff]
  %2127 = vrot.lane.b32.xlu0 %v2072, 64
  %v2128 = vpop.permute.xlu0 %2127
  %v2129 = vsel %vm111, %v2128, 0
  %2131 = vmatpush.msra.mxu0 0.0
  %2132 = vmatpush.msra.mxu0 0.0
  %2133 = vmatpush.msra.mxu0 0.0
  %2134 = vmatpush.msra.mxu0 0.0
  %2135 = vmatpush.msra.mxu0 0.0
  %2136 = vmatpush.msra.mxu0 0.0
  %2137 = vmatpush.msra.mxu0 0.0
  %2138 = vmatpush.msra.mxu0 0.0
  %2139 = vmatpush.msra.mxu0 0.0
  %2140 = vmatpush.msra.mxu0 0.0
  %2141 = vmatpush.msra.mxu0 0.0
  %2142 = vmatpush.msra.mxu0 0.0
  %2143 = vmatpush.msra.mxu0 %v66
  %2144 = vmatpush.msra.mxu0 %v65
  %2145 = vmatpush.msra.mxu0 %v64
  %2146 = vmatpush.msra.mxu0 %v63
  %2147 = vmatmul.f32.gmra.mxu0 %v2129
  %v2148 = vpop.f32.mrf.mxu0
  %v2149 = vadd.f32 0.0, %v2148
  %2150 = vdwg.mxu0
  %v2151 = vadd.f32 %v2125, %v2149
  %v2152 = vld [vmem:[#allocation3 + $0x18] sm:$0xff]
  %2154 = vrot.lane.b32.xlu0 %v2112, 64
  %v2155 = vpop.permute.xlu0 %2154
  %v2156 = vsel %vm111, %v2155, 0
  %2158 = vmatpush.msra.mxu0 0.0
  %2159 = vmatpush.msra.mxu0 0.0
  %2160 = vmatpush.msra.mxu0 0.0
  %2161 = vmatpush.msra.mxu0 0.0
  %2162 = vmatpush.msra.mxu0 0.0
  %2163 = vmatpush.msra.mxu0 0.0
  %2164 = vmatpush.msra.mxu0 0.0
  %2165 = vmatpush.msra.mxu0 0.0
  %2166 = vmatpush.msra.mxu0 0.0
  %2167 = vmatpush.msra.mxu0 0.0
  %2168 = vmatpush.msra.mxu0 0.0
  %2169 = vmatpush.msra.mxu0 0.0
  %2170 = vmatpush.msra.mxu0 %v70
  %2171 = vmatpush.msra.mxu0 %v69
  %2172 = vmatpush.msra.mxu0 %v68
  %2173 = vmatpush.msra.mxu0 %v67
  %2174 = vmatmul.f32.gmra.mxu0 %v2156
  %v2175 = vpop.f32.mrf.mxu0
  %v2176 = vadd.f32 0.0, %v2175
  %2177 = vdwg.mxu0
  %v2178 = vadd.f32 %v2152, %v2176
  %v2179 = vxor.u32 %v2151, 2147483648
  %v2180 = vmul.f32 %v2179, 1.442695
  %v2181 = vpow.pop %v2180
  %v2182 = vadd.f32 %v2181, 1.0
  %v2183 = vrcp.pop %v2182
  %v2184 = vmul.f32 %v2182, %v2183
  %v2185 = vsub.f32 1.0, %v2184
  %v2186 = vmul.f32 %v2183, %v2185
  %v2187 = vadd.f32 %v2183, %v2186
  %vm2188 = vweird.f32 %v2182
  %vm2189 = vweird.f32 %v2183
  %vm2190 = vmor %vm2188, %vm2189
  %v2191 = vsel %vm2190, %v2183, %v2187
  %v2192 = vand.u32 2147483647, %v2182
  %vm2193 = vcmp.eq.f32.partialorder %v2192, 8.507059e+37
  %v2194 = vand.u32 %v2182, 2147483648
  %v2195 = vor.u32 1.1754944e-38, %v2194
  %v2196 = vsel %vm2193, %v2195, %v2191
  %v2197 = vmul.f32 1.0, %v2196
  %v2198 = vtanh.pop %v2151
  %v2199 = vmul.f32 %v2197, %v2073
  %2201 = vrot.lane.b32.xlu0 %v2198, 32
  %v2202 = vpop.permute.xlu0 %2201
  %v2204 = vmul.f32 %v2197, %v2202
  %2206 = vrot.lane.b32.xlu0 %v2204, 32
  %v2207 = vpop.permute.xlu0 %2206
  %v2209 = vadd.f32 %v2199, %v2207
  %v2210 = vtanh.pop %v2209
  %2212 = vrot.lane.b32.xlu0 %v2210, 32
  %v2213 = vpop.permute.xlu0 %2212
  %v2215 = vmul.f32 %v2197, %v2213
  %v2216 = vsel %vm808, %v2215, %v2072
  %v2217 = vsel %vm808, %v2209, %v2073
  %v2218 = vsel %vm808, %v2215, 0.0
  %v2219 = vxor.u32 %v2178, 2147483648
  %v2220 = vmul.f32 %v2219, 1.442695
  %v2221 = vpow.pop %v2220
  %v2222 = vadd.f32 %v2221, 1.0
  %v2223 = vrcp.pop %v2222
  %v2224 = vmul.f32 %v2222, %v2223
  %v2225 = vsub.f32 1.0, %v2224
  %v2226 = vmul.f32 %v2223, %v2225
  %v2227 = vadd.f32 %v2223, %v2226
  %vm2228 = vweird.f32 %v2222
  %vm2229 = vweird.f32 %v2223
  %vm2230 = vmor %vm2228, %vm2229
  %v2231 = vsel %vm2230, %v2223, %v2227
  %v2232 = vand.u32 2147483647, %v2222
  %vm2233 = vcmp.eq.f32.partialorder %v2232, 8.507059e+37
  %v2234 = vand.u32 %v2222, 2147483648
  %v2235 = vor.u32 1.1754944e-38, %v2234
  %v2236 = vsel %vm2233, %v2235, %v2231
  %v2237 = vmul.f32 1.0, %v2236
  %v2238 = vtanh.pop %v2178
  %v2239 = vmul.f32 %v2237, %v2113
  %2241 = vrot.lane.b32.xlu0 %v2238, 32
  %v2242 = vpop.permute.xlu0 %2241
  %v2244 = vmul.f32 %v2237, %v2242
  %2246 = vrot.lane.b32.xlu0 %v2244, 32
  %v2247 = vpop.permute.xlu0 %2246
  %v2249 = vadd.f32 %v2239, %v2247
  %v2250 = vtanh.pop %v2249
  %2252 = vrot.lane.b32.xlu0 %v2250, 32
  %v2253 = vpop.permute.xlu0 %2252
  %v2255 = vmul.f32 %v2237, %v2253
  %v2256 = vsel %vm763, %v2255, %v2112
  %v2257 = vsel %vm763, %v2249, %v2113
  %v2258 = vsel %vm763, %v2255, 0.0
  %2260 = vrot.lane.b32.xlu0 %v2218, 64
  %v2261 = vpop.permute.xlu0 %2260
  %2263 = vst.msk [vmem:[#allocation5 + $0x20] sm:$0xff] %vm111, %v2261
  %2265 = vrot.lane.b32.xlu0 %v2258, 96
  %v2266 = vpop.permute.xlu0 %2265
  %2268 = vst.msk [vmem:[#allocation5 + $0x18] sm:$0xff] %vm362, %v2266
  %v2269 = vld [vmem:[#allocation2 + $0x28] sm:$0xff]
  %2271 = vrot.lane.b32.xlu0 %v2216, 64
  %v2272 = vpop.permute.xlu0 %2271
  %v2273 = vsel %vm111, %v2272, 0
  %2275 = vmatpush.msra.mxu0 0.0
  %2276 = vmatpush.msra.mxu0 0.0
  %2277 = vmatpush.msra.mxu0 0.0
  %2278 = vmatpush.msra.mxu0 0.0
  %2279 = vmatpush.msra.mxu0 0.0
  %2280 = vmatpush.msra.mxu0 0.0
  %2281 = vmatpush.msra.mxu0 0.0
  %2282 = vmatpush.msra.mxu0 0.0
  %2283 = vmatpush.msra.mxu0 0.0
  %2284 = vmatpush.msra.mxu0 0.0
  %2285 = vmatpush.msra.mxu0 0.0
  %2286 = vmatpush.msra.mxu0 0.0
  %2287 = vmatpush.msra.mxu0 %v66
  %2288 = vmatpush.msra.mxu0 %v65
  %2289 = vmatpush.msra.mxu0 %v64
  %2290 = vmatpush.msra.mxu0 %v63
  %2291 = vmatmul.f32.gmra.mxu0 %v2273
  %v2292 = vpop.f32.mrf.mxu0
  %v2293 = vadd.f32 0.0, %v2292
  %2294 = vdwg.mxu0
  %v2295 = vadd.f32 %v2269, %v2293
  %v2296 = vld [vmem:[#allocation3 + $0x10] sm:$0xff]
  %2298 = vrot.lane.b32.xlu0 %v2256, 64
  %v2299 = vpop.permute.xlu0 %2298
  %v2300 = vsel %vm111, %v2299, 0
  %2302 = vmatpush.msra.mxu0 0.0
  %2303 = vmatpush.msra.mxu0 0.0
  %2304 = vmatpush.msra.mxu0 0.0
  %2305 = vmatpush.msra.mxu0 0.0
  %2306 = vmatpush.msra.mxu0 0.0
  %2307 = vmatpush.msra.mxu0 0.0
  %2308 = vmatpush.msra.mxu0 0.0
  %2309 = vmatpush.msra.mxu0 0.0
  %2310 = vmatpush.msra.mxu0 0.0
  %2311 = vmatpush.msra.mxu0 0.0
  %2312 = vmatpush.msra.mxu0 0.0
  %2313 = vmatpush.msra.mxu0 0.0
  %2314 = vmatpush.msra.mxu0 %v70
  %2315 = vmatpush.msra.mxu0 %v69
  %2316 = vmatpush.msra.mxu0 %v68
  %2317 = vmatpush.msra.mxu0 %v67
  %2318 = vmatmul.f32.gmra.mxu0 %v2300
  %v2319 = vpop.f32.mrf.mxu0
  %v2320 = vadd.f32 0.0, %v2319
  %2321 = vdwg.mxu0
  %v2322 = vadd.f32 %v2296, %v2320
  %v2323 = vxor.u32 %v2295, 2147483648
  %v2324 = vmul.f32 %v2323, 1.442695
  %v2325 = vpow.pop %v2324
  %v2326 = vadd.f32 %v2325, 1.0
  %v2327 = vrcp.pop %v2326
  %v2328 = vmul.f32 %v2326, %v2327
  %v2329 = vsub.f32 1.0, %v2328
  %v2330 = vmul.f32 %v2327, %v2329
  %v2331 = vadd.f32 %v2327, %v2330
  %vm2332 = vweird.f32 %v2326
  %vm2333 = vweird.f32 %v2327
  %vm2334 = vmor %vm2332, %vm2333
  %v2335 = vsel %vm2334, %v2327, %v2331
  %v2336 = vand.u32 2147483647, %v2326
  %vm2337 = vcmp.eq.f32.partialorder %v2336, 8.507059e+37
  %v2338 = vand.u32 %v2326, 2147483648
  %v2339 = vor.u32 1.1754944e-38, %v2338
  %v2340 = vsel %vm2337, %v2339, %v2335
  %v2341 = vmul.f32 1.0, %v2340
  %v2342 = vtanh.pop %v2295
  %v2343 = vmul.f32 %v2341, %v2217
  %2345 = vrot.lane.b32.xlu0 %v2342, 32
  %v2346 = vpop.permute.xlu0 %2345
  %v2348 = vmul.f32 %v2341, %v2346
  %2350 = vrot.lane.b32.xlu0 %v2348, 32
  %v2351 = vpop.permute.xlu0 %2350
  %v2353 = vadd.f32 %v2343, %v2351
  %v2354 = vtanh.pop %v2353
  %2356 = vrot.lane.b32.xlu0 %v2354, 32
  %v2357 = vpop.permute.xlu0 %2356
  %v2359 = vmul.f32 %v2341, %v2357
  %v2360 = vsel %vm654, %v2359, %v2216
  %v2361 = vsel %vm654, %v2353, %v2217
  %v2362 = vsel %vm654, %v2359, 0.0
  %v2363 = vxor.u32 %v2322, 2147483648
  %v2364 = vmul.f32 %v2363, 1.442695
  %v2365 = vpow.pop %v2364
  %v2366 = vadd.f32 %v2365, 1.0
  %v2367 = vrcp.pop %v2366
  %v2368 = vmul.f32 %v2366, %v2367
  %v2369 = vsub.f32 1.0, %v2368
  %v2370 = vmul.f32 %v2367, %v2369
  %v2371 = vadd.f32 %v2367, %v2370
  %vm2372 = vweird.f32 %v2366
  %vm2373 = vweird.f32 %v2367
  %vm2374 = vmor %vm2372, %vm2373
  %v2375 = vsel %vm2374, %v2367, %v2371
  %v2376 = vand.u32 2147483647, %v2366
  %vm2377 = vcmp.eq.f32.partialorder %v2376, 8.507059e+37
  %v2378 = vand.u32 %v2366, 2147483648
  %v2379 = vor.u32 1.1754944e-38, %v2378
  %v2380 = vsel %vm2377, %v2379, %v2375
  %v2381 = vmul.f32 1.0, %v2380
  %v2382 = vtanh.pop %v2322
  %v2383 = vmul.f32 %v2381, %v2257
  %2385 = vrot.lane.b32.xlu0 %v2382, 32
  %v2386 = vpop.permute.xlu0 %2385
  %v2388 = vmul.f32 %v2381, %v2386
  %2390 = vrot.lane.b32.xlu0 %v2388, 32
  %v2391 = vpop.permute.xlu0 %2390
  %v2393 = vadd.f32 %v2383, %v2391
  %v2394 = vtanh.pop %v2393
  %2396 = vrot.lane.b32.xlu0 %v2394, 32
  %v2397 = vpop.permute.xlu0 %2396
  %v2399 = vmul.f32 %v2381, %v2397
  %v2400 = vsel %vm609, %v2399, %v2256
  %v2401 = vsel %vm609, %v2393, %v2257
  %v2402 = vsel %vm609, %v2399, 0.0
  %2404 = vrot.lane.b32.xlu0 %v2362, 64
  %v2405 = vpop.permute.xlu0 %2404
  %2407 = vst.msk [vmem:[#allocation5 + $0x28] sm:$0xff] %vm111, %v2405
  %2409 = vrot.lane.b32.xlu0 %v2402, 96
  %v2410 = vpop.permute.xlu0 %2409
  %2412 = vst.msk [vmem:[#allocation5 + $0x10] sm:$0xff] %vm362, %v2410
  %v2413 = vld [vmem:[#allocation2 + $0x30] sm:$0xff]
  %2415 = vrot.lane.b32.xlu0 %v2360, 64
  %v2416 = vpop.permute.xlu0 %2415
  %v2417 = vsel %vm111, %v2416, 0
  %2419 = vmatpush.msra.mxu0 0.0
  %2420 = vmatpush.msra.mxu0 0.0
  %2421 = vmatpush.msra.mxu0 0.0
  %2422 = vmatpush.msra.mxu0 0.0
  %2423 = vmatpush.msra.mxu0 0.0
  %2424 = vmatpush.msra.mxu0 0.0
  %2425 = vmatpush.msra.mxu0 0.0
  %2426 = vmatpush.msra.mxu0 0.0
  %2427 = vmatpush.msra.mxu0 0.0
  %2428 = vmatpush.msra.mxu0 0.0
  %2429 = vmatpush.msra.mxu0 0.0
  %2430 = vmatpush.msra.mxu0 0.0
  %2431 = vmatpush.msra.mxu0 %v66
  %2432 = vmatpush.msra.mxu0 %v65
  %2433 = vmatpush.msra.mxu0 %v64
  %2434 = vmatpush.msra.mxu0 %v63
  %2435 = vmatmul.f32.gmra.mxu0 %v2417
  %v2436 = vpop.f32.mrf.mxu0
  %v2437 = vadd.f32 0.0, %v2436
  %2438 = vdwg.mxu0
  %v2439 = vadd.f32 %v2413, %v2437
  %v2440 = vld [vmem:[#allocation3 + $0x8] sm:$0xff]
  %2442 = vrot.lane.b32.xlu0 %v2400, 64
  %v2443 = vpop.permute.xlu0 %2442
  %v2444 = vsel %vm111, %v2443, 0
  %2446 = vmatpush.msra.mxu0 0.0
  %2447 = vmatpush.msra.mxu0 0.0
  %2448 = vmatpush.msra.mxu0 0.0
  %2449 = vmatpush.msra.mxu0 0.0
  %2450 = vmatpush.msra.mxu0 0.0
  %2451 = vmatpush.msra.mxu0 0.0
  %2452 = vmatpush.msra.mxu0 0.0
  %2453 = vmatpush.msra.mxu0 0.0
  %2454 = vmatpush.msra.mxu0 0.0
  %2455 = vmatpush.msra.mxu0 0.0
  %2456 = vmatpush.msra.mxu0 0.0
  %2457 = vmatpush.msra.mxu0 0.0
  %2458 = vmatpush.msra.mxu0 %v70
  %2459 = vmatpush.msra.mxu0 %v69
  %2460 = vmatpush.msra.mxu0 %v68
  %2461 = vmatpush.msra.mxu0 %v67
  %2462 = vmatmul.f32.gmra.mxu0 %v2444
  %v2463 = vpop.f32.mrf.mxu0
  %v2464 = vadd.f32 0.0, %v2463
  %2465 = vdwg.mxu0
  %v2466 = vadd.f32 %v2440, %v2464
  %v2467 = vxor.u32 %v2439, 2147483648
  %v2468 = vmul.f32 %v2467, 1.442695
  %v2469 = vpow.pop %v2468
  %v2470 = vadd.f32 %v2469, 1.0
  %v2471 = vrcp.pop %v2470
  %v2472 = vmul.f32 %v2470, %v2471
  %v2473 = vsub.f32 1.0, %v2472
  %v2474 = vmul.f32 %v2471, %v2473
  %v2475 = vadd.f32 %v2471, %v2474
  %vm2476 = vweird.f32 %v2470
  %vm2477 = vweird.f32 %v2471
  %vm2478 = vmor %vm2476, %vm2477
  %v2479 = vsel %vm2478, %v2471, %v2475
  %v2480 = vand.u32 2147483647, %v2470
  %vm2481 = vcmp.eq.f32.partialorder %v2480, 8.507059e+37
  %v2482 = vand.u32 %v2470, 2147483648
  %v2483 = vor.u32 1.1754944e-38, %v2482
  %v2484 = vsel %vm2481, %v2483, %v2479
  %v2485 = vmul.f32 1.0, %v2484
  %v2486 = vtanh.pop %v2439
  %v2487 = vmul.f32 %v2485, %v2361
  %2489 = vrot.lane.b32.xlu0 %v2486, 32
  %v2490 = vpop.permute.xlu0 %2489
  %v2492 = vmul.f32 %v2485, %v2490
  %2494 = vrot.lane.b32.xlu0 %v2492, 32
  %v2495 = vpop.permute.xlu0 %2494
  %v2497 = vadd.f32 %v2487, %v2495
  %v2498 = vtanh.pop %v2497
  %2500 = vrot.lane.b32.xlu0 %v2498, 32
  %v2501 = vpop.permute.xlu0 %2500
  %v2503 = vmul.f32 %v2485, %v2501
  %v2504 = vsel %vm500, %v2503, %v2360
  %v2505 = vsel %vm500, %v2497, %v2361
  %v2506 = vsel %vm500, %v2503, 0.0
  %v2507 = vxor.u32 %v2466, 2147483648
  %v2508 = vmul.f32 %v2507, 1.442695
  %v2509 = vpow.pop %v2508
  %v2510 = vadd.f32 %v2509, 1.0
  %v2511 = vrcp.pop %v2510
  %v2512 = vmul.f32 %v2510, %v2511
  %v2513 = vsub.f32 1.0, %v2512
  %v2514 = vmul.f32 %v2511, %v2513
  %v2515 = vadd.f32 %v2511, %v2514
  %vm2516 = vweird.f32 %v2510
  %vm2517 = vweird.f32 %v2511
  %vm2518 = vmor %vm2516, %vm2517
  %v2519 = vsel %vm2518, %v2511, %v2515
  %v2520 = vand.u32 2147483647, %v2510
  %vm2521 = vcmp.eq.f32.partialorder %v2520, 8.507059e+37
  %v2522 = vand.u32 %v2510, 2147483648
  %v2523 = vor.u32 1.1754944e-38, %v2522
  %v2524 = vsel %vm2521, %v2523, %v2519
  %v2525 = vmul.f32 1.0, %v2524
  %v2526 = vtanh.pop %v2466
  %v2527 = vmul.f32 %v2525, %v2401
  %2529 = vrot.lane.b32.xlu0 %v2526, 32
  %v2530 = vpop.permute.xlu0 %2529
  %v2532 = vmul.f32 %v2525, %v2530
  %2534 = vrot.lane.b32.xlu0 %v2532, 32
  %v2535 = vpop.permute.xlu0 %2534
  %v2537 = vadd.f32 %v2527, %v2535
  %v2538 = vtanh.pop %v2537
  %2540 = vrot.lane.b32.xlu0 %v2538, 32
  %v2541 = vpop.permute.xlu0 %2540
  %v2543 = vmul.f32 %v2525, %v2541
  %v2544 = vsel %vm455, %v2543, %v2400
  %v2545 = vsel %vm455, %v2537, %v2401
  %v2546 = vsel %vm455, %v2543, 0.0
  %2548 = vrot.lane.b32.xlu0 %v2506, 64
  %v2549 = vpop.permute.xlu0 %2548
  %2551 = vst.msk [vmem:[#allocation5 + $0x30] sm:$0xff] %vm111, %v2549
  %2553 = vrot.lane.b32.xlu0 %v2546, 96
  %v2554 = vpop.permute.xlu0 %2553
  %2556 = vst.msk [vmem:[#allocation5 + $0x8] sm:$0xff] %vm362, %v2554
  %v2557 = vld [vmem:[#allocation2 + $0x38] sm:$0xff]
  %2559 = vrot.lane.b32.xlu0 %v2504, 64
  %v2560 = vpop.permute.xlu0 %2559
  %v2561 = vsel %vm111, %v2560, 0
  %2563 = vmatpush.msra.mxu0 0.0
  %2564 = vmatpush.msra.mxu0 0.0
  %2565 = vmatpush.msra.mxu0 0.0
  %2566 = vmatpush.msra.mxu0 0.0
  %2567 = vmatpush.msra.mxu0 0.0
  %2568 = vmatpush.msra.mxu0 0.0
  %2569 = vmatpush.msra.mxu0 0.0
  %2570 = vmatpush.msra.mxu0 0.0
  %2571 = vmatpush.msra.mxu0 0.0
  %2572 = vmatpush.msra.mxu0 0.0
  %2573 = vmatpush.msra.mxu0 0.0
  %2574 = vmatpush.msra.mxu0 0.0
  %2575 = vmatpush.msra.mxu0 %v66
  %2576 = vmatpush.msra.mxu0 %v65
  %2577 = vmatpush.msra.mxu0 %v64
  %2578 = vmatpush.msra.mxu0 %v63
  %2579 = vmatmul.f32.gmra.mxu0 %v2561
  %v2580 = vpop.f32.mrf.mxu0
  %v2581 = vadd.f32 0.0, %v2580
  %2582 = vdwg.mxu0
  %v2583 = vadd.f32 %v2557, %v2581
  %v2584 = vld [vmem:[#allocation3] sm:$0xff]
  %2586 = vrot.lane.b32.xlu0 %v2544, 64
  %v2587 = vpop.permute.xlu0 %2586
  %v2588 = vsel %vm111, %v2587, 0
  %2590 = vmatpush.msra.mxu0 0.0
  %2591 = vmatpush.msra.mxu0 0.0
  %2592 = vmatpush.msra.mxu0 0.0
  %2593 = vmatpush.msra.mxu0 0.0
  %2594 = vmatpush.msra.mxu0 0.0
  %2595 = vmatpush.msra.mxu0 0.0
  %2596 = vmatpush.msra.mxu0 0.0
  %2597 = vmatpush.msra.mxu0 0.0
  %2598 = vmatpush.msra.mxu0 0.0
  %2599 = vmatpush.msra.mxu0 0.0
  %2600 = vmatpush.msra.mxu0 0.0
  %2601 = vmatpush.msra.mxu0 0.0
  %2602 = vmatpush.msra.mxu0 %v70
  %2603 = vmatpush.msra.mxu0 %v69
  %2604 = vmatpush.msra.mxu0 %v68
  %2605 = vmatpush.msra.mxu0 %v67
  %2606 = vmatmul.f32.gmra.mxu0 %v2588
  %v2607 = vpop.f32.mrf.mxu0
  %v2608 = vadd.f32 0.0, %v2607
  %2609 = vdwg.mxu0
  %v2610 = vadd.f32 %v2584, %v2608
  %v2611 = vxor.u32 %v2583, 2147483648
  %v2612 = vmul.f32 %v2611, 1.442695
  %v2613 = vpow.pop %v2612
  %v2614 = vadd.f32 %v2613, 1.0
  %v2615 = vrcp.pop %v2614
  %v2616 = vmul.f32 %v2614, %v2615
  %v2617 = vsub.f32 1.0, %v2616
  %v2618 = vmul.f32 %v2615, %v2617
  %v2619 = vadd.f32 %v2615, %v2618
  %vm2620 = vweird.f32 %v2614
  %vm2621 = vweird.f32 %v2615
  %vm2622 = vmor %vm2620, %vm2621
  %v2623 = vsel %vm2622, %v2615, %v2619
  %v2624 = vand.u32 2147483647, %v2614
  %vm2625 = vcmp.eq.f32.partialorder %v2624, 8.507059e+37
  %v2626 = vand.u32 %v2614, 2147483648
  %v2627 = vor.u32 1.1754944e-38, %v2626
  %v2628 = vsel %vm2625, %v2627, %v2623
  %v2629 = vmul.f32 1.0, %v2628
  %v2630 = vtanh.pop %v2583
  %v2631 = vmul.f32 %v2629, %v2505
  %2633 = vrot.lane.b32.xlu0 %v2630, 32
  %v2634 = vpop.permute.xlu0 %2633
  %v2636 = vmul.f32 %v2629, %v2634
  %2638 = vrot.lane.b32.xlu0 %v2636, 32
  %v2639 = vpop.permute.xlu0 %2638
  %v2641 = vadd.f32 %v2631, %v2639
  %v2642 = vtanh.pop %v2641
  %2644 = vrot.lane.b32.xlu0 %v2642, 32
  %v2645 = vpop.permute.xlu0 %2644
  %v2647 = vmul.f32 %v2629, %v2645
  %v2648 = vsel %vm350, %v2647, 0.0
  %v2649 = vxor.u32 %v2610, 2147483648
  %v2650 = vmul.f32 %v2649, 1.442695
  %v2651 = vpow.pop %v2650
  %v2652 = vadd.f32 %v2651, 1.0
  %v2653 = vrcp.pop %v2652
  %v2654 = vmul.f32 %v2652, %v2653
  %v2655 = vsub.f32 1.0, %v2654
  %v2656 = vmul.f32 %v2653, %v2655
  %v2657 = vadd.f32 %v2653, %v2656
  %vm2658 = vweird.f32 %v2652
  %vm2659 = vweird.f32 %v2653
  %vm2660 = vmor %vm2658, %vm2659
  %v2661 = vsel %vm2660, %v2653, %v2657
  %v2662 = vand.u32 2147483647, %v2652
  %vm2663 = vcmp.eq.f32.partialorder %v2662, 8.507059e+37
  %v2664 = vand.u32 %v2652, 2147483648
  %v2665 = vor.u32 1.1754944e-38, %v2664
  %v2666 = vsel %vm2663, %v2665, %v2661
  %v2667 = vmul.f32 1.0, %v2666
  %v2668 = vtanh.pop %v2610
  %v2669 = vmul.f32 %v2667, %v2545
  %2671 = vrot.lane.b32.xlu0 %v2668, 32
  %v2672 = vpop.permute.xlu0 %2671
  %v2674 = vmul.f32 %v2667, %v2672
  %2676 = vrot.lane.b32.xlu0 %v2674, 32
  %v2677 = vpop.permute.xlu0 %2676
  %v2679 = vadd.f32 %v2669, %v2677
  %v2680 = vtanh.pop %v2679
  %2682 = vrot.lane.b32.xlu0 %v2680, 32
  %v2683 = vpop.permute.xlu0 %2682
  %v2685 = vmul.f32 %v2667, %v2683
  %v2686 = vsel %vm306, %v2685, 0.0
  %2688 = vrot.lane.b32.xlu0 %v2648, 64
  %v2689 = vpop.permute.xlu0 %2688
  %2691 = vst.msk [vmem:[#allocation5 + $0x38] sm:$0xff] %vm111, %v2689
  %2693 = vrot.lane.b32.xlu0 %v2686, 96
  %v2694 = vpop.permute.xlu0 %2693
  %2696 = vst.msk [vmem:[#allocation5] sm:$0xff] %vm362, %v2694
  %v2697 = vld [vmem:[#allocation5] sm:$0xff]
  %v2698 = vld [vmem:[#allocation5 + $0x8] sm:$0xff]
  %v2699 = vld [vmem:[#allocation5 + $0x10] sm:$0xff]
  %v2700 = vld [vmem:[#allocation5 + $0x18] sm:$0xff]
  %v2701 = vld [vmem:[#allocation5 + $0x20] sm:$0xff]
  %v2702 = vld [vmem:[#allocation5 + $0x28] sm:$0xff]
  %v2703 = vld [vmem:[#allocation5 + $0x30] sm:$0xff]
  %v2704 = vld [vmem:[#allocation5 + $0x38] sm:$0xff]
  %v2705 = vpack.c.bf16 %v2698, %v2697
  %v2706 = vpack.c.bf16 %v2700, %v2699
  %v2707 = vpack.c.bf16 %v2702, %v2701
  %v2708 = vpack.c.bf16 %v2704, %v2703
  %v2709 = vld [vmem:[%s14] sm:$0xf]
  %v2710 = vld [vmem:[%s14 + $0x4] sm:$0xf]
  %v2711 = vld [vmem:[%s14 + $0x8] sm:$0xf]
  %v2712 = vld [vmem:[%s14 + $0xc] sm:$0xf]
  %v2713 = vld [vmem:[%s14 + $0x10] sm:$0xf]
  %v2714 = vld [vmem:[%s14 + $0x14] sm:$0xf]
  %v2715 = vld [vmem:[%s14 + $0x18] sm:$0xf]
  %v2716 = vld [vmem:[%s14 + $0x1c] sm:$0xf]
  %v2717 = vld [vmem:[%s15] sm:$0x1]
  %v2719 = vperm.slane %v2717, 0
  %v2729 = vunpack.c.l.b16 %v2709
  %v2730 = vunpack.c.l.b16 %v2710
  %v2731 = vunpack.c.l.b16 %v2711
  %v2732 = vunpack.c.l.b16 %v2712
  %v2733 = vunpack.c.l.b16 %v2713
  %v2734 = vunpack.c.l.b16 %v2714
  %v2735 = vunpack.c.l.b16 %v2715
  %v2736 = vunpack.c.l.b16 %v2716
  %v2737 = vpack.c.b16 %v2730, %v2729
  %v2738 = vpack.c.b16 %v2732, %v2731
  %v2739 = vpack.c.b16 %v2734, %v2733
  %v2740 = vpack.c.b16 %v2736, %v2735
  %v2746 = vsel %vm1442, %v2705, 0
  %v2749 = vsel %vm1442, %v2706, 0
  %v2752 = vsel %vm1442, %v2707, 0
  %v2755 = vsel %vm1442, %v2708, 0
  %2757 = vmatpush.bf16.msra.mxu0 0
  %2758 = vmatpush.bf16.msra.mxu0 0
  %2759 = vmatpush.bf16.msra.mxu0 0
  %2760 = vmatpush.bf16.msra.mxu0 0
  %2761 = vmatpush.bf16.msra.mxu0 %v2740
  %2762 = vmatpush.bf16.msra.mxu0 %v2739
  %2763 = vmatpush.bf16.msra.mxu0 %v2738
  %2764 = vmatpush.bf16.msra.mxu0 %v2737
  %2765 = vmatmul.bf16.gmra.mxu0 %v2746
  %v2766 = vpop.f32.mrf.mxu0
  %v2767 = vadd.f32 %v2719, %v2766
  %v2768 = vpop.f32.mrf.mxu0
  %v2769 = vadd.f32 %v2719, %v2768
  %2770 = vmatmul.bf16.gmra.mxu0 %v2749
  %v2771 = vpop.f32.mrf.mxu0
  %v2772 = vadd.f32 %v2719, %v2771
  %v2773 = vpop.f32.mrf.mxu0
  %v2774 = vadd.f32 %v2719, %v2773
  %2775 = vmatmul.bf16.gmra.mxu0 %v2752
  %v2776 = vpop.f32.mrf.mxu0
  %v2777 = vadd.f32 %v2719, %v2776
  %v2778 = vpop.f32.mrf.mxu0
  %v2779 = vadd.f32 %v2719, %v2778
  %2780 = vmatmul.bf16.gmra.mxu0 %v2755
  %v2781 = vpop.f32.mrf.mxu0
  %v2782 = vadd.f32 %v2719, %v2781
  %v2783 = vpop.f32.mrf.mxu0
  %v2784 = vadd.f32 %v2719, %v2783
  %2785 = vdwg.mxu0
  %v2786 = vlaneseq
  %v2787 = vand.u32 %v2786, 127
  %2788 = vset.pattern.permute.xlu0 0
  %2789 = vperm.xlu0 %2788, %v54
  %v2790 = vpop.permute.xlu0 %2789
  %vm2791 = vcmp.gt.s32.totalorder %v2790, 0
  %vm2792 = vcmp.gt.s32.totalorder %v2790, 1
  %vm2793 = vcmp.gt.s32.totalorder %v2790, 2
  %vm2794 = vcmp.gt.s32.totalorder %v2790, 3
  %vm2795 = vcmp.gt.s32.totalorder %v2790, 4
  %vm2796 = vcmp.gt.s32.totalorder %v2790, 5
  %vm2797 = vcmp.gt.s32.totalorder %v2790, 6
  %vm2798 = vcmp.gt.s32.totalorder %v2790, 7
  %v2799 = vsel %vm2791, %v2767, 0.0
  %v2800 = vsel %vm2792, %v2769, 0.0
  %v2801 = vsel %vm2793, %v2772, 0.0
  %v2802 = vsel %vm2794, %v2774, 0.0
  %v2803 = vsel %vm2795, %v2777, 0.0
  %v2804 = vsel %vm2796, %v2779, 0.0
  %v2805 = vsel %vm2797, %v2782, 0.0
  %v2806 = vsel %vm2798, %v2784, 0.0
  %vm2807 = vcmp.lt.s32.totalorder %v2787, 8
  %v2808 = vsel %vm2807, %v2799, -inf
  %v2809 = vsel %vm2807, %v2800, -inf
  %v2810 = vsel %vm2807, %v2801, -inf
  %v2811 = vsel %vm2807, %v2802, -inf
  %v2812 = vsel %vm2807, %v2803, -inf
  %v2813 = vsel %vm2807, %v2804, -inf
  %v2814 = vsel %vm2807, %v2805, -inf
  %v2815 = vsel %vm2807, %v2806, -inf
  %2816 = vmax.xlane.f32.xlu0 %v2808
  %v2817 = vpop.xlane.xlu0 %2816
  %2818 = vmax.xlane.f32.xlu0 %v2809
  %v2819 = vpop.xlane.xlu0 %2818
  %2820 = vmax.xlane.f32.xlu0 %v2810
  %v2821 = vpop.xlane.xlu0 %2820
  %2822 = vmax.xlane.f32.xlu0 %v2811
  %v2823 = vpop.xlane.xlu0 %2822
  %2824 = vmax.xlane.f32.xlu0 %v2812
  %v2825 = vpop.xlane.xlu0 %2824
  %2826 = vmax.xlane.f32.xlu0 %v2813
  %v2827 = vpop.xlane.xlu0 %2826
  %2828 = vmax.xlane.f32.xlu0 %v2814
  %v2829 = vpop.xlane.xlu0 %2828
  %2830 = vmax.xlane.f32.xlu0 %v2815
  %v2831 = vpop.xlane.xlu0 %2830
  %v2832 = vsub.f32 %v2808, %v2817
  %v2833 = vsub.f32 %v2809, %v2819
  %v2834 = vsub.f32 %v2810, %v2821
  %v2835 = vsub.f32 %v2811, %v2823
  %v2836 = vsub.f32 %v2812, %v2825
  %v2837 = vsub.f32 %v2813, %v2827
  %v2838 = vsub.f32 %v2814, %v2829
  %v2839 = vsub.f32 %v2815, %v2831
  %v2840 = vmul.f32 %v2832, 1.442695
  %v2841 = vpow.pop %v2840
  %v2842 = vmul.f32 %v2833, 1.442695
  %v2843 = vpow.pop %v2842
  %v2844 = vmul.f32 %v2834, 1.442695
  %v2845 = vpow.pop %v2844
  %v2846 = vmul.f32 %v2835, 1.442695
  %v2847 = vpow.pop %v2846
  %v2848 = vmul.f32 %v2836, 1.442695
  %v2849 = vpow.pop %v2848
  %v2850 = vmul.f32 %v2837, 1.442695
  %v2851 = vpow.pop %v2850
  %v2852 = vmul.f32 %v2838, 1.442695
  %v2853 = vpow.pop %v2852
  %v2854 = vmul.f32 %v2839, 1.442695
  %v2855 = vpow.pop %v2854
  %2856 = vadd.xlane.f32.xlu0 %v2841
  %v2857 = vpop.xlane.xlu0 %2856
  %2858 = vadd.xlane.f32.xlu0 %v2843
  %v2859 = vpop.xlane.xlu0 %2858
  %2860 = vadd.xlane.f32.xlu0 %v2845
  %v2861 = vpop.xlane.xlu0 %2860
  %2862 = vadd.xlane.f32.xlu0 %v2847
  %v2863 = vpop.xlane.xlu0 %2862
  %2864 = vadd.xlane.f32.xlu0 %v2849
  %v2865 = vpop.xlane.xlu0 %2864
  %2866 = vadd.xlane.f32.xlu0 %v2851
  %v2867 = vpop.xlane.xlu0 %2866
  %2868 = vadd.xlane.f32.xlu0 %v2853
  %v2869 = vpop.xlane.xlu0 %2868
  %2870 = vadd.xlane.f32.xlu0 %v2855
  %v2871 = vpop.xlane.xlu0 %2870
  %v2872 = vrcp.pop %v2857
  %v2873 = vmul.f32 %v2857, %v2872
  %v2874 = vsub.f32 1.0, %v2873
  %v2875 = vmul.f32 %v2872, %v2874
  %v2876 = vadd.f32 %v2872, %v2875
  %vm2877 = vweird.f32 %v2857
  %vm2878 = vweird.f32 %v2872
  %vm2879 = vmor %vm2877, %vm2878
  %v2880 = vsel %vm2879, %v2872, %v2876
  %v2881 = vand.u32 2147483647, %v2857
  %vm2882 = vcmp.eq.f32.partialorder %v2881, 8.507059e+37
  %v2883 = vand.u32 %v2857, 2147483648
  %v2884 = vor.u32 1.1754944e-38, %v2883
  %v2885 = vsel %vm2882, %v2884, %v2880
  %v2886 = vmul.f32 %v2841, %v2885
  %v2887 = vrcp.pop %v2859
  %v2888 = vmul.f32 %v2859, %v2887
  %v2889 = vsub.f32 1.0, %v2888
  %v2890 = vmul.f32 %v2887, %v2889
  %v2891 = vadd.f32 %v2887, %v2890
  %vm2892 = vweird.f32 %v2859
  %vm2893 = vweird.f32 %v2887
  %vm2894 = vmor %vm2892, %vm2893
  %v2895 = vsel %vm2894, %v2887, %v2891
  %v2896 = vand.u32 2147483647, %v2859
  %vm2897 = vcmp.eq.f32.partialorder %v2896, 8.507059e+37
  %v2898 = vand.u32 %v2859, 2147483648
  %v2899 = vor.u32 1.1754944e-38, %v2898
  %v2900 = vsel %vm2897, %v2899, %v2895
  %v2901 = vmul.f32 %v2843, %v2900
  %v2902 = vrcp.pop %v2861
  %v2903 = vmul.f32 %v2861, %v2902
  %v2904 = vsub.f32 1.0, %v2903
  %v2905 = vmul.f32 %v2902, %v2904
  %v2906 = vadd.f32 %v2902, %v2905
  %vm2907 = vweird.f32 %v2861
  %vm2908 = vweird.f32 %v2902
  %vm2909 = vmor %vm2907, %vm2908
  %v2910 = vsel %vm2909, %v2902, %v2906
  %v2911 = vand.u32 2147483647, %v2861
  %vm2912 = vcmp.eq.f32.partialorder %v2911, 8.507059e+37
  %v2913 = vand.u32 %v2861, 2147483648
  %v2914 = vor.u32 1.1754944e-38, %v2913
  %v2915 = vsel %vm2912, %v2914, %v2910
  %v2916 = vmul.f32 %v2845, %v2915
  %v2917 = vrcp.pop %v2863
  %v2918 = vmul.f32 %v2863, %v2917
  %v2919 = vsub.f32 1.0, %v2918
  %v2920 = vmul.f32 %v2917, %v2919
  %v2921 = vadd.f32 %v2917, %v2920
  %vm2922 = vweird.f32 %v2863
  %vm2923 = vweird.f32 %v2917
  %vm2924 = vmor %vm2922, %vm2923
  %v2925 = vsel %vm2924, %v2917, %v2921
  %v2926 = vand.u32 2147483647, %v2863
  %vm2927 = vcmp.eq.f32.partialorder %v2926, 8.507059e+37
  %v2928 = vand.u32 %v2863, 2147483648
  %v2929 = vor.u32 1.1754944e-38, %v2928
  %v2930 = vsel %vm2927, %v2929, %v2925
  %v2931 = vmul.f32 %v2847, %v2930
  %v2932 = vrcp.pop %v2865
  %v2933 = vmul.f32 %v2865, %v2932
  %v2934 = vsub.f32 1.0, %v2933
  %v2935 = vmul.f32 %v2932, %v2934
  %v2936 = vadd.f32 %v2932, %v2935
  %vm2937 = vweird.f32 %v2865
  %vm2938 = vweird.f32 %v2932
  %vm2939 = vmor %vm2937, %vm2938
  %v2940 = vsel %vm2939, %v2932, %v2936
  %v2941 = vand.u32 2147483647, %v2865
  %vm2942 = vcmp.eq.f32.partialorder %v2941, 8.507059e+37
  %v2943 = vand.u32 %v2865, 2147483648
  %v2944 = vor.u32 1.1754944e-38, %v2943
  %v2945 = vsel %vm2942, %v2944, %v2940
  %v2946 = vmul.f32 %v2849, %v2945
  %v2947 = vrcp.pop %v2867
  %v2948 = vmul.f32 %v2867, %v2947
  %v2949 = vsub.f32 1.0, %v2948
  %v2950 = vmul.f32 %v2947, %v2949
  %v2951 = vadd.f32 %v2947, %v2950
  %vm2952 = vweird.f32 %v2867
  %vm2953 = vweird.f32 %v2947
  %vm2954 = vmor %vm2952, %vm2953
  %v2955 = vsel %vm2954, %v2947, %v2951
  %v2956 = vand.u32 2147483647, %v2867
  %vm2957 = vcmp.eq.f32.partialorder %v2956, 8.507059e+37
  %v2958 = vand.u32 %v2867, 2147483648
  %v2959 = vor.u32 1.1754944e-38, %v2958
  %v2960 = vsel %vm2957, %v2959, %v2955
  %v2961 = vmul.f32 %v2851, %v2960
  %v2962 = vrcp.pop %v2869
  %v2963 = vmul.f32 %v2869, %v2962
  %v2964 = vsub.f32 1.0, %v2963
  %v2965 = vmul.f32 %v2962, %v2964
  %v2966 = vadd.f32 %v2962, %v2965
  %vm2967 = vweird.f32 %v2869
  %vm2968 = vweird.f32 %v2962
  %vm2969 = vmor %vm2967, %vm2968
  %v2970 = vsel %vm2969, %v2962, %v2966
  %v2971 = vand.u32 2147483647, %v2869
  %vm2972 = vcmp.eq.f32.partialorder %v2971, 8.507059e+37
  %v2973 = vand.u32 %v2869, 2147483648
  %v2974 = vor.u32 1.1754944e-38, %v2973
  %v2975 = vsel %vm2972, %v2974, %v2970
  %v2976 = vmul.f32 %v2853, %v2975
  %v2977 = vrcp.pop %v2871
  %v2978 = vmul.f32 %v2871, %v2977
  %v2979 = vsub.f32 1.0, %v2978
  %v2980 = vmul.f32 %v2977, %v2979
  %v2981 = vadd.f32 %v2977, %v2980
  %vm2982 = vweird.f32 %v2871
  %vm2983 = vweird.f32 %v2977
  %vm2984 = vmor %vm2982, %vm2983
  %v2985 = vsel %vm2984, %v2977, %v2981
  %v2986 = vand.u32 2147483647, %v2871
  %vm2987 = vcmp.eq.f32.partialorder %v2986, 8.507059e+37
  %v2988 = vand.u32 %v2871, 2147483648
  %v2989 = vor.u32 1.1754944e-38, %v2988
  %v2990 = vsel %vm2987, %v2989, %v2985
  %v2991 = vmul.f32 %v2855, %v2990
  %2992 = vst [vmem:[%s16] sm:$0xff] %v2886
  %2993 = vst [vmem:[%s16 + $0x8] sm:$0xff] %v2901
  %2994 = vst [vmem:[%s16 + $0x10] sm:$0xff] %v2916
  %2995 = vst [vmem:[%s16 + $0x18] sm:$0xff] %v2931
  %2996 = vst [vmem:[%s16 + $0x20] sm:$0xff] %v2946
  %2997 = vst [vmem:[%s16 + $0x28] sm:$0xff] %v2961
  %2998 = vst [vmem:[%s16 + $0x30] sm:$0xff] %v2976
  %2999 = vst [vmem:[%s16 + $0x38] sm:$0xff] %v2991
  // Predicated region
  $region66: #{bilstm_tagger_forward.1} parent=0 // pred_check
    _
  $region67: #{bilstm_tagger_forward.1} parent=0 // pred_check_branch
    %3001 = sbr.rel (0) target = $region69
  $region68: #{bilstm_tagger_forward.1} parent=0 // pred_region
    _
  $region69: #{bilstm_tagger_forward.1} parent=0 // pred_fallthru
    _
  // Predicated region
  $region70: #{bilstm_tagger_forward.1} parent=0 // pred_check
    _
  $region71: #{bilstm_tagger_forward.1} parent=0 // pred_check_branch
    %3003 = sbr.rel (0) target = $region73
  $region72: #{bilstm_tagger_forward.1} parent=0 // pred_region
    _
  $region73: #{bilstm_tagger_forward.1} parent=0 // pred_fallthru
    _

</llo_original>
